<compile_context>
chip_gen: v7x
topology: tpu7x:2x2x1
jax: 0.10.0
libtpu: 0.0.40
codegen_flags: <defaults>
</compile_context>

<pallas_src>
import numpy as np
import jax
import jax.numpy as jnp
from jax.experimental import pallas as pl
from jax.experimental.pallas import tpu as pltpu

# ---- constants from the PyTorch script ----
X0, X1 = -1.0, 1.0
L = X1 - X0
M = 5                       # number of Fourier modes
HIDDEN = 50
LAYERS = 5                  # => LAYERS - 1 = 4 Z layers
OUT_DIM = 1
IN_DIM = 2 * M + 2          # = 12
NUM_Z = LAYERS - 1
HP = 56                     # HIDDEN padded up to a multiple of 8 (sublane tile)


def _round_up(x, m):
    return (x + m - 1) // m * m


def _mlp_kernel(x_ref, w_in_ref, wz_ref, bz_ref, wf_ref, bf_ref, o_ref):
    # x_ref: (2, TN)  row 0 = t, row 1 = spatial x.  Batch lives on lanes.
    t = x_ref[0:1, :]                                      # (1, TN)
    xs = x_ref[1:2, :]                                     # (1, TN)

    # ---- fused Fourier embedding, built row-wise without concatenation ----
    # feature rows: [t, 1, cos(w1 x)..cos(wM x), sin(w1 x)..sin(wM x)]
    r = jax.lax.broadcasted_iota(jnp.int32, (IN_DIM, 1), 0)            # (12, 1)
    omega = (jnp.mod(r - 2, M) + 1).astype(jnp.float32) * (2.0 * np.pi / L)
    phase = omega * xs                                                  # (12, TN)
    trig = jnp.where(r < 2 + M, jnp.cos(phase), jnp.sin(phase))         # (12, TN)
    feat = jnp.where(r == 0, t, jnp.where(r == 1, 1.0, trig))           # (12, TN)

    # ---- fused U / V / input projections (biases folded into ones column) ----
    uvh = jnp.tanh(jnp.dot(w_in_ref[...], feat,
                           preferred_element_type=jnp.float32))         # (3*HP, TN)
    u = uvh[0 * HP:1 * HP, :]
    v = uvh[1 * HP:2 * HP, :]
    h = uvh[2 * HP:3 * HP, :]

    # ---- gated residual Z layers (static unroll, 4 iterations) ----
    for l in range(NUM_Z):
        z = jnp.tanh(jnp.dot(wz_ref[l], h,
                             preferred_element_type=jnp.float32) + bz_ref[l])
        h = (1.0 - z) * u + z * v

    # ---- final layer: (1, HP) @ (HP, TN) -> lane-dense (1, TN) store ----
    o_ref[...] = (jnp.dot(wf_ref[...], h,
                          preferred_element_type=jnp.float32)
                  + bf_ref[...]).astype(o_ref.dtype)


def pack_params(params):
    """PyTorch-layout params -> padded / fused kernel operands."""
    wu, bu, wv, bv, wi, bi, wz, bz, wf, bf = params

    def pad_block(w, b):
        blk = jnp.zeros((HP, IN_DIM), jnp.float32)
        blk = blk.at[:HIDDEN, :].set(w)
        blk = blk.at[:HIDDEN, 1].add(b)       # fold bias into the ones column
        return blk

    w_in = jnp.concatenate(
        [pad_block(wu, bu), pad_block(wv, bv), pad_block(wi, bi)], axis=0)   # (3*HP, 12)
    wz_p = jnp.zeros((NUM_Z, HP, HP), jnp.float32).at[:, :HIDDEN, :HIDDEN].set(wz)
    bz_p = jnp.zeros((NUM_Z, HP, 1), jnp.float32).at[:, :HIDDEN, 0].set(bz)
    wf_p = jnp.zeros((OUT_DIM, HP), jnp.float32).at[:, :HIDDEN].set(wf)
    bf_p = bf.reshape(1, 1).astype(jnp.float32)
    return (w_in, wz_p, bz_p, wf_p, bf_p)


def modified_mlp_forward(X, packed, *, tile_n=1024):
    """X: (N, 2) -> (N, 1).  tile_n: batch tile (sweep 1024-2048 for large N)."""
    w_in, wz, bz, wf, bf = packed
    N = X.shape[0]
    tn = min(tile_n, _round_up(max(N, 1), 128))
    n_pad = _round_up(N, tn)

    # Transpose to batch-on-lanes and zero-pad the batch to a tile multiple.
    xt = jnp.zeros((2, n_pad), jnp.float32).at[:, :N].set(X.astype(jnp.float32).T)

    def full_spec(shape):
        nd = len(shape)
        return pl.BlockSpec(shape, lambda i, _nd=nd: (0,) * _nd)

    out = pl.pallas_call(
        _mlp_kernel,
        out_shape=jax.ShapeDtypeStruct((1, n_pad), jnp.float32),
        grid=(n_pad // tn,),
        in_specs=[
            pl.BlockSpec((2, tn), lambda i: (0, i)),
            full_spec(w_in.shape),
            full_spec(wz.shape),
            full_spec(bz.shape),
            full_spec(wf.shape),
            full_spec(bf.shape),
        ],
        out_specs=pl.BlockSpec((1, tn), lambda i: (0, i)),
        compiler_params=pltpu.CompilerParams(
            dimension_semantics=("parallel",)),
    )(xt, w_in, wz, bz, wf, bf)

    return out[0, :N].reshape(N, OUT_DIM)


def reference_forward(X, params):
    """Pure-JAX reference mirroring the PyTorch forward (nn.Linear layout)."""
    wu, bu, wv, bv, wi, bi, wz, bz, wf, bf = params
    X = X.astype(jnp.float32)
    t = X[:, 0:1]
    xs = X[:, 1:2]
    omegas = jnp.arange(1, M + 1, dtype=jnp.float32)[None, :] * 2.0 * jnp.pi / L
    xw = xs @ omegas
    feat = jnp.concatenate([t, jnp.ones_like(xs), jnp.cos(xw), jnp.sin(xw)], axis=1)
    u = jnp.tanh(feat @ wu.T + bu)
    v = jnp.tanh(feat @ wv.T + bv)
    h = jnp.tanh(feat @ wi.T + bi)
    for l in range(NUM_Z):
        z = jnp.tanh(h @ wz[l].T + bz[l])
        h = (1.0 - z) * u + z * v
    return h @ wf.T + bf


def init_params(key):
    """Deterministic init matching torch.nn.Linear default: U(-1/sqrt(fan_in), +).
    Weights are stored in PyTorch layout: weight (out, in), bias (out,)."""
    def linear(k, fan_in, fan_out):
        kw, kb = jax.random.split(k)
        bound = 1.0 / np.sqrt(fan_in)
        w = jax.random.uniform(kw, (fan_out, fan_in), jnp.float32, -bound, bound)
        b = jax.random.uniform(kb, (fan_out,), jnp.float32, -bound, bound)
        return w, b

    keys = jax.random.split(key, 4 + NUM_Z)
    wu, bu = linear(keys[0], IN_DIM, HIDDEN)
    wv, bv = linear(keys[1], IN_DIM, HIDDEN)
    wi, bi = linear(keys[2], IN_DIM, HIDDEN)
    wf, bf = linear(keys[3], HIDDEN, OUT_DIM)
    wz_list, bz_list = [], []
    for l in range(NUM_Z):
        w, b = linear(keys[4 + l], HIDDEN, HIDDEN)
        wz_list.append(w)
        bz_list.append(b)
    wz = jnp.stack(wz_list, axis=0)            # (NUM_Z, HIDDEN, HIDDEN)
    bz = jnp.stack(bz_list, axis=0)            # (NUM_Z, HIDDEN)
    return (wu, bu, wv, bv, wi, bi, wz, bz, wf, bf)


if __name__ == "__main__":
    key = jax.random.PRNGKey(0)
    kp, kx = jax.random.split(key)
    params = init_params(kp)
    packed = pack_params(params)

    N = 300                                    # small batch; exercises the padding path
    X = jax.random.uniform(kx, (N, 2), jnp.float32, minval=-1.0, maxval=1.0)

    out = jax.block_until_ready(modified_mlp_forward(X, packed))

    ref = reference_forward(X, params)
    assert out.shape == (N, OUT_DIM)
    np.testing.assert_allclose(np.asarray(out), np.asarray(ref),
                               rtol=1e-5, atol=2e-5)
    print("KERNEL_OK")
</pallas_src>

<mosaic_0001>
module attributes {stable_mosaic.version = 11 : i64} {
  func.func @_mlp_kernel(%arg0: i32, %arg1: memref<2x384xf32, #tpu.memory_space<vmem>>, %arg2: memref<168x12xf32, #tpu.memory_space<vmem>>, %arg3: memref<4x56x56xf32, #tpu.memory_space<vmem>>, %arg4: memref<4x56x1xf32, #tpu.memory_space<vmem>>, %arg5: memref<1x56xf32, #tpu.memory_space<vmem>>, %arg6: memref<1x1xf32, #tpu.memory_space<vmem>>, %arg7: memref<1x384xf32, #tpu.memory_space<vmem>>) attributes {dimension_semantics = [#tpu.dimension_semantics<parallel>], iteration_bounds = array<i64: 1>, scalar_prefetch = 0 : i64, scratch_operands = 0 : i64, tpu.core_type = #tpu.core_type<tc>, window_params = [{transform_indices = @transform_0, window_bounds = array<i64: 2, 384>}, {pipeline_mode = #tpu.pipeline_mode<synchronous>, transform_indices = @transform_1, window_bounds = array<i64: 168, 12>}, {pipeline_mode = #tpu.pipeline_mode<synchronous>, transform_indices = @transform_2, window_bounds = array<i64: 4, 56, 56>}, {pipeline_mode = #tpu.pipeline_mode<synchronous>, transform_indices = @transform_3, window_bounds = array<i64: 4, 56, 1>}, {pipeline_mode = #tpu.pipeline_mode<synchronous>, transform_indices = @transform_4, window_bounds = array<i64: 1, 56>}, {pipeline_mode = #tpu.pipeline_mode<synchronous>, transform_indices = @transform_5, window_bounds = array<i64: 1, 1>}, {transform_indices = @transform_6, window_bounds = array<i64: 1, 384>}]} {
    %c0 = arith.constant 0 : index
    %c0_0 = arith.constant 0 : index
    %0 = vector.load %arg1[%c0, %c0_0] : memref<2x384xf32, #tpu.memory_space<vmem>>, vector<1x384xf32>
    %c1 = arith.constant 1 : index
    %c0_1 = arith.constant 0 : index
    %1 = vector.load %arg1[%c1, %c0_1] : memref<2x384xf32, #tpu.memory_space<vmem>>, vector<1x384xf32>
    %2 = tpu.iota {dimensions = array<i32: 0>} : vector<12x1xi32>
    %c2_i32 = arith.constant 2 : i32
    %3 = vector.broadcast %c2_i32 : i32 to vector<12x1xi32>
    %4 = arith.subi %2, %3 : vector<12x1xi32>
    %c5_i32 = arith.constant 5 : i32
    %c0_i32 = arith.constant 0 : i32
    %5 = arith.cmpi eq, %c5_i32, %c0_i32 : i32
    %c1_i32 = arith.constant 1 : i32
    %6 = arith.select %5, %c1_i32, %c5_i32 : i32
    %7 = vector.broadcast %6 : i32 to vector<12x1xi32>
    %8 = arith.remsi %4, %7 : vector<12x1xi32>
    %c0_i32_2 = arith.constant 0 : i32
    %9 = vector.broadcast %c0_i32_2 : i32 to vector<12x1xi32>
    %10 = arith.cmpi ne, %8, %9 : vector<12x1xi32>
    %c0_i32_3 = arith.constant 0 : i32
    %11 = vector.broadcast %c0_i32_3 : i32 to vector<12x1xi32>
    %12 = arith.cmpi slt, %8, %11 : vector<12x1xi32>
    %c0_i32_4 = arith.constant 0 : i32
    %13 = arith.cmpi slt, %6, %c0_i32_4 : i32
    %14 = vector.broadcast %13 : i1 to vector<12x1xi1>
    %15 = vector.broadcast %14 : vector<12x1xi1> to vector<12x1xi1>
    %16 = arith.xori %12, %15 : vector<12x1xi1>
    %17 = arith.andi %16, %10 : vector<12x1xi1>
    %18 = vector.broadcast %6 : i32 to vector<12x1xi32>
    %19 = arith.addi %8, %18 : vector<12x1xi32>
    %20 = arith.select %17, %19, %8 : vector<12x1xi1>, vector<12x1xi32>
    %c1_i32_5 = arith.constant 1 : i32
    %21 = vector.broadcast %c1_i32_5 : i32 to vector<12x1xi32>
    %22 = arith.addi %20, %21 : vector<12x1xi32>
    %23 = arith.sitofp %22 : vector<12x1xi32> to vector<12x1xf32>
    %cst = arith.constant 3.14159274 : f32
    %24 = vector.broadcast %cst : f32 to vector<12x1xf32>
    %25 = arith.mulf %23, %24 : vector<12x1xf32>
    %26 = vector.broadcast %25 : vector<12x1xf32> to vector<12x384xf32>
    %27 = vector.broadcast %1 : vector<1x384xf32> to vector<12x384xf32>
    %28 = arith.mulf %26, %27 : vector<12x384xf32>
    %c7_i32 = arith.constant 7 : i32
    %29 = vector.broadcast %c7_i32 : i32 to vector<12x1xi32>
    %30 = arith.cmpi slt, %2, %29 : vector<12x1xi32>
    %31 = math.cos %28 : vector<12x384xf32>
    %32 = math.sin %28 : vector<12x384xf32>
    %33 = vector.shape_cast %30 : vector<12x1xi1> to vector<12x1xi1>
    %34 = vector.broadcast %33 : vector<12x1xi1> to vector<12x384xi1>
    %35 = arith.select %34, %31, %32 : vector<12x384xi1>, vector<12x384xf32>
    %c0_i32_6 = arith.constant 0 : i32
    %36 = vector.broadcast %c0_i32_6 : i32 to vector<12x1xi32>
    %37 = arith.cmpi eq, %2, %36 : vector<12x1xi32>
    %c1_i32_7 = arith.constant 1 : i32
    %38 = vector.broadcast %c1_i32_7 : i32 to vector<12x1xi32>
    %39 = arith.cmpi eq, %2, %38 : vector<12x1xi32>
    %cst_8 = arith.constant 1.000000e+00 : f32
    %40 = vector.shape_cast %39 : vector<12x1xi1> to vector<12x1xi1>
    %41 = vector.broadcast %40 : vector<12x1xi1> to vector<12x384xi1>
    %42 = vector.broadcast %cst_8 : f32 to vector<12x384xf32>
    %43 = arith.select %41, %42, %35 : vector<12x384xi1>, vector<12x384xf32>
    %44 = vector.shape_cast %37 : vector<12x1xi1> to vector<12x1xi1>
    %45 = vector.broadcast %44 : vector<12x1xi1> to vector<12x384xi1>
    %46 = vector.shape_cast %0 : vector<1x384xf32> to vector<1x384xf32>
    %47 = vector.broadcast %46 : vector<1x384xf32> to vector<12x384xf32>
    %48 = arith.select %45, %47, %43 : vector<12x384xi1>, vector<12x384xf32>
    %c0_9 = arith.constant 0 : index
    %c0_10 = arith.constant 0 : index
    %49 = vector.load %arg2[%c0_9, %c0_10] : memref<168x12xf32, #tpu.memory_space<vmem>>, vector<168x12xf32>
    %cst_11 = arith.constant dense<0.000000e+00> : vector<168x384xf32>
    %50 = tpu.matmul %49, %48, %cst_11 {dimension_numbers = #tpu.dot_dimension_numbers<[1], [0], [0], [1], [0, 0, 1, 1], [], []>} : vector<168x12xf32>, vector<12x384xf32>, vector<168x384xf32> -> vector<168x384xf32>
    %51 = math.tanh %50 : vector<168x384xf32>
    %52 = vector.extract_strided_slice %51 {offsets = [0, 0], sizes = [56, 384], strides = [1, 1]} : vector<168x384xf32> to vector<56x384xf32>
    %53 = vector.extract_strided_slice %51 {offsets = [56, 0], sizes = [56, 384], strides = [1, 1]} : vector<168x384xf32> to vector<56x384xf32>
    %54 = vector.extract_strided_slice %51 {offsets = [112, 0], sizes = [56, 384], strides = [1, 1]} : vector<168x384xf32> to vector<56x384xf32>
    %c0_12 = arith.constant 0 : index
    %c0_13 = arith.constant 0 : index
    %c0_14 = arith.constant 0 : index
    %55 = vector.load %arg3[%c0_12, %c0_13, %c0_14] : memref<4x56x56xf32, #tpu.memory_space<vmem>>, vector<1x56x56xf32>
    %56 = vector.shape_cast %55 : vector<1x56x56xf32> to vector<56x56xf32>
    %cst_15 = arith.constant dense<0.000000e+00> : vector<56x384xf32>
    %57 = tpu.matmul %56, %54, %cst_15 {dimension_numbers = #tpu.dot_dimension_numbers<[1], [0], [0], [1], [0, 0, 1, 1], [], []>} : vector<56x56xf32>, vector<56x384xf32>, vector<56x384xf32> -> vector<56x384xf32>
    %c0_16 = arith.constant 0 : index
    %c0_17 = arith.constant 0 : index
    %c0_18 = arith.constant 0 : index
    %58 = vector.load %arg4[%c0_16, %c0_17, %c0_18] : memref<4x56x1xf32, #tpu.memory_space<vmem>>, vector<1x56x1xf32>
    %59 = vector.shape_cast %58 : vector<1x56x1xf32> to vector<56x1xf32>
    %60 = vector.broadcast %59 : vector<56x1xf32> to vector<56x384xf32>
    %61 = arith.addf %57, %60 : vector<56x384xf32>
    %62 = math.tanh %61 : vector<56x384xf32>
    %cst_19 = arith.constant 1.000000e+00 : f32
    %63 = vector.broadcast %cst_19 : f32 to vector<56x384xf32>
    %64 = arith.subf %63, %62 : vector<56x384xf32>
    %65 = arith.mulf %64, %52 : vector<56x384xf32>
    %66 = arith.mulf %62, %53 : vector<56x384xf32>
    %67 = arith.addf %65, %66 : vector<56x384xf32>
    %c1_20 = arith.constant 1 : index
    %c0_21 = arith.constant 0 : index
    %c0_22 = arith.constant 0 : index
    %68 = vector.load %arg3[%c1_20, %c0_21, %c0_22] : memref<4x56x56xf32, #tpu.memory_space<vmem>>, vector<1x56x56xf32>
    %69 = vector.shape_cast %68 : vector<1x56x56xf32> to vector<56x56xf32>
    %cst_23 = arith.constant dense<0.000000e+00> : vector<56x384xf32>
    %70 = tpu.matmul %69, %67, %cst_23 {dimension_numbers = #tpu.dot_dimension_numbers<[1], [0], [0], [1], [0, 0, 1, 1], [], []>} : vector<56x56xf32>, vector<56x384xf32>, vector<56x384xf32> -> vector<56x384xf32>
    %c1_24 = arith.constant 1 : index
    %c0_25 = arith.constant 0 : index
    %c0_26 = arith.constant 0 : index
    %71 = vector.load %arg4[%c1_24, %c0_25, %c0_26] : memref<4x56x1xf32, #tpu.memory_space<vmem>>, vector<1x56x1xf32>
    %72 = vector.shape_cast %71 : vector<1x56x1xf32> to vector<56x1xf32>
    %73 = vector.broadcast %72 : vector<56x1xf32> to vector<56x384xf32>
    %74 = arith.addf %70, %73 : vector<56x384xf32>
    %75 = math.tanh %74 : vector<56x384xf32>
    %cst_27 = arith.constant 1.000000e+00 : f32
    %76 = vector.broadcast %cst_27 : f32 to vector<56x384xf32>
    %77 = arith.subf %76, %75 : vector<56x384xf32>
    %78 = arith.mulf %77, %52 : vector<56x384xf32>
    %79 = arith.mulf %75, %53 : vector<56x384xf32>
    %80 = arith.addf %78, %79 : vector<56x384xf32>
    %c2 = arith.constant 2 : index
    %c0_28 = arith.constant 0 : index
    %c0_29 = arith.constant 0 : index
    %81 = vector.load %arg3[%c2, %c0_28, %c0_29] : memref<4x56x56xf32, #tpu.memory_space<vmem>>, vector<1x56x56xf32>
    %82 = vector.shape_cast %81 : vector<1x56x56xf32> to vector<56x56xf32>
    %cst_30 = arith.constant dense<0.000000e+00> : vector<56x384xf32>
    %83 = tpu.matmul %82, %80, %cst_30 {dimension_numbers = #tpu.dot_dimension_numbers<[1], [0], [0], [1], [0, 0, 1, 1], [], []>} : vector<56x56xf32>, vector<56x384xf32>, vector<56x384xf32> -> vector<56x384xf32>
    %c2_31 = arith.constant 2 : index
    %c0_32 = arith.constant 0 : index
    %c0_33 = arith.constant 0 : index
    %84 = vector.load %arg4[%c2_31, %c0_32, %c0_33] : memref<4x56x1xf32, #tpu.memory_space<vmem>>, vector<1x56x1xf32>
    %85 = vector.shape_cast %84 : vector<1x56x1xf32> to vector<56x1xf32>
    %86 = vector.broadcast %85 : vector<56x1xf32> to vector<56x384xf32>
    %87 = arith.addf %83, %86 : vector<56x384xf32>
    %88 = math.tanh %87 : vector<56x384xf32>
    %cst_34 = arith.constant 1.000000e+00 : f32
    %89 = vector.broadcast %cst_34 : f32 to vector<56x384xf32>
    %90 = arith.subf %89, %88 : vector<56x384xf32>
    %91 = arith.mulf %90, %52 : vector<56x384xf32>
    %92 = arith.mulf %88, %53 : vector<56x384xf32>
    %93 = arith.addf %91, %92 : vector<56x384xf32>
    %c3 = arith.constant 3 : index
    %c0_35 = arith.constant 0 : index
    %c0_36 = arith.constant 0 : index
    %94 = vector.load %arg3[%c3, %c0_35, %c0_36] : memref<4x56x56xf32, #tpu.memory_space<vmem>>, vector<1x56x56xf32>
    %95 = vector.shape_cast %94 : vector<1x56x56xf32> to vector<56x56xf32>
    %cst_37 = arith.constant dense<0.000000e+00> : vector<56x384xf32>
    %96 = tpu.matmul %95, %93, %cst_37 {dimension_numbers = #tpu.dot_dimension_numbers<[1], [0], [0], [1], [0, 0, 1, 1], [], []>} : vector<56x56xf32>, vector<56x384xf32>, vector<56x384xf32> -> vector<56x384xf32>
    %c3_38 = arith.constant 3 : index
    %c0_39 = arith.constant 0 : index
    %c0_40 = arith.constant 0 : index
    %97 = vector.load %arg4[%c3_38, %c0_39, %c0_40] : memref<4x56x1xf32, #tpu.memory_space<vmem>>, vector<1x56x1xf32>
    %98 = vector.shape_cast %97 : vector<1x56x1xf32> to vector<56x1xf32>
    %99 = vector.broadcast %98 : vector<56x1xf32> to vector<56x384xf32>
    %100 = arith.addf %96, %99 : vector<56x384xf32>
    %101 = math.tanh %100 : vector<56x384xf32>
    %cst_41 = arith.constant 1.000000e+00 : f32
    %102 = vector.broadcast %cst_41 : f32 to vector<56x384xf32>
    %103 = arith.subf %102, %101 : vector<56x384xf32>
    %104 = arith.mulf %103, %52 : vector<56x384xf32>
    %105 = arith.mulf %101, %53 : vector<56x384xf32>
    %106 = arith.addf %104, %105 : vector<56x384xf32>
    %c0_42 = arith.constant 0 : index
    %c0_43 = arith.constant 0 : index
    %107 = vector.load %arg5[%c0_42, %c0_43] : memref<1x56xf32, #tpu.memory_space<vmem>>, vector<1x56xf32>
    %cst_44 = arith.constant dense<0.000000e+00> : vector<1x384xf32>
    %108 = tpu.matmul %107, %106, %cst_44 {dimension_numbers = #tpu.dot_dimension_numbers<[1], [0], [0], [1], [0, 0, 1, 1], [], []>} : vector<1x56xf32>, vector<56x384xf32>, vector<1x384xf32> -> vector<1x384xf32>
    %c0_45 = arith.constant 0 : index
    %c0_46 = arith.constant 0 : index
    %109 = vector.load %arg6[%c0_45, %c0_46] : memref<1x1xf32, #tpu.memory_space<vmem>>, vector<1x1xf32>
    %110 = vector.broadcast %109 : vector<1x1xf32> to vector<1x384xf32>
    %111 = arith.addf %108, %110 : vector<1x384xf32>
    %c0_47 = arith.constant 0 : index
    %c0_48 = arith.constant 0 : index
    %112 = vector.load %arg7[%c0_47, %c0_48] : memref<1x384xf32, #tpu.memory_space<vmem>>, vector<1x384xf32>
    tpu.vector_store %arg7[%c0_47, %c0_48], %111 {strides = array<i32>} : memref<1x384xf32, #tpu.memory_space<vmem>>, vector<1x384xf32>,
    return
  }
  func.func @transform_0(%arg0: i32) -> (i32, i32) {
    %c0_i32 = arith.constant 0 : i32
    %c0_i32_0 = arith.constant 0 : i32
    return %c0_i32, %arg0 : i32, i32
  }
  func.func @transform_1(%arg0: i32) -> (i32, i32) {
    %c0_i32 = arith.constant 0 : i32
    %c0_i32_0 = arith.constant 0 : i32
    %c0_i32_1 = arith.constant 0 : i32
    return %c0_i32, %c0_i32_0 : i32, i32
  }
  func.func @transform_2(%arg0: i32) -> (i32, i32, i32) {
    %c0_i32 = arith.constant 0 : i32
    %c0_i32_0 = arith.constant 0 : i32
    %c0_i32_1 = arith.constant 0 : i32
    %c0_i32_2 = arith.constant 0 : i32
    return %c0_i32, %c0_i32_0, %c0_i32_1 : i32, i32, i32
  }
  func.func @transform_3(%arg0: i32) -> (i32, i32, i32) {
    %c0_i32 = arith.constant 0 : i32
    %c0_i32_0 = arith.constant 0 : i32
    %c0_i32_1 = arith.constant 0 : i32
    %c0_i32_2 = arith.constant 0 : i32
    return %c0_i32, %c0_i32_0, %c0_i32_1 : i32, i32, i32
  }
  func.func @transform_4(%arg0: i32) -> (i32, i32) {
    %c0_i32 = arith.constant 0 : i32
    %c0_i32_0 = arith.constant 0 : i32
    %c0_i32_1 = arith.constant 0 : i32
    return %c0_i32, %c0_i32_0 : i32, i32
  }
  func.func @transform_5(%arg0: i32) -> (i32, i32) {
    %c0_i32 = arith.constant 0 : i32
    %c0_i32_0 = arith.constant 0 : i32
    %c0_i32_1 = arith.constant 0 : i32
    return %c0_i32, %c0_i32_0 : i32, i32
  }
  func.func @transform_6(%arg0: i32) -> (i32, i32) {
    %c0_i32 = arith.constant 0 : i32
    %c0_i32_0 = arith.constant 0 : i32
    return %c0_i32, %arg0 : i32, i32
  }
}

</mosaic_0001>

<llo_original>
// kernel: tpu_custom_call.1
$region0: #{tpu_custom_call.1}
  #allocation0 [shape = 'u32[]', space=smem, size = 0x4, offset = 0x4, fixed_abs, tag = 'smem constant byte address 0x4 - core index']
  #allocation1 [shape = 'u32[144,128]{1,0:T(1,128)}', space=vmem, size = 0x12000, scoped, tag = 'internal scratch']
  #allocation2 [shape = 'f32[1,1]{1,0:T(1,128)S(1)}', space=vmem, size = 0x200, scoped, tag = 'scoped memory for tpu_custom_call.1']
  %s0 = inlined_call_operand.vmem [shape: f32[2,384], index: 0, kind: input, shape index: {}]
  %s1 = inlined_call_operand.vmem [shape: f32[168,12], index: 1, kind: input, shape index: {}]
  %s2 = inlined_call_operand.vmem [shape: f32[4,56,56], index: 2, kind: input, shape index: {}]
  %s3 = inlined_call_operand.vmem [shape: f32[4,56,1], index: 3, kind: input, shape index: {}]
  %s4 = inlined_call_operand.vmem [shape: f32[1,56], index: 4, kind: input, shape index: {}]
  %s5 = inlined_call_operand.<no memory space> [shape: f32[1,1], index: 5, kind: input, shape index: {}]
  %s6 = inlined_call_operand.hbm [shape: f32[1,384], index: 6, kind: output, shape index: {}]
  %s7 = sld [smem:[#allocation0]]
  $region34: #{tpu_custom_call.1} parent=0
    _
  %s9 = ssub.s32 1, %s7
  %s10 = scalar_select 0, %s9, %s7
  %v11 = vstv %s5
  %12 = vst [vmem:[#allocation2] sm:$0x1] %v11
  $region1: #{tpu_custom_call.1} parent=0
    #allocation3 [shape = 'u8[1536]{0}', space=vmem, size = 0x800, scoped, tag = 'output window, operand 0, single buffered']
    #allocation4 [shape = 's32[1]{0}', space=sflag, size = 0x4, scoped, tag = 'scoped memory for tpu_custom_call.1']
    %13 = vsyncpa [#allocation4], 0
    // Predicated region
    $region2: #{tpu_custom_call.1} parent=1 // pred_check
      _
    $region3: #{tpu_custom_call.1} parent=1 // pred_check_branch
      %15 = sbr.rel (0) target = $region5
    $region4: #{tpu_custom_call.1} parent=1 // pred_region
      _
    $region5: #{tpu_custom_call.1} parent=1 // pred_fallthru
      _
    // Predicated region
    $region6: #{tpu_custom_call.1} parent=1 // pred_check
      _
    $region7: #{tpu_custom_call.1} parent=1 // pred_check_branch
      %17 = sbr.rel (0) target = $region9
    $region8: #{tpu_custom_call.1} parent=1 // pred_region
      _
    $region9: #{tpu_custom_call.1} parent=1 // pred_fallthru
      _
    // Predicated region
    $region10: #{tpu_custom_call.1} parent=1 // pred_check
      _
    $region11: #{tpu_custom_call.1} parent=1 // pred_check_branch
      %19 = sbr.rel (0) target = $region13
    $region12: #{tpu_custom_call.1} parent=1 // pred_region
      _
    $region13: #{tpu_custom_call.1} parent=1 // pred_fallthru
      _
    // Predicated region
    $region14: #{tpu_custom_call.1} parent=1 // pred_check
      _
    $region15: #{tpu_custom_call.1} parent=1 // pred_check_branch
      %21 = sbr.rel (0) target = $region17
    $region16: #{tpu_custom_call.1} parent=1 // pred_region
      _
    $region17: #{tpu_custom_call.1} parent=1 // pred_fallthru
      _
    // Predicated region
    $region18: #{tpu_custom_call.1} parent=1 // pred_check
      _
    $region19: #{tpu_custom_call.1} parent=1 // pred_check_branch
      %23 = sbr.rel (0) target = $region21
    $region20: #{tpu_custom_call.1} parent=1 // pred_region
      _
    $region21: #{tpu_custom_call.1} parent=1 // pred_fallthru
      _
    // Predicated region
    $region22: #{tpu_custom_call.1} parent=1 // pred_check
      _
    $region23: #{tpu_custom_call.1} parent=1 // pred_check_branch
      %25 = sbr.rel (0) target = $region25
    $region24: #{tpu_custom_call.1} parent=1 // pred_region
      _
    $region25: #{tpu_custom_call.1} parent=1 // pred_fallthru
      _
    %v26 = vld [vmem:[%s0] ss:$2 sm:$0x7]
    %s27 = scalar_lea.vmem %s0, 1
    %v28 = vld [vmem:[%s27] ss:$2 sm:$0x7]
    %v29 = vlaneseq
    %v30 = vshrl.u32 %v29, 7
    %v31 = vadd.s32 %v30, 8
    %v32 = vsub.s32 %v30, 2
    %v33 = vsub.s32 %v31, 2
    %vm34 = vcmp.lt.s32.totalorder %v32, 0
    %v35 = vsub.s32 0, %v32
    %v36 = vsel %vm34, %v35, %v32
    %v37 = vmul.u32.u64.compose %v36, 3435973837
    %v38 = vextract.low.u32 %v37
    %v39 = vextract.high.u32 %v37
    %v40 = vshrl.u32 %v39, 2
    %v41 = vmul.u32 %v40, 5
    %v42 = vsub.s32 %v36, %v41
    %v43 = vsub.s32 0, %v42
    %v44 = vsel %vm34, %v43, %v42
    %vm45 = vcmp.lt.s32.totalorder %v33, 0
    %v46 = vsub.s32 0, %v33
    %v47 = vsel %vm45, %v46, %v33
    %v48 = vmul.u32.u64.compose %v47, 3435973837
    %v49 = vextract.low.u32 %v48
    %v50 = vextract.high.u32 %v48
    %v51 = vshrl.u32 %v50, 2
    %v52 = vmul.u32 %v51, 5
    %v53 = vsub.s32 %v47, %v52
    %v54 = vsub.s32 0, %v53
    %v55 = vsel %vm45, %v54, %v53
    %vm56 = vcmp.ne.s32.totalorder %v44, 0
    %vm57 = vcmp.ne.s32.totalorder %v55, 0
    %vm58 = vcmp.lt.s32.totalorder %v44, 0
    %vm59 = vcmp.lt.s32.totalorder %v55, 0
    %vm60 = vmand %vm58, %vm56
    %vm61 = vmand %vm59, %vm57
    %v62 = vadd.s32 %v44, 5
    %v63 = vadd.s32 %v55, 5
    %v64 = vsel %vm60, %v62, %v44
    %v65 = vsel %vm61, %v63, %v55
    %v66 = vadd.s32 %v64, 1
    %v67 = vadd.s32 %v65, 1
    %v68 = vcvt.s32.f32 %v66
    %v69 = vcvt.s32.f32 %v67
    %v70 = vmul.f32 %v68, 3.1415927
    %v71 = vmul.f32 %v69, 3.1415927
    %v73 = vlaneseq
    %v74 = vshrl.u32 %v73, 7
    %v75 = vsub.s32 0, %v74
    %v76 = vrot.slane %v28, %v75
    %v77 = vlaneseq
    %v78 = vshrl.u32 %v77, 7
    %v79 = vsub.s32 1, %v78
    %v80 = vrot.slane %v28, %v79
    %v81 = vlaneseq
    %v82 = vshrl.u32 %v81, 7
    %v83 = vsub.s32 2, %v82
    %v84 = vrot.slane %v28, %v83
    %v88 = vmul.f32 %v70, %v76
    %v89 = vmul.f32 %v70, %v80
    %v90 = vmul.f32 %v70, %v84
    %v91 = vmul.f32 %v71, %v76
    %v92 = vmul.f32 %v71, %v80
    %v93 = vmul.f32 %v71, %v84
    %vm94 = vcmp.lt.s32.totalorder %v30, 7
    %vm95 = vcmp.lt.s32.totalorder %v31, 7
    %v96 = vand.u32 2147483647, %v88
    %vm97 = vcmp.le.f32.partialorder %v96, 0.7853982
    %vm98 = vcmp.lt.s32.totalorder %v88, 0
    %v99 = vand.u32 %v88, 2139095040
    %v100 = vshrl.u32 %v99, 23
    %v101 = vsub.s32 %v100, 127
    %v102 = vand.u32 2147483647, %v88
    %v103 = vand.u32 %v102, 8388607
    %v104 = vor.u32 %v103, 8388608
    %v105 = vsub.s32 0, %v104
    %v106 = vadd.s32 %v101, 1
    %vm107 = vcmp.gt.s32.totalorder %v106, 0
    %v108 = vsel %vm107, %v106, 0
    %v109 = vshrl.u32 %v108, 5
    %v110 = vand.u32 %v108, 31
    %v111 = vsub.s32 32, %v110
    %v112 = vshrl.u32 683565275, %v111
    %v113 = vshll.u32 683565275, %v110
    %v114 = vshrl.u32 2475754826, %v111
    %v115 = vor.u32 %v113, %v114
    %v116 = vshll.u32 2475754826, %v110
    %v117 = vshrl.u32 2131351028, %v111
    %v118 = vor.u32 %v116, %v117
    %v119 = vshll.u32 2131351028, %v110
    %v120 = vshrl.u32 2102212464, %v111
    %v121 = vor.u32 %v119, %v120
    %v122 = vshll.u32 2102212464, %v110
    %v123 = vshrl.u32 920167782, %v111
    %v124 = vor.u32 %v122, %v123
    %v125 = vshll.u32 920167782, %v110
    %v126 = vshrl.u32 1326507024, %v111
    %v127 = vor.u32 %v125, %v126
    %vm128 = vcmp.lt.s32.totalorder %v109, 1
    %vm129 = vcmp.lt.s32.totalorder %v109, 2
    %vm130 = vcmp.lt.s32.totalorder %v109, 3
    %vm131 = vcmp.lt.s32.totalorder %v109, 4
    %v132 = vsel %vm128, %v112, %v115
    %v133 = vsel %vm131, %v121, 2102212464
    %v134 = vsel %vm130, %v118, %v133
    %v135 = vsel %vm129, %v132, %v134
    %v136 = vsel %vm128, %v115, %v118
    %v137 = vsel %vm131, %v124, 920167782
    %v138 = vsel %vm130, %v121, %v137
    %v139 = vsel %vm129, %v136, %v138
    %v140 = vsel %vm128, %v118, %v121
    %v141 = vsel %vm131, %v127, 1326507024
    %v142 = vsel %vm130, %v124, %v141
    %v143 = vsel %vm129, %v140, %v142
    %v144 = vshll.u32 %v104, 8
    %v145 = vmul.u32.u64.compose %v144, %v143
    %v146 = vextract.low.u32 %v145
    %v147 = vextract.high.u32 %v145
    %v148 = vmul.u32.u64.compose %v144, %v139
    %v149 = vextract.low.u32 %v148
    %v150 = vextract.high.u32 %v148
    %v151 = vmul.u32 %v144, %v135
    %v152 = vadd.s32 %v147, %v149
    %vm153 = vc.u32 %v147, %v149
    %v154 = vadd.s32 %v150, 1
    %v155 = vsel %vm153, %v154, %v150
    %v156 = vadd.s32 %v151, %v155
    %v157 = vadd.s32 %v156, 536870912
    %v158 = vshrl.u32 %v157, 30
    %v159 = vshll.u32 %v158, 30
    %v160 = vsub.s32 %v156, %v159
    %vm161 = vcmp.lt.s32.totalorder %v160, 0
    %v162 = vsub.s32 0, %v160
    %v163 = vsel %vm161, %v162, %v160
    %v164 = vclz %v163
    %v165 = vsub.s32 %v164, 2
    %vm166 = vcmp.gt.s32.totalorder 0, %v165
    %v167 = vsel %vm166, 0, %v165
    %v168 = vsub.s32 32, %v167
    %v169 = vshll.u32 %v160, %v167
    %v170 = vshrl.u32 %v152, %v168
    %v171 = vor.u32 %v169, %v170
    %v172 = vsub.s32 4294967266, %v167
    %v173 = vadd.s32 %v172, 127
    %v174 = vshll.u32 %v173, 23
    %v175 = vor.u32 4788187, %v174
    %v176 = vand.u32 2147483647, %v175
    %v178 = vcvt.s32.f32 %v171
    %v179 = vmul.f32 %v178, %v176
    %v180 = vxor.u32 %v179, 2147483648
    %v181 = vsel %vm98, %v180, %v179
    %v182 = vsub.s32 4, %v158
    %v183 = vsel %vm98, %v182, %v158
    %v184 = vsel %vm97, %v88, %v181
    %v185 = vsel %vm97, 0, %v183
    %v186 = vcosq.f32.pop %v184
    %v187 = vsinq.f32.pop %v184
    %vm188 = vweird.f32 %v88
    %v189 = vand.u32 %v185, 3
    %vm190 = vcmp.lt.s32.totalorder %v189, 2
    %vm191 = vcmp.eq.s32.totalorder %v189, 0
    %v192 = vxor.u32 %v187, 2147483648
    %v193 = vsel %vm191, %v186, %v192
    %vm194 = vcmp.eq.s32.totalorder %v189, 2
    %v195 = vxor.u32 %v186, 2147483648
    %v196 = vsel %vm194, %v195, %v187
    %v197 = vsel %vm190, %v193, %v196
    %v198 = vsel %vm188, nan, %v197
    %v199 = vand.u32 2147483647, %v89
    %vm200 = vcmp.le.f32.partialorder %v199, 0.7853982
    %vm201 = vcmp.lt.s32.totalorder %v89, 0
    %v202 = vand.u32 %v89, 2139095040
    %v203 = vshrl.u32 %v202, 23
    %v204 = vsub.s32 %v203, 127
    %v205 = vand.u32 2147483647, %v89
    %v206 = vand.u32 %v205, 8388607
    %v207 = vor.u32 %v206, 8388608
    %v208 = vsub.s32 0, %v207
    %v209 = vadd.s32 %v204, 1
    %vm210 = vcmp.gt.s32.totalorder %v209, 0
    %v211 = vsel %vm210, %v209, 0
    %v212 = vshrl.u32 %v211, 5
    %v213 = vand.u32 %v211, 31
    %v214 = vsub.s32 32, %v213
    %v215 = vshrl.u32 683565275, %v214
    %v216 = vshll.u32 683565275, %v213
    %v217 = vshrl.u32 2475754826, %v214
    %v218 = vor.u32 %v216, %v217
    %v219 = vshll.u32 2475754826, %v213
    %v220 = vshrl.u32 2131351028, %v214
    %v221 = vor.u32 %v219, %v220
    %v222 = vshll.u32 2131351028, %v213
    %v223 = vshrl.u32 2102212464, %v214
    %v224 = vor.u32 %v222, %v223
    %v225 = vshll.u32 2102212464, %v213
    %v226 = vshrl.u32 920167782, %v214
    %v227 = vor.u32 %v225, %v226
    %v228 = vshll.u32 920167782, %v213
    %v229 = vshrl.u32 1326507024, %v214
    %v230 = vor.u32 %v228, %v229
    %vm231 = vcmp.lt.s32.totalorder %v212, 1
    %vm232 = vcmp.lt.s32.totalorder %v212, 2
    %vm233 = vcmp.lt.s32.totalorder %v212, 3
    %vm234 = vcmp.lt.s32.totalorder %v212, 4
    %v235 = vsel %vm231, %v215, %v218
    %v236 = vsel %vm234, %v224, 2102212464
    %v237 = vsel %vm233, %v221, %v236
    %v238 = vsel %vm232, %v235, %v237
    %v239 = vsel %vm231, %v218, %v221
    %v240 = vsel %vm234, %v227, 920167782
    %v241 = vsel %vm233, %v224, %v240
    %v242 = vsel %vm232, %v239, %v241
    %v243 = vsel %vm231, %v221, %v224
    %v244 = vsel %vm234, %v230, 1326507024
    %v245 = vsel %vm233, %v227, %v244
    %v246 = vsel %vm232, %v243, %v245
    %v247 = vshll.u32 %v207, 8
    %v248 = vmul.u32.u64.compose %v247, %v246
    %v249 = vextract.low.u32 %v248
    %v250 = vextract.high.u32 %v248
    %v251 = vmul.u32.u64.compose %v247, %v242
    %v252 = vextract.low.u32 %v251
    %v253 = vextract.high.u32 %v251
    %v254 = vmul.u32 %v247, %v238
    %v255 = vadd.s32 %v250, %v252
    %vm256 = vc.u32 %v250, %v252
    %v257 = vadd.s32 %v253, 1
    %v258 = vsel %vm256, %v257, %v253
    %v259 = vadd.s32 %v254, %v258
    %v260 = vadd.s32 %v259, 536870912
    %v261 = vshrl.u32 %v260, 30
    %v262 = vshll.u32 %v261, 30
    %v263 = vsub.s32 %v259, %v262
    %vm264 = vcmp.lt.s32.totalorder %v263, 0
    %v265 = vsub.s32 0, %v263
    %v266 = vsel %vm264, %v265, %v263
    %v267 = vclz %v266
    %v268 = vsub.s32 %v267, 2
    %vm269 = vcmp.gt.s32.totalorder 0, %v268
    %v270 = vsel %vm269, 0, %v268
    %v271 = vsub.s32 32, %v270
    %v272 = vshll.u32 %v263, %v270
    %v273 = vshrl.u32 %v255, %v271
    %v274 = vor.u32 %v272, %v273
    %v275 = vsub.s32 4294967266, %v270
    %v276 = vadd.s32 %v275, 127
    %v277 = vshll.u32 %v276, 23
    %v278 = vor.u32 4788187, %v277
    %v279 = vand.u32 2147483647, %v278
    %v281 = vcvt.s32.f32 %v274
    %v282 = vmul.f32 %v281, %v279
    %v283 = vxor.u32 %v282, 2147483648
    %v284 = vsel %vm201, %v283, %v282
    %v285 = vsub.s32 4, %v261
    %v286 = vsel %vm201, %v285, %v261
    %v287 = vsel %vm200, %v89, %v284
    %v288 = vsel %vm200, 0, %v286
    %v289 = vcosq.f32.pop %v287
    %v290 = vsinq.f32.pop %v287
    %vm291 = vweird.f32 %v89
    %v292 = vand.u32 %v288, 3
    %vm293 = vcmp.lt.s32.totalorder %v292, 2
    %vm294 = vcmp.eq.s32.totalorder %v292, 0
    %v295 = vxor.u32 %v290, 2147483648
    %v296 = vsel %vm294, %v289, %v295
    %vm297 = vcmp.eq.s32.totalorder %v292, 2
    %v298 = vxor.u32 %v289, 2147483648
    %v299 = vsel %vm297, %v298, %v290
    %v300 = vsel %vm293, %v296, %v299
    %v301 = vsel %vm291, nan, %v300
    %v302 = vand.u32 2147483647, %v90
    %vm303 = vcmp.le.f32.partialorder %v302, 0.7853982
    %vm304 = vcmp.lt.s32.totalorder %v90, 0
    %v305 = vand.u32 %v90, 2139095040
    %v306 = vshrl.u32 %v305, 23
    %v307 = vsub.s32 %v306, 127
    %v308 = vand.u32 2147483647, %v90
    %v309 = vand.u32 %v308, 8388607
    %v310 = vor.u32 %v309, 8388608
    %v311 = vsub.s32 0, %v310
    %v312 = vadd.s32 %v307, 1
    %vm313 = vcmp.gt.s32.totalorder %v312, 0
    %v314 = vsel %vm313, %v312, 0
    %v315 = vshrl.u32 %v314, 5
    %v316 = vand.u32 %v314, 31
    %v317 = vsub.s32 32, %v316
    %v318 = vshrl.u32 683565275, %v317
    %v319 = vshll.u32 683565275, %v316
    %v320 = vshrl.u32 2475754826, %v317
    %v321 = vor.u32 %v319, %v320
    %v322 = vshll.u32 2475754826, %v316
    %v323 = vshrl.u32 2131351028, %v317
    %v324 = vor.u32 %v322, %v323
    %v325 = vshll.u32 2131351028, %v316
    %v326 = vshrl.u32 2102212464, %v317
    %v327 = vor.u32 %v325, %v326
    %v328 = vshll.u32 2102212464, %v316
    %v329 = vshrl.u32 920167782, %v317
    %v330 = vor.u32 %v328, %v329
    %v331 = vshll.u32 920167782, %v316
    %v332 = vshrl.u32 1326507024, %v317
    %v333 = vor.u32 %v331, %v332
    %vm334 = vcmp.lt.s32.totalorder %v315, 1
    %vm335 = vcmp.lt.s32.totalorder %v315, 2
    %vm336 = vcmp.lt.s32.totalorder %v315, 3
    %vm337 = vcmp.lt.s32.totalorder %v315, 4
    %v338 = vsel %vm334, %v318, %v321
    %v339 = vsel %vm337, %v327, 2102212464
    %v340 = vsel %vm336, %v324, %v339
    %v341 = vsel %vm335, %v338, %v340
    %v342 = vsel %vm334, %v321, %v324
    %v343 = vsel %vm337, %v330, 920167782
    %v344 = vsel %vm336, %v327, %v343
    %v345 = vsel %vm335, %v342, %v344
    %v346 = vsel %vm334, %v324, %v327
    %v347 = vsel %vm337, %v333, 1326507024
    %v348 = vsel %vm336, %v330, %v347
    %v349 = vsel %vm335, %v346, %v348
    %v350 = vshll.u32 %v310, 8
    %v351 = vmul.u32.u64.compose %v350, %v349
    %v352 = vextract.low.u32 %v351
    %v353 = vextract.high.u32 %v351
    %v354 = vmul.u32.u64.compose %v350, %v345
    %v355 = vextract.low.u32 %v354
    %v356 = vextract.high.u32 %v354
    %v357 = vmul.u32 %v350, %v341
    %v358 = vadd.s32 %v353, %v355
    %vm359 = vc.u32 %v353, %v355
    %v360 = vadd.s32 %v356, 1
    %v361 = vsel %vm359, %v360, %v356
    %v362 = vadd.s32 %v357, %v361
    %v363 = vadd.s32 %v362, 536870912
    %v364 = vshrl.u32 %v363, 30
    %v365 = vshll.u32 %v364, 30
    %v366 = vsub.s32 %v362, %v365
    %vm367 = vcmp.lt.s32.totalorder %v366, 0
    %v368 = vsub.s32 0, %v366
    %v369 = vsel %vm367, %v368, %v366
    %v370 = vclz %v369
    %v371 = vsub.s32 %v370, 2
    %vm372 = vcmp.gt.s32.totalorder 0, %v371
    %v373 = vsel %vm372, 0, %v371
    %v374 = vsub.s32 32, %v373
    %v375 = vshll.u32 %v366, %v373
    %v376 = vshrl.u32 %v358, %v374
    %v377 = vor.u32 %v375, %v376
    %v378 = vsub.s32 4294967266, %v373
    %v379 = vadd.s32 %v378, 127
    %v380 = vshll.u32 %v379, 23
    %v381 = vor.u32 4788187, %v380
    %v382 = vand.u32 2147483647, %v381
    %v384 = vcvt.s32.f32 %v377
    %v385 = vmul.f32 %v384, %v382
    %v386 = vxor.u32 %v385, 2147483648
    %v387 = vsel %vm304, %v386, %v385
    %v388 = vsub.s32 4, %v364
    %v389 = vsel %vm304, %v388, %v364
    %v390 = vsel %vm303, %v90, %v387
    %v391 = vsel %vm303, 0, %v389
    %v392 = vcosq.f32.pop %v390
    %v393 = vsinq.f32.pop %v390
    %vm394 = vweird.f32 %v90
    %v395 = vand.u32 %v391, 3
    %vm396 = vcmp.lt.s32.totalorder %v395, 2
    %vm397 = vcmp.eq.s32.totalorder %v395, 0
    %v398 = vxor.u32 %v393, 2147483648
    %v399 = vsel %vm397, %v392, %v398
    %vm400 = vcmp.eq.s32.totalorder %v395, 2
    %v401 = vxor.u32 %v392, 2147483648
    %v402 = vsel %vm400, %v401, %v393
    %v403 = vsel %vm396, %v399, %v402
    %v404 = vsel %vm394, nan, %v403
    %v405 = vand.u32 2147483647, %v91
    %vm406 = vcmp.le.f32.partialorder %v405, 0.7853982
    %vm407 = vcmp.lt.s32.totalorder %v91, 0
    %v408 = vand.u32 %v91, 2139095040
    %v409 = vshrl.u32 %v408, 23
    %v410 = vsub.s32 %v409, 127
    %v411 = vand.u32 2147483647, %v91
    %v412 = vand.u32 %v411, 8388607
    %v413 = vor.u32 %v412, 8388608
    %v414 = vsub.s32 0, %v413
    %v415 = vadd.s32 %v410, 1
    %vm416 = vcmp.gt.s32.totalorder %v415, 0
    %v417 = vsel %vm416, %v415, 0
    %v418 = vshrl.u32 %v417, 5
    %v419 = vand.u32 %v417, 31
    %v420 = vsub.s32 32, %v419
    %v421 = vshrl.u32 683565275, %v420
    %v422 = vshll.u32 683565275, %v419
    %v423 = vshrl.u32 2475754826, %v420
    %v424 = vor.u32 %v422, %v423
    %v425 = vshll.u32 2475754826, %v419
    %v426 = vshrl.u32 2131351028, %v420
    %v427 = vor.u32 %v425, %v426
    %v428 = vshll.u32 2131351028, %v419
    %v429 = vshrl.u32 2102212464, %v420
    %v430 = vor.u32 %v428, %v429
    %v431 = vshll.u32 2102212464, %v419
    %v432 = vshrl.u32 920167782, %v420
    %v433 = vor.u32 %v431, %v432
    %v434 = vshll.u32 920167782, %v419
    %v435 = vshrl.u32 1326507024, %v420
    %v436 = vor.u32 %v434, %v435
    %vm437 = vcmp.lt.s32.totalorder %v418, 1
    %vm438 = vcmp.lt.s32.totalorder %v418, 2
    %vm439 = vcmp.lt.s32.totalorder %v418, 3
    %vm440 = vcmp.lt.s32.totalorder %v418, 4
    %v441 = vsel %vm437, %v421, %v424
    %v442 = vsel %vm440, %v430, 2102212464
    %v443 = vsel %vm439, %v427, %v442
    %v444 = vsel %vm438, %v441, %v443
    %v445 = vsel %vm437, %v424, %v427
    %v446 = vsel %vm440, %v433, 920167782
    %v447 = vsel %vm439, %v430, %v446
    %v448 = vsel %vm438, %v445, %v447
    %v449 = vsel %vm437, %v427, %v430
    %v450 = vsel %vm440, %v436, 1326507024
    %v451 = vsel %vm439, %v433, %v450
    %v452 = vsel %vm438, %v449, %v451
    %v453 = vshll.u32 %v413, 8
    %v454 = vmul.u32.u64.compose %v453, %v452
    %v455 = vextract.low.u32 %v454
    %v456 = vextract.high.u32 %v454
    %v457 = vmul.u32.u64.compose %v453, %v448
    %v458 = vextract.low.u32 %v457
    %v459 = vextract.high.u32 %v457
    %v460 = vmul.u32 %v453, %v444
    %v461 = vadd.s32 %v456, %v458
    %vm462 = vc.u32 %v456, %v458
    %v463 = vadd.s32 %v459, 1
    %v464 = vsel %vm462, %v463, %v459
    %v465 = vadd.s32 %v460, %v464
    %v466 = vadd.s32 %v465, 536870912
    %v467 = vshrl.u32 %v466, 30
    %v468 = vshll.u32 %v467, 30
    %v469 = vsub.s32 %v465, %v468
    %vm470 = vcmp.lt.s32.totalorder %v469, 0
    %v471 = vsub.s32 0, %v469
    %v472 = vsel %vm470, %v471, %v469
    %v473 = vclz %v472
    %v474 = vsub.s32 %v473, 2
    %vm475 = vcmp.gt.s32.totalorder 0, %v474
    %v476 = vsel %vm475, 0, %v474
    %v477 = vsub.s32 32, %v476
    %v478 = vshll.u32 %v469, %v476
    %v479 = vshrl.u32 %v461, %v477
    %v480 = vor.u32 %v478, %v479
    %v481 = vsub.s32 4294967266, %v476
    %v482 = vadd.s32 %v481, 127
    %v483 = vshll.u32 %v482, 23
    %v484 = vor.u32 4788187, %v483
    %v485 = vand.u32 2147483647, %v484
    %v487 = vcvt.s32.f32 %v480
    %v488 = vmul.f32 %v487, %v485
    %v489 = vxor.u32 %v488, 2147483648
    %v490 = vsel %vm407, %v489, %v488
    %v491 = vsub.s32 4, %v467
    %v492 = vsel %vm407, %v491, %v467
    %v493 = vsel %vm406, %v91, %v490
    %v494 = vsel %vm406, 0, %v492
    %v495 = vcosq.f32.pop %v493
    %v496 = vsinq.f32.pop %v493
    %vm497 = vweird.f32 %v91
    %v498 = vand.u32 %v494, 3
    %vm499 = vcmp.lt.s32.totalorder %v498, 2
    %vm500 = vcmp.eq.s32.totalorder %v498, 0
    %v501 = vxor.u32 %v496, 2147483648
    %v502 = vsel %vm500, %v495, %v501
    %vm503 = vcmp.eq.s32.totalorder %v498, 2
    %v504 = vxor.u32 %v495, 2147483648
    %v505 = vsel %vm503, %v504, %v496
    %v506 = vsel %vm499, %v502, %v505
    %v507 = vsel %vm497, nan, %v506
    %v508 = vand.u32 2147483647, %v92
    %vm509 = vcmp.le.f32.partialorder %v508, 0.7853982
    %vm510 = vcmp.lt.s32.totalorder %v92, 0
    %v511 = vand.u32 %v92, 2139095040
    %v512 = vshrl.u32 %v511, 23
    %v513 = vsub.s32 %v512, 127
    %v514 = vand.u32 2147483647, %v92
    %v515 = vand.u32 %v514, 8388607
    %v516 = vor.u32 %v515, 8388608
    %v517 = vsub.s32 0, %v516
    %v518 = vadd.s32 %v513, 1
    %vm519 = vcmp.gt.s32.totalorder %v518, 0
    %v520 = vsel %vm519, %v518, 0
    %v521 = vshrl.u32 %v520, 5
    %v522 = vand.u32 %v520, 31
    %v523 = vsub.s32 32, %v522
    %v524 = vshrl.u32 683565275, %v523
    %v525 = vshll.u32 683565275, %v522
    %v526 = vshrl.u32 2475754826, %v523
    %v527 = vor.u32 %v525, %v526
    %v528 = vshll.u32 2475754826, %v522
    %v529 = vshrl.u32 2131351028, %v523
    %v530 = vor.u32 %v528, %v529
    %v531 = vshll.u32 2131351028, %v522
    %v532 = vshrl.u32 2102212464, %v523
    %v533 = vor.u32 %v531, %v532
    %v534 = vshll.u32 2102212464, %v522
    %v535 = vshrl.u32 920167782, %v523
    %v536 = vor.u32 %v534, %v535
    %v537 = vshll.u32 920167782, %v522
    %v538 = vshrl.u32 1326507024, %v523
    %v539 = vor.u32 %v537, %v538
    %vm540 = vcmp.lt.s32.totalorder %v521, 1
    %vm541 = vcmp.lt.s32.totalorder %v521, 2
    %vm542 = vcmp.lt.s32.totalorder %v521, 3
    %vm543 = vcmp.lt.s32.totalorder %v521, 4
    %v544 = vsel %vm540, %v524, %v527
    %v545 = vsel %vm543, %v533, 2102212464
    %v546 = vsel %vm542, %v530, %v545
    %v547 = vsel %vm541, %v544, %v546
    %v548 = vsel %vm540, %v527, %v530
    %v549 = vsel %vm543, %v536, 920167782
    %v550 = vsel %vm542, %v533, %v549
    %v551 = vsel %vm541, %v548, %v550
    %v552 = vsel %vm540, %v530, %v533
    %v553 = vsel %vm543, %v539, 1326507024
    %v554 = vsel %vm542, %v536, %v553
    %v555 = vsel %vm541, %v552, %v554
    %v556 = vshll.u32 %v516, 8
    %v557 = vmul.u32.u64.compose %v556, %v555
    %v558 = vextract.low.u32 %v557
    %v559 = vextract.high.u32 %v557
    %v560 = vmul.u32.u64.compose %v556, %v551
    %v561 = vextract.low.u32 %v560
    %v562 = vextract.high.u32 %v560
    %v563 = vmul.u32 %v556, %v547
    %v564 = vadd.s32 %v559, %v561
    %vm565 = vc.u32 %v559, %v561
    %v566 = vadd.s32 %v562, 1
    %v567 = vsel %vm565, %v566, %v562
    %v568 = vadd.s32 %v563, %v567
    %v569 = vadd.s32 %v568, 536870912
    %v570 = vshrl.u32 %v569, 30
    %v571 = vshll.u32 %v570, 30
    %v572 = vsub.s32 %v568, %v571
    %vm573 = vcmp.lt.s32.totalorder %v572, 0
    %v574 = vsub.s32 0, %v572
    %v575 = vsel %vm573, %v574, %v572
    %v576 = vclz %v575
    %v577 = vsub.s32 %v576, 2
    %vm578 = vcmp.gt.s32.totalorder 0, %v577
    %v579 = vsel %vm578, 0, %v577
    %v580 = vsub.s32 32, %v579
    %v581 = vshll.u32 %v572, %v579
    %v582 = vshrl.u32 %v564, %v580
    %v583 = vor.u32 %v581, %v582
    %v584 = vsub.s32 4294967266, %v579
    %v585 = vadd.s32 %v584, 127
    %v586 = vshll.u32 %v585, 23
    %v587 = vor.u32 4788187, %v586
    %v588 = vand.u32 2147483647, %v587
    %v590 = vcvt.s32.f32 %v583
    %v591 = vmul.f32 %v590, %v588
    %v592 = vxor.u32 %v591, 2147483648
    %v593 = vsel %vm510, %v592, %v591
    %v594 = vsub.s32 4, %v570
    %v595 = vsel %vm510, %v594, %v570
    %v596 = vsel %vm509, %v92, %v593
    %v597 = vsel %vm509, 0, %v595
    %v598 = vcosq.f32.pop %v596
    %v599 = vsinq.f32.pop %v596
    %vm600 = vweird.f32 %v92
    %v601 = vand.u32 %v597, 3
    %vm602 = vcmp.lt.s32.totalorder %v601, 2
    %vm603 = vcmp.eq.s32.totalorder %v601, 0
    %v604 = vxor.u32 %v599, 2147483648
    %v605 = vsel %vm603, %v598, %v604
    %vm606 = vcmp.eq.s32.totalorder %v601, 2
    %v607 = vxor.u32 %v598, 2147483648
    %v608 = vsel %vm606, %v607, %v599
    %v609 = vsel %vm602, %v605, %v608
    %v610 = vsel %vm600, nan, %v609
    %v611 = vand.u32 2147483647, %v93
    %vm612 = vcmp.le.f32.partialorder %v611, 0.7853982
    %vm613 = vcmp.lt.s32.totalorder %v93, 0
    %v614 = vand.u32 %v93, 2139095040
    %v615 = vshrl.u32 %v614, 23
    %v616 = vsub.s32 %v615, 127
    %v617 = vand.u32 2147483647, %v93
    %v618 = vand.u32 %v617, 8388607
    %v619 = vor.u32 %v618, 8388608
    %v620 = vsub.s32 0, %v619
    %v621 = vadd.s32 %v616, 1
    %vm622 = vcmp.gt.s32.totalorder %v621, 0
    %v623 = vsel %vm622, %v621, 0
    %v624 = vshrl.u32 %v623, 5
    %v625 = vand.u32 %v623, 31
    %v626 = vsub.s32 32, %v625
    %v627 = vshrl.u32 683565275, %v626
    %v628 = vshll.u32 683565275, %v625
    %v629 = vshrl.u32 2475754826, %v626
    %v630 = vor.u32 %v628, %v629
    %v631 = vshll.u32 2475754826, %v625
    %v632 = vshrl.u32 2131351028, %v626
    %v633 = vor.u32 %v631, %v632
    %v634 = vshll.u32 2131351028, %v625
    %v635 = vshrl.u32 2102212464, %v626
    %v636 = vor.u32 %v634, %v635
    %v637 = vshll.u32 2102212464, %v625
    %v638 = vshrl.u32 920167782, %v626
    %v639 = vor.u32 %v637, %v638
    %v640 = vshll.u32 920167782, %v625
    %v641 = vshrl.u32 1326507024, %v626
    %v642 = vor.u32 %v640, %v641
    %vm643 = vcmp.lt.s32.totalorder %v624, 1
    %vm644 = vcmp.lt.s32.totalorder %v624, 2
    %vm645 = vcmp.lt.s32.totalorder %v624, 3
    %vm646 = vcmp.lt.s32.totalorder %v624, 4
    %v647 = vsel %vm643, %v627, %v630
    %v648 = vsel %vm646, %v636, 2102212464
    %v649 = vsel %vm645, %v633, %v648
    %v650 = vsel %vm644, %v647, %v649
    %v651 = vsel %vm643, %v630, %v633
    %v652 = vsel %vm646, %v639, 920167782
    %v653 = vsel %vm645, %v636, %v652
    %v654 = vsel %vm644, %v651, %v653
    %v655 = vsel %vm643, %v633, %v636
    %v656 = vsel %vm646, %v642, 1326507024
    %v657 = vsel %vm645, %v639, %v656
    %v658 = vsel %vm644, %v655, %v657
    %v659 = vshll.u32 %v619, 8
    %v660 = vmul.u32.u64.compose %v659, %v658
    %v661 = vextract.low.u32 %v660
    %v662 = vextract.high.u32 %v660
    %v663 = vmul.u32.u64.compose %v659, %v654
    %v664 = vextract.low.u32 %v663
    %v665 = vextract.high.u32 %v663
    %v666 = vmul.u32 %v659, %v650
    %v667 = vadd.s32 %v662, %v664
    %vm668 = vc.u32 %v662, %v664
    %v669 = vadd.s32 %v665, 1
    %v670 = vsel %vm668, %v669, %v665
    %v671 = vadd.s32 %v666, %v670
    %v672 = vadd.s32 %v671, 536870912
    %v673 = vshrl.u32 %v672, 30
    %v674 = vshll.u32 %v673, 30
    %v675 = vsub.s32 %v671, %v674
    %vm676 = vcmp.lt.s32.totalorder %v675, 0
    %v677 = vsub.s32 0, %v675
    %v678 = vsel %vm676, %v677, %v675
    %v679 = vclz %v678
    %v680 = vsub.s32 %v679, 2
    %vm681 = vcmp.gt.s32.totalorder 0, %v680
    %v682 = vsel %vm681, 0, %v680
    %v683 = vsub.s32 32, %v682
    %v684 = vshll.u32 %v675, %v682
    %v685 = vshrl.u32 %v667, %v683
    %v686 = vor.u32 %v684, %v685
    %v687 = vsub.s32 4294967266, %v682
    %v688 = vadd.s32 %v687, 127
    %v689 = vshll.u32 %v688, 23
    %v690 = vor.u32 4788187, %v689
    %v691 = vand.u32 2147483647, %v690
    %v693 = vcvt.s32.f32 %v686
    %v694 = vmul.f32 %v693, %v691
    %v695 = vxor.u32 %v694, 2147483648
    %v696 = vsel %vm613, %v695, %v694
    %v697 = vsub.s32 4, %v673
    %v698 = vsel %vm613, %v697, %v673
    %v699 = vsel %vm612, %v93, %v696
    %v700 = vsel %vm612, 0, %v698
    %v701 = vcosq.f32.pop %v699
    %v702 = vsinq.f32.pop %v699
    %vm703 = vweird.f32 %v93
    %v704 = vand.u32 %v700, 3
    %vm705 = vcmp.lt.s32.totalorder %v704, 2
    %vm706 = vcmp.eq.s32.totalorder %v704, 0
    %v707 = vxor.u32 %v702, 2147483648
    %v708 = vsel %vm706, %v701, %v707
    %vm709 = vcmp.eq.s32.totalorder %v704, 2
    %v710 = vxor.u32 %v701, 2147483648
    %v711 = vsel %vm709, %v710, %v702
    %v712 = vsel %vm705, %v708, %v711
    %v713 = vsel %vm703, nan, %v712
    %v714 = vand.u32 2147483647, %v88
    %vm715 = vcmp.le.f32.partialorder %v714, 0.7853982
    %vm716 = vcmp.lt.s32.totalorder %v88, 0
    %v717 = vand.u32 %v88, 2139095040
    %v718 = vshrl.u32 %v717, 23
    %v719 = vsub.s32 %v718, 127
    %v720 = vand.u32 2147483647, %v88
    %v721 = vand.u32 %v720, 8388607
    %v722 = vor.u32 %v721, 8388608
    %v723 = vsub.s32 0, %v722
    %v724 = vadd.s32 %v719, 1
    %vm725 = vcmp.gt.s32.totalorder %v724, 0
    %v726 = vsel %vm725, %v724, 0
    %v727 = vshrl.u32 %v726, 5
    %v728 = vand.u32 %v726, 31
    %v729 = vsub.s32 32, %v728
    %v730 = vshrl.u32 683565275, %v729
    %v731 = vshll.u32 683565275, %v728
    %v732 = vshrl.u32 2475754826, %v729
    %v733 = vor.u32 %v731, %v732
    %v734 = vshll.u32 2475754826, %v728
    %v735 = vshrl.u32 2131351028, %v729
    %v736 = vor.u32 %v734, %v735
    %v737 = vshll.u32 2131351028, %v728
    %v738 = vshrl.u32 2102212464, %v729
    %v739 = vor.u32 %v737, %v738
    %v740 = vshll.u32 2102212464, %v728
    %v741 = vshrl.u32 920167782, %v729
    %v742 = vor.u32 %v740, %v741
    %v743 = vshll.u32 920167782, %v728
    %v744 = vshrl.u32 1326507024, %v729
    %v745 = vor.u32 %v743, %v744
    %vm746 = vcmp.lt.s32.totalorder %v727, 1
    %vm747 = vcmp.lt.s32.totalorder %v727, 2
    %vm748 = vcmp.lt.s32.totalorder %v727, 3
    %vm749 = vcmp.lt.s32.totalorder %v727, 4
    %v750 = vsel %vm746, %v730, %v733
    %v751 = vsel %vm749, %v739, 2102212464
    %v752 = vsel %vm748, %v736, %v751
    %v753 = vsel %vm747, %v750, %v752
    %v754 = vsel %vm746, %v733, %v736
    %v755 = vsel %vm749, %v742, 920167782
    %v756 = vsel %vm748, %v739, %v755
    %v757 = vsel %vm747, %v754, %v756
    %v758 = vsel %vm746, %v736, %v739
    %v759 = vsel %vm749, %v745, 1326507024
    %v760 = vsel %vm748, %v742, %v759
    %v761 = vsel %vm747, %v758, %v760
    %v762 = vshll.u32 %v722, 8
    %v763 = vmul.u32.u64.compose %v762, %v761
    %v764 = vextract.low.u32 %v763
    %v765 = vextract.high.u32 %v763
    %v766 = vmul.u32.u64.compose %v762, %v757
    %v767 = vextract.low.u32 %v766
    %v768 = vextract.high.u32 %v766
    %v769 = vmul.u32 %v762, %v753
    %v770 = vadd.s32 %v765, %v767
    %vm771 = vc.u32 %v765, %v767
    %v772 = vadd.s32 %v768, 1
    %v773 = vsel %vm771, %v772, %v768
    %v774 = vadd.s32 %v769, %v773
    %v775 = vadd.s32 %v774, 536870912
    %v776 = vshrl.u32 %v775, 30
    %v777 = vshll.u32 %v776, 30
    %v778 = vsub.s32 %v774, %v777
    %vm779 = vcmp.lt.s32.totalorder %v778, 0
    %v780 = vsub.s32 0, %v778
    %v781 = vsel %vm779, %v780, %v778
    %v782 = vclz %v781
    %v783 = vsub.s32 %v782, 2
    %vm784 = vcmp.gt.s32.totalorder 0, %v783
    %v785 = vsel %vm784, 0, %v783
    %v786 = vsub.s32 32, %v785
    %v787 = vshll.u32 %v778, %v785
    %v788 = vshrl.u32 %v770, %v786
    %v789 = vor.u32 %v787, %v788
    %v790 = vsub.s32 4294967266, %v785
    %v791 = vadd.s32 %v790, 127
    %v792 = vshll.u32 %v791, 23
    %v793 = vor.u32 4788187, %v792
    %v794 = vand.u32 2147483647, %v793
    %v796 = vcvt.s32.f32 %v789
    %v797 = vmul.f32 %v796, %v794
    %v798 = vxor.u32 %v797, 2147483648
    %v799 = vsel %vm716, %v798, %v797
    %v800 = vsub.s32 4, %v776
    %v801 = vsel %vm716, %v800, %v776
    %v802 = vsel %vm715, %v88, %v799
    %v803 = vsel %vm715, 0, %v801
    %v804 = vcosq.f32.pop %v802
    %v805 = vsinq.f32.pop %v802
    %vm806 = vweird.f32 %v88
    %v807 = vadd.s32 %v803, 3
    %v808 = vand.u32 %v807, 3
    %vm809 = vcmp.lt.s32.totalorder %v808, 2
    %vm810 = vcmp.eq.s32.totalorder %v808, 0
    %v811 = vxor.u32 %v805, 2147483648
    %v812 = vsel %vm810, %v804, %v811
    %vm813 = vcmp.eq.s32.totalorder %v808, 2
    %v814 = vxor.u32 %v804, 2147483648
    %v815 = vsel %vm813, %v814, %v805
    %v816 = vsel %vm809, %v812, %v815
    %v817 = vsel %vm806, nan, %v816
    %v818 = vand.u32 2147483647, %v89
    %vm819 = vcmp.le.f32.partialorder %v818, 0.7853982
    %vm820 = vcmp.lt.s32.totalorder %v89, 0
    %v821 = vand.u32 %v89, 2139095040
    %v822 = vshrl.u32 %v821, 23
    %v823 = vsub.s32 %v822, 127
    %v824 = vand.u32 2147483647, %v89
    %v825 = vand.u32 %v824, 8388607
    %v826 = vor.u32 %v825, 8388608
    %v827 = vsub.s32 0, %v826
    %v828 = vadd.s32 %v823, 1
    %vm829 = vcmp.gt.s32.totalorder %v828, 0
    %v830 = vsel %vm829, %v828, 0
    %v831 = vshrl.u32 %v830, 5
    %v832 = vand.u32 %v830, 31
    %v833 = vsub.s32 32, %v832
    %v834 = vshrl.u32 683565275, %v833
    %v835 = vshll.u32 683565275, %v832
    %v836 = vshrl.u32 2475754826, %v833
    %v837 = vor.u32 %v835, %v836
    %v838 = vshll.u32 2475754826, %v832
    %v839 = vshrl.u32 2131351028, %v833
    %v840 = vor.u32 %v838, %v839
    %v841 = vshll.u32 2131351028, %v832
    %v842 = vshrl.u32 2102212464, %v833
    %v843 = vor.u32 %v841, %v842
    %v844 = vshll.u32 2102212464, %v832
    %v845 = vshrl.u32 920167782, %v833
    %v846 = vor.u32 %v844, %v845
    %v847 = vshll.u32 920167782, %v832
    %v848 = vshrl.u32 1326507024, %v833
    %v849 = vor.u32 %v847, %v848
    %vm850 = vcmp.lt.s32.totalorder %v831, 1
    %vm851 = vcmp.lt.s32.totalorder %v831, 2
    %vm852 = vcmp.lt.s32.totalorder %v831, 3
    %vm853 = vcmp.lt.s32.totalorder %v831, 4
    %v854 = vsel %vm850, %v834, %v837
    %v855 = vsel %vm853, %v843, 2102212464
    %v856 = vsel %vm852, %v840, %v855
    %v857 = vsel %vm851, %v854, %v856
    %v858 = vsel %vm850, %v837, %v840
    %v859 = vsel %vm853, %v846, 920167782
    %v860 = vsel %vm852, %v843, %v859
    %v861 = vsel %vm851, %v858, %v860
    %v862 = vsel %vm850, %v840, %v843
    %v863 = vsel %vm853, %v849, 1326507024
    %v864 = vsel %vm852, %v846, %v863
    %v865 = vsel %vm851, %v862, %v864
    %v866 = vshll.u32 %v826, 8
    %v867 = vmul.u32.u64.compose %v866, %v865
    %v868 = vextract.low.u32 %v867
    %v869 = vextract.high.u32 %v867
    %v870 = vmul.u32.u64.compose %v866, %v861
    %v871 = vextract.low.u32 %v870
    %v872 = vextract.high.u32 %v870
    %v873 = vmul.u32 %v866, %v857
    %v874 = vadd.s32 %v869, %v871
    %vm875 = vc.u32 %v869, %v871
    %v876 = vadd.s32 %v872, 1
    %v877 = vsel %vm875, %v876, %v872
    %v878 = vadd.s32 %v873, %v877
    %v879 = vadd.s32 %v878, 536870912
    %v880 = vshrl.u32 %v879, 30
    %v881 = vshll.u32 %v880, 30
    %v882 = vsub.s32 %v878, %v881
    %vm883 = vcmp.lt.s32.totalorder %v882, 0
    %v884 = vsub.s32 0, %v882
    %v885 = vsel %vm883, %v884, %v882
    %v886 = vclz %v885
    %v887 = vsub.s32 %v886, 2
    %vm888 = vcmp.gt.s32.totalorder 0, %v887
    %v889 = vsel %vm888, 0, %v887
    %v890 = vsub.s32 32, %v889
    %v891 = vshll.u32 %v882, %v889
    %v892 = vshrl.u32 %v874, %v890
    %v893 = vor.u32 %v891, %v892
    %v894 = vsub.s32 4294967266, %v889
    %v895 = vadd.s32 %v894, 127
    %v896 = vshll.u32 %v895, 23
    %v897 = vor.u32 4788187, %v896
    %v898 = vand.u32 2147483647, %v897
    %v900 = vcvt.s32.f32 %v893
    %v901 = vmul.f32 %v900, %v898
    %v902 = vxor.u32 %v901, 2147483648
    %v903 = vsel %vm820, %v902, %v901
    %v904 = vsub.s32 4, %v880
    %v905 = vsel %vm820, %v904, %v880
    %v906 = vsel %vm819, %v89, %v903
    %v907 = vsel %vm819, 0, %v905
    %v908 = vcosq.f32.pop %v906
    %v909 = vsinq.f32.pop %v906
    %vm910 = vweird.f32 %v89
    %v911 = vadd.s32 %v907, 3
    %v912 = vand.u32 %v911, 3
    %vm913 = vcmp.lt.s32.totalorder %v912, 2
    %vm914 = vcmp.eq.s32.totalorder %v912, 0
    %v915 = vxor.u32 %v909, 2147483648
    %v916 = vsel %vm914, %v908, %v915
    %vm917 = vcmp.eq.s32.totalorder %v912, 2
    %v918 = vxor.u32 %v908, 2147483648
    %v919 = vsel %vm917, %v918, %v909
    %v920 = vsel %vm913, %v916, %v919
    %v921 = vsel %vm910, nan, %v920
    %v922 = vand.u32 2147483647, %v90
    %vm923 = vcmp.le.f32.partialorder %v922, 0.7853982
    %vm924 = vcmp.lt.s32.totalorder %v90, 0
    %v925 = vand.u32 %v90, 2139095040
    %v926 = vshrl.u32 %v925, 23
    %v927 = vsub.s32 %v926, 127
    %v928 = vand.u32 2147483647, %v90
    %v929 = vand.u32 %v928, 8388607
    %v930 = vor.u32 %v929, 8388608
    %v931 = vsub.s32 0, %v930
    %v932 = vadd.s32 %v927, 1
    %vm933 = vcmp.gt.s32.totalorder %v932, 0
    %v934 = vsel %vm933, %v932, 0
    %v935 = vshrl.u32 %v934, 5
    %v936 = vand.u32 %v934, 31
    %v937 = vsub.s32 32, %v936
    %v938 = vshrl.u32 683565275, %v937
    %v939 = vshll.u32 683565275, %v936
    %v940 = vshrl.u32 2475754826, %v937
    %v941 = vor.u32 %v939, %v940
    %v942 = vshll.u32 2475754826, %v936
    %v943 = vshrl.u32 2131351028, %v937
    %v944 = vor.u32 %v942, %v943
    %v945 = vshll.u32 2131351028, %v936
    %v946 = vshrl.u32 2102212464, %v937
    %v947 = vor.u32 %v945, %v946
    %v948 = vshll.u32 2102212464, %v936
    %v949 = vshrl.u32 920167782, %v937
    %v950 = vor.u32 %v948, %v949
    %v951 = vshll.u32 920167782, %v936
    %v952 = vshrl.u32 1326507024, %v937
    %v953 = vor.u32 %v951, %v952
    %vm954 = vcmp.lt.s32.totalorder %v935, 1
    %vm955 = vcmp.lt.s32.totalorder %v935, 2
    %vm956 = vcmp.lt.s32.totalorder %v935, 3
    %vm957 = vcmp.lt.s32.totalorder %v935, 4
    %v958 = vsel %vm954, %v938, %v941
    %v959 = vsel %vm957, %v947, 2102212464
    %v960 = vsel %vm956, %v944, %v959
    %v961 = vsel %vm955, %v958, %v960
    %v962 = vsel %vm954, %v941, %v944
    %v963 = vsel %vm957, %v950, 920167782
    %v964 = vsel %vm956, %v947, %v963
    %v965 = vsel %vm955, %v962, %v964
    %v966 = vsel %vm954, %v944, %v947
    %v967 = vsel %vm957, %v953, 1326507024
    %v968 = vsel %vm956, %v950, %v967
    %v969 = vsel %vm955, %v966, %v968
    %v970 = vshll.u32 %v930, 8
    %v971 = vmul.u32.u64.compose %v970, %v969
    %v972 = vextract.low.u32 %v971
    %v973 = vextract.high.u32 %v971
    %v974 = vmul.u32.u64.compose %v970, %v965
    %v975 = vextract.low.u32 %v974
    %v976 = vextract.high.u32 %v974
    %v977 = vmul.u32 %v970, %v961
    %v978 = vadd.s32 %v973, %v975
    %vm979 = vc.u32 %v973, %v975
    %v980 = vadd.s32 %v976, 1
    %v981 = vsel %vm979, %v980, %v976
    %v982 = vadd.s32 %v977, %v981
    %v983 = vadd.s32 %v982, 536870912
    %v984 = vshrl.u32 %v983, 30
    %v985 = vshll.u32 %v984, 30
    %v986 = vsub.s32 %v982, %v985
    %vm987 = vcmp.lt.s32.totalorder %v986, 0
    %v988 = vsub.s32 0, %v986
    %v989 = vsel %vm987, %v988, %v986
    %v990 = vclz %v989
    %v991 = vsub.s32 %v990, 2
    %vm992 = vcmp.gt.s32.totalorder 0, %v991
    %v993 = vsel %vm992, 0, %v991
    %v994 = vsub.s32 32, %v993
    %v995 = vshll.u32 %v986, %v993
    %v996 = vshrl.u32 %v978, %v994
    %v997 = vor.u32 %v995, %v996
    %v998 = vsub.s32 4294967266, %v993
    %v999 = vadd.s32 %v998, 127
    %v1000 = vshll.u32 %v999, 23
    %v1001 = vor.u32 4788187, %v1000
    %v1002 = vand.u32 2147483647, %v1001
    %v1004 = vcvt.s32.f32 %v997
    %v1005 = vmul.f32 %v1004, %v1002
    %v1006 = vxor.u32 %v1005, 2147483648
    %v1007 = vsel %vm924, %v1006, %v1005
    %v1008 = vsub.s32 4, %v984
    %v1009 = vsel %vm924, %v1008, %v984
    %v1010 = vsel %vm923, %v90, %v1007
    %v1011 = vsel %vm923, 0, %v1009
    %v1012 = vcosq.f32.pop %v1010
    %v1013 = vsinq.f32.pop %v1010
    %vm1014 = vweird.f32 %v90
    %v1015 = vadd.s32 %v1011, 3
    %v1016 = vand.u32 %v1015, 3
    %vm1017 = vcmp.lt.s32.totalorder %v1016, 2
    %vm1018 = vcmp.eq.s32.totalorder %v1016, 0
    %v1019 = vxor.u32 %v1013, 2147483648
    %v1020 = vsel %vm1018, %v1012, %v1019
    %vm1021 = vcmp.eq.s32.totalorder %v1016, 2
    %v1022 = vxor.u32 %v1012, 2147483648
    %v1023 = vsel %vm1021, %v1022, %v1013
    %v1024 = vsel %vm1017, %v1020, %v1023
    %v1025 = vsel %vm1014, nan, %v1024
    %v1026 = vand.u32 2147483647, %v91
    %vm1027 = vcmp.le.f32.partialorder %v1026, 0.7853982
    %vm1028 = vcmp.lt.s32.totalorder %v91, 0
    %v1029 = vand.u32 %v91, 2139095040
    %v1030 = vshrl.u32 %v1029, 23
    %v1031 = vsub.s32 %v1030, 127
    %v1032 = vand.u32 2147483647, %v91
    %v1033 = vand.u32 %v1032, 8388607
    %v1034 = vor.u32 %v1033, 8388608
    %v1035 = vsub.s32 0, %v1034
    %v1036 = vadd.s32 %v1031, 1
    %vm1037 = vcmp.gt.s32.totalorder %v1036, 0
    %v1038 = vsel %vm1037, %v1036, 0
    %v1039 = vshrl.u32 %v1038, 5
    %v1040 = vand.u32 %v1038, 31
    %v1041 = vsub.s32 32, %v1040
    %v1042 = vshrl.u32 683565275, %v1041
    %v1043 = vshll.u32 683565275, %v1040
    %v1044 = vshrl.u32 2475754826, %v1041
    %v1045 = vor.u32 %v1043, %v1044
    %v1046 = vshll.u32 2475754826, %v1040
    %v1047 = vshrl.u32 2131351028, %v1041
    %v1048 = vor.u32 %v1046, %v1047
    %v1049 = vshll.u32 2131351028, %v1040
    %v1050 = vshrl.u32 2102212464, %v1041
    %v1051 = vor.u32 %v1049, %v1050
    %v1052 = vshll.u32 2102212464, %v1040
    %v1053 = vshrl.u32 920167782, %v1041
    %v1054 = vor.u32 %v1052, %v1053
    %v1055 = vshll.u32 920167782, %v1040
    %v1056 = vshrl.u32 1326507024, %v1041
    %v1057 = vor.u32 %v1055, %v1056
    %vm1058 = vcmp.lt.s32.totalorder %v1039, 1
    %vm1059 = vcmp.lt.s32.totalorder %v1039, 2
    %vm1060 = vcmp.lt.s32.totalorder %v1039, 3
    %vm1061 = vcmp.lt.s32.totalorder %v1039, 4
    %v1062 = vsel %vm1058, %v1042, %v1045
    %v1063 = vsel %vm1061, %v1051, 2102212464
    %v1064 = vsel %vm1060, %v1048, %v1063
    %v1065 = vsel %vm1059, %v1062, %v1064
    %v1066 = vsel %vm1058, %v1045, %v1048
    %v1067 = vsel %vm1061, %v1054, 920167782
    %v1068 = vsel %vm1060, %v1051, %v1067
    %v1069 = vsel %vm1059, %v1066, %v1068
    %v1070 = vsel %vm1058, %v1048, %v1051
    %v1071 = vsel %vm1061, %v1057, 1326507024
    %v1072 = vsel %vm1060, %v1054, %v1071
    %v1073 = vsel %vm1059, %v1070, %v1072
    %v1074 = vshll.u32 %v1034, 8
    %v1075 = vmul.u32.u64.compose %v1074, %v1073
    %v1076 = vextract.low.u32 %v1075
    %v1077 = vextract.high.u32 %v1075
    %v1078 = vmul.u32.u64.compose %v1074, %v1069
    %v1079 = vextract.low.u32 %v1078
    %v1080 = vextract.high.u32 %v1078
    %v1081 = vmul.u32 %v1074, %v1065
    %v1082 = vadd.s32 %v1077, %v1079
    %vm1083 = vc.u32 %v1077, %v1079
    %v1084 = vadd.s32 %v1080, 1
    %v1085 = vsel %vm1083, %v1084, %v1080
    %v1086 = vadd.s32 %v1081, %v1085
    %v1087 = vadd.s32 %v1086, 536870912
    %v1088 = vshrl.u32 %v1087, 30
    %v1089 = vshll.u32 %v1088, 30
    %v1090 = vsub.s32 %v1086, %v1089
    %vm1091 = vcmp.lt.s32.totalorder %v1090, 0
    %v1092 = vsub.s32 0, %v1090
    %v1093 = vsel %vm1091, %v1092, %v1090
    %v1094 = vclz %v1093
    %v1095 = vsub.s32 %v1094, 2
    %vm1096 = vcmp.gt.s32.totalorder 0, %v1095
    %v1097 = vsel %vm1096, 0, %v1095
    %v1098 = vsub.s32 32, %v1097
    %v1099 = vshll.u32 %v1090, %v1097
    %v1100 = vshrl.u32 %v1082, %v1098
    %v1101 = vor.u32 %v1099, %v1100
    %v1102 = vsub.s32 4294967266, %v1097
    %v1103 = vadd.s32 %v1102, 127
    %v1104 = vshll.u32 %v1103, 23
    %v1105 = vor.u32 4788187, %v1104
    %v1106 = vand.u32 2147483647, %v1105
    %v1108 = vcvt.s32.f32 %v1101
    %v1109 = vmul.f32 %v1108, %v1106
    %v1110 = vxor.u32 %v1109, 2147483648
    %v1111 = vsel %vm1028, %v1110, %v1109
    %v1112 = vsub.s32 4, %v1088
    %v1113 = vsel %vm1028, %v1112, %v1088
    %v1114 = vsel %vm1027, %v91, %v1111
    %v1115 = vsel %vm1027, 0, %v1113
    %v1116 = vcosq.f32.pop %v1114
    %v1117 = vsinq.f32.pop %v1114
    %vm1118 = vweird.f32 %v91
    %v1119 = vadd.s32 %v1115, 3
    %v1120 = vand.u32 %v1119, 3
    %vm1121 = vcmp.lt.s32.totalorder %v1120, 2
    %vm1122 = vcmp.eq.s32.totalorder %v1120, 0
    %v1123 = vxor.u32 %v1117, 2147483648
    %v1124 = vsel %vm1122, %v1116, %v1123
    %vm1125 = vcmp.eq.s32.totalorder %v1120, 2
    %v1126 = vxor.u32 %v1116, 2147483648
    %v1127 = vsel %vm1125, %v1126, %v1117
    %v1128 = vsel %vm1121, %v1124, %v1127
    %v1129 = vsel %vm1118, nan, %v1128
    %v1130 = vand.u32 2147483647, %v92
    %vm1131 = vcmp.le.f32.partialorder %v1130, 0.7853982
    %vm1132 = vcmp.lt.s32.totalorder %v92, 0
    %v1133 = vand.u32 %v92, 2139095040
    %v1134 = vshrl.u32 %v1133, 23
    %v1135 = vsub.s32 %v1134, 127
    %v1136 = vand.u32 2147483647, %v92
    %v1137 = vand.u32 %v1136, 8388607
    %v1138 = vor.u32 %v1137, 8388608
    %v1139 = vsub.s32 0, %v1138
    %v1140 = vadd.s32 %v1135, 1
    %vm1141 = vcmp.gt.s32.totalorder %v1140, 0
    %v1142 = vsel %vm1141, %v1140, 0
    %v1143 = vshrl.u32 %v1142, 5
    %v1144 = vand.u32 %v1142, 31
    %v1145 = vsub.s32 32, %v1144
    %v1146 = vshrl.u32 683565275, %v1145
    %v1147 = vshll.u32 683565275, %v1144
    %v1148 = vshrl.u32 2475754826, %v1145
    %v1149 = vor.u32 %v1147, %v1148
    %v1150 = vshll.u32 2475754826, %v1144
    %v1151 = vshrl.u32 2131351028, %v1145
    %v1152 = vor.u32 %v1150, %v1151
    %v1153 = vshll.u32 2131351028, %v1144
    %v1154 = vshrl.u32 2102212464, %v1145
    %v1155 = vor.u32 %v1153, %v1154
    %v1156 = vshll.u32 2102212464, %v1144
    %v1157 = vshrl.u32 920167782, %v1145
    %v1158 = vor.u32 %v1156, %v1157
    %v1159 = vshll.u32 920167782, %v1144
    %v1160 = vshrl.u32 1326507024, %v1145
    %v1161 = vor.u32 %v1159, %v1160
    %vm1162 = vcmp.lt.s32.totalorder %v1143, 1
    %vm1163 = vcmp.lt.s32.totalorder %v1143, 2
    %vm1164 = vcmp.lt.s32.totalorder %v1143, 3
    %vm1165 = vcmp.lt.s32.totalorder %v1143, 4
    %v1166 = vsel %vm1162, %v1146, %v1149
    %v1167 = vsel %vm1165, %v1155, 2102212464
    %v1168 = vsel %vm1164, %v1152, %v1167
    %v1169 = vsel %vm1163, %v1166, %v1168
    %v1170 = vsel %vm1162, %v1149, %v1152
    %v1171 = vsel %vm1165, %v1158, 920167782
    %v1172 = vsel %vm1164, %v1155, %v1171
    %v1173 = vsel %vm1163, %v1170, %v1172
    %v1174 = vsel %vm1162, %v1152, %v1155
    %v1175 = vsel %vm1165, %v1161, 1326507024
    %v1176 = vsel %vm1164, %v1158, %v1175
    %v1177 = vsel %vm1163, %v1174, %v1176
    %v1178 = vshll.u32 %v1138, 8
    %v1179 = vmul.u32.u64.compose %v1178, %v1177
    %v1180 = vextract.low.u32 %v1179
    %v1181 = vextract.high.u32 %v1179
    %v1182 = vmul.u32.u64.compose %v1178, %v1173
    %v1183 = vextract.low.u32 %v1182
    %v1184 = vextract.high.u32 %v1182
    %v1185 = vmul.u32 %v1178, %v1169
    %v1186 = vadd.s32 %v1181, %v1183
    %vm1187 = vc.u32 %v1181, %v1183
    %v1188 = vadd.s32 %v1184, 1
    %v1189 = vsel %vm1187, %v1188, %v1184
    %v1190 = vadd.s32 %v1185, %v1189
    %v1191 = vadd.s32 %v1190, 536870912
    %v1192 = vshrl.u32 %v1191, 30
    %v1193 = vshll.u32 %v1192, 30
    %v1194 = vsub.s32 %v1190, %v1193
    %vm1195 = vcmp.lt.s32.totalorder %v1194, 0
    %v1196 = vsub.s32 0, %v1194
    %v1197 = vsel %vm1195, %v1196, %v1194
    %v1198 = vclz %v1197
    %v1199 = vsub.s32 %v1198, 2
    %vm1200 = vcmp.gt.s32.totalorder 0, %v1199
    %v1201 = vsel %vm1200, 0, %v1199
    %v1202 = vsub.s32 32, %v1201
    %v1203 = vshll.u32 %v1194, %v1201
    %v1204 = vshrl.u32 %v1186, %v1202
    %v1205 = vor.u32 %v1203, %v1204
    %v1206 = vsub.s32 4294967266, %v1201
    %v1207 = vadd.s32 %v1206, 127
    %v1208 = vshll.u32 %v1207, 23
    %v1209 = vor.u32 4788187, %v1208
    %v1210 = vand.u32 2147483647, %v1209
    %v1212 = vcvt.s32.f32 %v1205
    %v1213 = vmul.f32 %v1212, %v1210
    %v1214 = vxor.u32 %v1213, 2147483648
    %v1215 = vsel %vm1132, %v1214, %v1213
    %v1216 = vsub.s32 4, %v1192
    %v1217 = vsel %vm1132, %v1216, %v1192
    %v1218 = vsel %vm1131, %v92, %v1215
    %v1219 = vsel %vm1131, 0, %v1217
    %v1220 = vcosq.f32.pop %v1218
    %v1221 = vsinq.f32.pop %v1218
    %vm1222 = vweird.f32 %v92
    %v1223 = vadd.s32 %v1219, 3
    %v1224 = vand.u32 %v1223, 3
    %vm1225 = vcmp.lt.s32.totalorder %v1224, 2
    %vm1226 = vcmp.eq.s32.totalorder %v1224, 0
    %v1227 = vxor.u32 %v1221, 2147483648
    %v1228 = vsel %vm1226, %v1220, %v1227
    %vm1229 = vcmp.eq.s32.totalorder %v1224, 2
    %v1230 = vxor.u32 %v1220, 2147483648
    %v1231 = vsel %vm1229, %v1230, %v1221
    %v1232 = vsel %vm1225, %v1228, %v1231
    %v1233 = vsel %vm1222, nan, %v1232
    %v1234 = vand.u32 2147483647, %v93
    %vm1235 = vcmp.le.f32.partialorder %v1234, 0.7853982
    %vm1236 = vcmp.lt.s32.totalorder %v93, 0
    %v1237 = vand.u32 %v93, 2139095040
    %v1238 = vshrl.u32 %v1237, 23
    %v1239 = vsub.s32 %v1238, 127
    %v1240 = vand.u32 2147483647, %v93
    %v1241 = vand.u32 %v1240, 8388607
    %v1242 = vor.u32 %v1241, 8388608
    %v1243 = vsub.s32 0, %v1242
    %v1244 = vadd.s32 %v1239, 1
    %vm1245 = vcmp.gt.s32.totalorder %v1244, 0
    %v1246 = vsel %vm1245, %v1244, 0
    %v1247 = vshrl.u32 %v1246, 5
    %v1248 = vand.u32 %v1246, 31
    %v1249 = vsub.s32 32, %v1248
    %v1250 = vshrl.u32 683565275, %v1249
    %v1251 = vshll.u32 683565275, %v1248
    %v1252 = vshrl.u32 2475754826, %v1249
    %v1253 = vor.u32 %v1251, %v1252
    %v1254 = vshll.u32 2475754826, %v1248
    %v1255 = vshrl.u32 2131351028, %v1249
    %v1256 = vor.u32 %v1254, %v1255
    %v1257 = vshll.u32 2131351028, %v1248
    %v1258 = vshrl.u32 2102212464, %v1249
    %v1259 = vor.u32 %v1257, %v1258
    %v1260 = vshll.u32 2102212464, %v1248
    %v1261 = vshrl.u32 920167782, %v1249
    %v1262 = vor.u32 %v1260, %v1261
    %v1263 = vshll.u32 920167782, %v1248
    %v1264 = vshrl.u32 1326507024, %v1249
    %v1265 = vor.u32 %v1263, %v1264
    %vm1266 = vcmp.lt.s32.totalorder %v1247, 1
    %vm1267 = vcmp.lt.s32.totalorder %v1247, 2
    %vm1268 = vcmp.lt.s32.totalorder %v1247, 3
    %vm1269 = vcmp.lt.s32.totalorder %v1247, 4
    %v1270 = vsel %vm1266, %v1250, %v1253
    %v1271 = vsel %vm1269, %v1259, 2102212464
    %v1272 = vsel %vm1268, %v1256, %v1271
    %v1273 = vsel %vm1267, %v1270, %v1272
    %v1274 = vsel %vm1266, %v1253, %v1256
    %v1275 = vsel %vm1269, %v1262, 920167782
    %v1276 = vsel %vm1268, %v1259, %v1275
    %v1277 = vsel %vm1267, %v1274, %v1276
    %v1278 = vsel %vm1266, %v1256, %v1259
    %v1279 = vsel %vm1269, %v1265, 1326507024
    %v1280 = vsel %vm1268, %v1262, %v1279
    %v1281 = vsel %vm1267, %v1278, %v1280
    %v1282 = vshll.u32 %v1242, 8
    %v1283 = vmul.u32.u64.compose %v1282, %v1281
    %v1284 = vextract.low.u32 %v1283
    %v1285 = vextract.high.u32 %v1283
    %v1286 = vmul.u32.u64.compose %v1282, %v1277
    %v1287 = vextract.low.u32 %v1286
    %v1288 = vextract.high.u32 %v1286
    %v1289 = vmul.u32 %v1282, %v1273
    %v1290 = vadd.s32 %v1285, %v1287
    %vm1291 = vc.u32 %v1285, %v1287
    %v1292 = vadd.s32 %v1288, 1
    %v1293 = vsel %vm1291, %v1292, %v1288
    %v1294 = vadd.s32 %v1289, %v1293
    %v1295 = vadd.s32 %v1294, 536870912
    %v1296 = vshrl.u32 %v1295, 30
    %v1297 = vshll.u32 %v1296, 30
    %v1298 = vsub.s32 %v1294, %v1297
    %vm1299 = vcmp.lt.s32.totalorder %v1298, 0
    %v1300 = vsub.s32 0, %v1298
    %v1301 = vsel %vm1299, %v1300, %v1298
    %v1302 = vclz %v1301
    %v1303 = vsub.s32 %v1302, 2
    %vm1304 = vcmp.gt.s32.totalorder 0, %v1303
    %v1305 = vsel %vm1304, 0, %v1303
    %v1306 = vsub.s32 32, %v1305
    %v1307 = vshll.u32 %v1298, %v1305
    %v1308 = vshrl.u32 %v1290, %v1306
    %v1309 = vor.u32 %v1307, %v1308
    %v1310 = vsub.s32 4294967266, %v1305
    %v1311 = vadd.s32 %v1310, 127
    %v1312 = vshll.u32 %v1311, 23
    %v1313 = vor.u32 4788187, %v1312
    %v1314 = vand.u32 2147483647, %v1313
    %v1316 = vcvt.s32.f32 %v1309
    %v1317 = vmul.f32 %v1316, %v1314
    %v1318 = vxor.u32 %v1317, 2147483648
    %v1319 = vsel %vm1236, %v1318, %v1317
    %v1320 = vsub.s32 4, %v1296
    %v1321 = vsel %vm1236, %v1320, %v1296
    %v1322 = vsel %vm1235, %v93, %v1319
    %v1323 = vsel %vm1235, 0, %v1321
    %v1324 = vcosq.f32.pop %v1322
    %v1325 = vsinq.f32.pop %v1322
    %vm1326 = vweird.f32 %v93
    %v1327 = vadd.s32 %v1323, 3
    %v1328 = vand.u32 %v1327, 3
    %vm1329 = vcmp.lt.s32.totalorder %v1328, 2
    %vm1330 = vcmp.eq.s32.totalorder %v1328, 0
    %v1331 = vxor.u32 %v1325, 2147483648
    %v1332 = vsel %vm1330, %v1324, %v1331
    %vm1333 = vcmp.eq.s32.totalorder %v1328, 2
    %v1334 = vxor.u32 %v1324, 2147483648
    %v1335 = vsel %vm1333, %v1334, %v1325
    %v1336 = vsel %vm1329, %v1332, %v1335
    %v1337 = vsel %vm1326, nan, %v1336
    %v1338 = vsel %vm94, 1, 0
    %v1339 = vsel %vm95, 1, 0
    %vm1340 = vcmp.eq.s32.totalorder %v1338, 1
    %vm1341 = vcmp.eq.s32.totalorder %v1339, 1
    %v1342 = vsel %vm1340, %v198, %v817
    %v1343 = vsel %vm1340, %v301, %v921
    %v1344 = vsel %vm1340, %v404, %v1025
    %v1345 = vsel %vm1341, %v507, %v1129
    %v1346 = vsel %vm1341, %v610, %v1233
    %v1347 = vsel %vm1341, %v713, %v1337
    %vm1348 = vcmp.eq.s32.totalorder %v30, 0
    %vm1349 = vcmp.eq.s32.totalorder %v31, 0
    %vm1350 = vcmp.eq.s32.totalorder %v30, 1
    %vm1351 = vcmp.eq.s32.totalorder %v31, 1
    %v1352 = vsel %vm1350, 1, 0
    %v1353 = vsel %vm1351, 1, 0
    %vm1354 = vcmp.eq.s32.totalorder %v1352, 1
    %vm1355 = vcmp.eq.s32.totalorder %v1353, 1
    %v1356 = vsel %vm1354, 1.0, %v1342
    %v1357 = vsel %vm1354, 1.0, %v1343
    %v1358 = vsel %vm1354, 1.0, %v1344
    %v1359 = vsel %vm1355, 1.0, %v1345
    %v1360 = vsel %vm1355, 1.0, %v1346
    %v1361 = vsel %vm1355, 1.0, %v1347
    %v1362 = vsel %vm1348, 1, 0
    %v1363 = vsel %vm1349, 1, 0
    %vm1364 = vcmp.eq.s32.totalorder %v1362, 1
    %vm1365 = vcmp.eq.s32.totalorder %v1363, 1
    %v1367 = vlaneseq
    %v1368 = vshrl.u32 %v1367, 7
    %v1369 = vsub.s32 0, %v1368
    %v1370 = vrot.slane %v26, %v1369
    %v1371 = vlaneseq
    %v1372 = vshrl.u32 %v1371, 7
    %v1373 = vsub.s32 1, %v1372
    %v1374 = vrot.slane %v26, %v1373
    %v1375 = vlaneseq
    %v1376 = vshrl.u32 %v1375, 7
    %v1377 = vsub.s32 2, %v1376
    %v1378 = vrot.slane %v26, %v1377
    %v1382 = vsel %vm1364, %v1370, %v1356
    %v1383 = vsel %vm1364, %v1374, %v1357
    %v1384 = vsel %vm1364, %v1378, %v1358
    %v1385 = vsel %vm1365, %v1370, %v1359
    %v1386 = vsel %vm1365, %v1374, %v1360
    %v1387 = vsel %vm1365, %v1378, %v1361
    %v1388 = vld [vmem:[%s1] sm:$0xff]
    %v1389 = vld [vmem:[%s1 + $0x8] sm:$0xff]
    %v1390 = vld [vmem:[%s1 + $0x10] sm:$0xff]
    %v1391 = vld [vmem:[%s1 + $0x18] sm:$0xff]
    %v1392 = vld [vmem:[%s1 + $0x20] sm:$0xff]
    %v1393 = vld [vmem:[%s1 + $0x28] sm:$0xff]
    %v1394 = vld [vmem:[%s1 + $0x30] sm:$0xff]
    %v1395 = vld [vmem:[%s1 + $0x38] sm:$0xff]
    %v1396 = vld [vmem:[%s1 + $0x40] sm:$0xff]
    %v1397 = vld [vmem:[%s1 + $0x48] sm:$0xff]
    %v1398 = vld [vmem:[%s1 + $0x50] sm:$0xff]
    %v1399 = vld [vmem:[%s1 + $0x58] sm:$0xff]
    %v1400 = vld [vmem:[%s1 + $0x60] sm:$0xff]
    %v1401 = vld [vmem:[%s1 + $0x68] sm:$0xff]
    %v1402 = vld [vmem:[%s1 + $0x70] sm:$0xff]
    %v1403 = vld [vmem:[%s1 + $0x78] sm:$0xff]
    %v1404 = vld [vmem:[%s1 + $0x80] sm:$0xff]
    %v1405 = vld [vmem:[%s1 + $0x88] sm:$0xff]
    %v1406 = vld [vmem:[%s1 + $0x90] sm:$0xff]
    %v1407 = vld [vmem:[%s1 + $0x98] sm:$0xff]
    %v1408 = vld [vmem:[%s1 + $0xa0] sm:$0xff]
    %vm1409 = vcmask 97280
    %v1411 = vsel %vm1409, %v1388, 0
    %v1414 = vsel %vm1409, %v1389, 0
    %v1417 = vsel %vm1409, %v1390, 0
    %v1420 = vsel %vm1409, %v1391, 0
    %v1423 = vsel %vm1409, %v1392, 0
    %v1426 = vsel %vm1409, %v1393, 0
    %v1429 = vsel %vm1409, %v1394, 0
    %v1432 = vsel %vm1409, %v1395, 0
    %v1435 = vsel %vm1409, %v1396, 0
    %v1438 = vsel %vm1409, %v1397, 0
    %v1441 = vsel %vm1409, %v1398, 0
    %v1444 = vsel %vm1409, %v1399, 0
    %v1447 = vsel %vm1409, %v1400, 0
    %v1450 = vsel %vm1409, %v1401, 0
    %v1453 = vsel %vm1409, %v1402, 0
    %v1456 = vsel %vm1409, %v1403, 0
    %v1459 = vsel %vm1409, %v1404, 0
    %v1462 = vsel %vm1409, %v1405, 0
    %v1465 = vsel %vm1409, %v1406, 0
    %v1468 = vsel %vm1409, %v1407, 0
    %v1471 = vsel %vm1409, %v1408, 0
    %vm1473 = vcmask 1043456
    %v1475 = vsel %vm1473, %v1385, 0
    %v1478 = vsel %vm1473, %v1386, 0
    %v1481 = vsel %vm1473, %v1387, 0
    %1483 = vmatprep.subr.mxu0 %v1383
    %1484 = vmatpush1.msra.mxu0 %v1382
    %1485 = vmatprep.subr.mxu0 %v1478
    %1486 = vmatpush1.msra.mxu0 %v1475
    %1487 = vmatprep.subr.mxu0 0.0
    %1488 = vmatpush1.msra.mxu0 0.0
    %1489 = vmatprep.subr.mxu0 0.0
    %1490 = vmatpush1.msra.mxu0 0.0
    %1491 = vmatprep.subr.mxu0 0.0
    %1492 = vmatpush1.msra.mxu0 0.0
    %1493 = vmatprep.subr.mxu0 0.0
    %1494 = vmatpush1.msra.mxu0 0.0
    %1495 = vmatprep.subr.mxu0 0.0
    %1496 = vmatpush1.msra.mxu0 0.0
    %1497 = vmatprep.subr.mxu0 0.0
    %1498 = vmatpush1.msra.mxu0 0.0
    %1499 = vmatprep.subr.mxu0 0.0
    %1500 = vmatpush1.msra.mxu0 0.0
    %1501 = vmatprep.subr.mxu0 0.0
    %1502 = vmatpush1.msra.mxu0 0.0
    %1503 = vmatprep.subr.mxu0 0.0
    %1504 = vmatpush1.msra.mxu0 0.0
    %1505 = vmatprep.subr.mxu0 0.0
    %1506 = vmatpush1.msra.mxu0 0.0
    %1507 = vmatprep.subr.mxu0 0.0
    %1508 = vmatpush1.msra.mxu0 0.0
    %1509 = vmatprep.subr.mxu0 0.0
    %1510 = vmatpush1.msra.mxu0 0.0
    %1511 = vmatprep.subr.mxu0 0.0
    %1512 = vmatpush1.msra.mxu0 0.0
    %1513 = vmatprep.subr.mxu0 0.0
    %1514 = vmatpush1.msra.mxu0 0.0
    %1515 = vmatprep.subr.mxu0 0.0
    %1516 = vmatpush1.msra.mxu0 0.0
    %1517 = vmatprep.subr.mxu0 0.0
    %1518 = vmatpush1.msra.mxu0 0.0
    %1519 = vmatprep.subr.mxu0 0.0
    %1520 = vmatpush1.msra.mxu0 0.0
    %1521 = vmatprep.subr.mxu0 0.0
    %1522 = vmatpush1.msra.mxu0 0.0
    %1523 = vmatprep.subr.mxu0 0.0
    %1524 = vmatpush1.msra.mxu0 0.0
    %1525 = vmatprep.subr.mxu0 0.0
    %1526 = vmatpush1.msra.mxu0 0.0
    %1527 = vmatprep.subr.mxu0 0.0
    %1528 = vmatpush1.msra.mxu0 0.0
    %1529 = vmatprep.subr.mxu0 0.0
    %1530 = vmatpush1.msra.mxu0 0.0
    %1531 = vmatprep.subr.mxu0 0.0
    %1532 = vmatpush1.msra.mxu0 0.0
    %1533 = vmatprep.subr.mxu0 0.0
    %1534 = vmatpush1.msra.mxu0 0.0
    %1535 = vmatprep.subr.mxu0 0.0
    %1536 = vmatpush1.msra.mxu0 0.0
    %1537 = vmatprep.subr.mxu0 0.0
    %1538 = vmatpush1.msra.mxu0 0.0
    %1539 = vmatprep.subr.mxu0 0.0
    %1540 = vmatpush1.msra.mxu0 0.0
    %1541 = vmatprep.subr.mxu0 0.0
    %1542 = vmatpush1.msra.mxu0 0.0
    %1543 = vmatprep.subr.mxu0 0.0
    %1544 = vmatpush1.msra.mxu0 0.0
    %1545 = vmatprep.subr.mxu0 0.0
    %1546 = vmatpush1.msra.mxu0 0.0
    %1547 = vmatprep.mubr.f32.mxu0 0.0
    %1548 = vmatmul.mubr.f32.gmra.mrb[0].mxu0 %v1411
    %v1549 = vpop.f32.mrb[0].mxu0
    %v1550 = vadd.f32 0.0, %v1549
    %v1551 = vpop.f32.mrb[0].mxu0
    %v1552 = vadd.f32 0.0, %v1551
    %1553 = vmatprep.mubr.f32.mxu0 0.0
    %1554 = vmatmul.mubr.f32.gmra.mrb[0].mxu0 %v1414
    %v1555 = vpop.f32.mrb[0].mxu0
    %v1556 = vadd.f32 0.0, %v1555
    %v1557 = vpop.f32.mrb[0].mxu0
    %v1558 = vadd.f32 0.0, %v1557
    %1559 = vmatprep.mubr.f32.mxu0 0.0
    %1560 = vmatmul.mubr.f32.gmra.mrb[0].mxu0 %v1417
    %v1561 = vpop.f32.mrb[0].mxu0
    %v1562 = vadd.f32 0.0, %v1561
    %v1563 = vpop.f32.mrb[0].mxu0
    %v1564 = vadd.f32 0.0, %v1563
    %1565 = vmatprep.mubr.f32.mxu0 0.0
    %1566 = vmatmul.mubr.f32.gmra.mrb[0].mxu0 %v1420
    %v1567 = vpop.f32.mrb[0].mxu0
    %v1568 = vadd.f32 0.0, %v1567
    %v1569 = vpop.f32.mrb[0].mxu0
    %v1570 = vadd.f32 0.0, %v1569
    %1571 = vmatprep.mubr.f32.mxu0 0.0
    %1572 = vmatmul.mubr.f32.gmra.mrb[0].mxu0 %v1423
    %v1573 = vpop.f32.mrb[0].mxu0
    %v1574 = vadd.f32 0.0, %v1573
    %v1575 = vpop.f32.mrb[0].mxu0
    %v1576 = vadd.f32 0.0, %v1575
    %1577 = vmatprep.mubr.f32.mxu0 0.0
    %1578 = vmatmul.mubr.f32.gmra.mrb[0].mxu0 %v1426
    %v1579 = vpop.f32.mrb[0].mxu0
    %v1580 = vadd.f32 0.0, %v1579
    %v1581 = vpop.f32.mrb[0].mxu0
    %v1582 = vadd.f32 0.0, %v1581
    %1583 = vmatprep.mubr.f32.mxu0 0.0
    %1584 = vmatmul.mubr.f32.gmra.mrb[0].mxu0 %v1429
    %v1585 = vpop.f32.mrb[0].mxu0
    %v1586 = vadd.f32 0.0, %v1585
    %v1587 = vpop.f32.mrb[0].mxu0
    %v1588 = vadd.f32 0.0, %v1587
    %1589 = vmatprep.mubr.f32.mxu0 0.0
    %1590 = vmatmul.mubr.f32.gmra.mrb[0].mxu0 %v1432
    %v1591 = vpop.f32.mrb[0].mxu0
    %v1592 = vadd.f32 0.0, %v1591
    %v1593 = vpop.f32.mrb[0].mxu0
    %v1594 = vadd.f32 0.0, %v1593
    %1595 = vmatprep.mubr.f32.mxu0 0.0
    %1596 = vmatmul.mubr.f32.gmra.mrb[0].mxu0 %v1435
    %v1597 = vpop.f32.mrb[0].mxu0
    %v1598 = vadd.f32 0.0, %v1597
    %v1599 = vpop.f32.mrb[0].mxu0
    %v1600 = vadd.f32 0.0, %v1599
    %1601 = vmatprep.mubr.f32.mxu0 0.0
    %1602 = vmatmul.mubr.f32.gmra.mrb[0].mxu0 %v1438
    %v1603 = vpop.f32.mrb[0].mxu0
    %v1604 = vadd.f32 0.0, %v1603
    %v1605 = vpop.f32.mrb[0].mxu0
    %v1606 = vadd.f32 0.0, %v1605
    %1607 = vmatprep.mubr.f32.mxu0 0.0
    %1608 = vmatmul.mubr.f32.gmra.mrb[0].mxu0 %v1441
    %v1609 = vpop.f32.mrb[0].mxu0
    %v1610 = vadd.f32 0.0, %v1609
    %v1611 = vpop.f32.mrb[0].mxu0
    %v1612 = vadd.f32 0.0, %v1611
    %1613 = vmatprep.mubr.f32.mxu0 0.0
    %1614 = vmatmul.mubr.f32.gmra.mrb[0].mxu0 %v1444
    %v1615 = vpop.f32.mrb[0].mxu0
    %v1616 = vadd.f32 0.0, %v1615
    %v1617 = vpop.f32.mrb[0].mxu0
    %v1618 = vadd.f32 0.0, %v1617
    %1619 = vmatprep.mubr.f32.mxu0 0.0
    %1620 = vmatmul.mubr.f32.gmra.mrb[0].mxu0 %v1447
    %v1621 = vpop.f32.mrb[0].mxu0
    %v1622 = vadd.f32 0.0, %v1621
    %v1623 = vpop.f32.mrb[0].mxu0
    %v1624 = vadd.f32 0.0, %v1623
    %1625 = vmatprep.mubr.f32.mxu0 0.0
    %1626 = vmatmul.mubr.f32.gmra.mrb[0].mxu0 %v1450
    %v1627 = vpop.f32.mrb[0].mxu0
    %v1628 = vadd.f32 0.0, %v1627
    %v1629 = vpop.f32.mrb[0].mxu0
    %v1630 = vadd.f32 0.0, %v1629
    %1631 = vmatprep.mubr.f32.mxu0 0.0
    %1632 = vmatmul.mubr.f32.gmra.mrb[0].mxu0 %v1453
    %v1633 = vpop.f32.mrb[0].mxu0
    %v1634 = vadd.f32 0.0, %v1633
    %v1635 = vpop.f32.mrb[0].mxu0
    %v1636 = vadd.f32 0.0, %v1635
    %1637 = vmatprep.mubr.f32.mxu0 0.0
    %1638 = vmatmul.mubr.f32.gmra.mrb[0].mxu0 %v1456
    %v1639 = vpop.f32.mrb[0].mxu0
    %v1640 = vadd.f32 0.0, %v1639
    %v1641 = vpop.f32.mrb[0].mxu0
    %v1642 = vadd.f32 0.0, %v1641
    %1643 = vmatprep.mubr.f32.mxu0 0.0
    %1644 = vmatmul.mubr.f32.gmra.mrb[0].mxu0 %v1459
    %v1645 = vpop.f32.mrb[0].mxu0
    %v1646 = vadd.f32 0.0, %v1645
    %v1647 = vpop.f32.mrb[0].mxu0
    %v1648 = vadd.f32 0.0, %v1647
    %1649 = vmatprep.mubr.f32.mxu0 0.0
    %1650 = vmatmul.mubr.f32.gmra.mrb[0].mxu0 %v1462
    %v1651 = vpop.f32.mrb[0].mxu0
    %v1652 = vadd.f32 0.0, %v1651
    %v1653 = vpop.f32.mrb[0].mxu0
    %v1654 = vadd.f32 0.0, %v1653
    %1655 = vmatprep.mubr.f32.mxu0 0.0
    %1656 = vmatmul.mubr.f32.gmra.mrb[0].mxu0 %v1465
    %v1657 = vpop.f32.mrb[0].mxu0
    %v1658 = vadd.f32 0.0, %v1657
    %v1659 = vpop.f32.mrb[0].mxu0
    %v1660 = vadd.f32 0.0, %v1659
    %1661 = vmatprep.mubr.f32.mxu0 0.0
    %1662 = vmatmul.mubr.f32.gmra.mrb[0].mxu0 %v1468
    %v1663 = vpop.f32.mrb[0].mxu0
    %v1664 = vadd.f32 0.0, %v1663
    %v1665 = vpop.f32.mrb[0].mxu0
    %v1666 = vadd.f32 0.0, %v1665
    %1667 = vmatprep.mubr.f32.mxu0 0.0
    %1668 = vmatmul.mubr.f32.gmra.mrb[0].mxu0 %v1471
    %v1669 = vpop.f32.mrb[0].mxu0
    %v1670 = vadd.f32 0.0, %v1669
    %v1671 = vpop.f32.mrb[0].mxu0
    %v1672 = vadd.f32 0.0, %v1671
    %1673 = vdwg.mxu0
    %1674 = vmatprep.subr.mxu0 0.0
    %1675 = vmatpush1.msra.mxu0 %v1384
    %1676 = vmatprep.subr.mxu0 0.0
    %1677 = vmatpush1.msra.mxu0 %v1481
    %1678 = vmatprep.subr.mxu0 0.0
    %1679 = vmatpush1.msra.mxu0 0.0
    %1680 = vmatprep.subr.mxu0 0.0
    %1681 = vmatpush1.msra.mxu0 0.0
    %1682 = vmatprep.subr.mxu0 0.0
    %1683 = vmatpush1.msra.mxu0 0.0
    %1684 = vmatprep.subr.mxu0 0.0
    %1685 = vmatpush1.msra.mxu0 0.0
    %1686 = vmatprep.subr.mxu0 0.0
    %1687 = vmatpush1.msra.mxu0 0.0
    %1688 = vmatprep.subr.mxu0 0.0
    %1689 = vmatpush1.msra.mxu0 0.0
    %1690 = vmatprep.subr.mxu0 0.0
    %1691 = vmatpush1.msra.mxu0 0.0
    %1692 = vmatprep.subr.mxu0 0.0
    %1693 = vmatpush1.msra.mxu0 0.0
    %1694 = vmatprep.subr.mxu0 0.0
    %1695 = vmatpush1.msra.mxu0 0.0
    %1696 = vmatprep.subr.mxu0 0.0
    %1697 = vmatpush1.msra.mxu0 0.0
    %1698 = vmatprep.subr.mxu0 0.0
    %1699 = vmatpush1.msra.mxu0 0.0
    %1700 = vmatprep.subr.mxu0 0.0
    %1701 = vmatpush1.msra.mxu0 0.0
    %1702 = vmatprep.subr.mxu0 0.0
    %1703 = vmatpush1.msra.mxu0 0.0
    %1704 = vmatprep.subr.mxu0 0.0
    %1705 = vmatpush1.msra.mxu0 0.0
    %1706 = vmatprep.subr.mxu0 0.0
    %1707 = vmatpush1.msra.mxu0 0.0
    %1708 = vmatprep.subr.mxu0 0.0
    %1709 = vmatpush1.msra.mxu0 0.0
    %1710 = vmatprep.subr.mxu0 0.0
    %1711 = vmatpush1.msra.mxu0 0.0
    %1712 = vmatprep.subr.mxu0 0.0
    %1713 = vmatpush1.msra.mxu0 0.0
    %1714 = vmatprep.subr.mxu0 0.0
    %1715 = vmatpush1.msra.mxu0 0.0
    %1716 = vmatprep.subr.mxu0 0.0
    %1717 = vmatpush1.msra.mxu0 0.0
    %1718 = vmatprep.subr.mxu0 0.0
    %1719 = vmatpush1.msra.mxu0 0.0
    %1720 = vmatprep.subr.mxu0 0.0
    %1721 = vmatpush1.msra.mxu0 0.0
    %1722 = vmatprep.subr.mxu0 0.0
    %1723 = vmatpush1.msra.mxu0 0.0
    %1724 = vmatprep.subr.mxu0 0.0
    %1725 = vmatpush1.msra.mxu0 0.0
    %1726 = vmatprep.subr.mxu0 0.0
    %1727 = vmatpush1.msra.mxu0 0.0
    %1728 = vmatprep.subr.mxu0 0.0
    %1729 = vmatpush1.msra.mxu0 0.0
    %1730 = vmatprep.subr.mxu0 0.0
    %1731 = vmatpush1.msra.mxu0 0.0
    %1732 = vmatprep.subr.mxu0 0.0
    %1733 = vmatpush1.msra.mxu0 0.0
    %1734 = vmatprep.subr.mxu0 0.0
    %1735 = vmatpush1.msra.mxu0 0.0
    %1736 = vmatprep.subr.mxu0 0.0
    %1737 = vmatpush1.msra.mxu0 0.0
    %1738 = vmatprep.mubr.f32.mxu0 0.0
    %1739 = vmatmul.mubr.f32.gmra.mrb[0].mxu0 %v1411
    %v1740 = vpop.f32.mrb[0].mxu0
    %v1741 = vadd.f32 0.0, %v1740
    %v1742 = vpop.f32.mrb[0].mxu0
    %1743 = vmatprep.mubr.f32.mxu0 0.0
    %1744 = vmatmul.mubr.f32.gmra.mrb[0].mxu0 %v1414
    %v1745 = vpop.f32.mrb[0].mxu0
    %v1746 = vadd.f32 0.0, %v1745
    %v1747 = vpop.f32.mrb[0].mxu0
    %1748 = vmatprep.mubr.f32.mxu0 0.0
    %1749 = vmatmul.mubr.f32.gmra.mrb[0].mxu0 %v1417
    %v1750 = vpop.f32.mrb[0].mxu0
    %v1751 = vadd.f32 0.0, %v1750
    %v1752 = vpop.f32.mrb[0].mxu0
    %1753 = vmatprep.mubr.f32.mxu0 0.0
    %1754 = vmatmul.mubr.f32.gmra.mrb[0].mxu0 %v1420
    %v1755 = vpop.f32.mrb[0].mxu0
    %v1756 = vadd.f32 0.0, %v1755
    %v1757 = vpop.f32.mrb[0].mxu0
    %1758 = vmatprep.mubr.f32.mxu0 0.0
    %1759 = vmatmul.mubr.f32.gmra.mrb[0].mxu0 %v1423
    %v1760 = vpop.f32.mrb[0].mxu0
    %v1761 = vadd.f32 0.0, %v1760
    %v1762 = vpop.f32.mrb[0].mxu0
    %1763 = vmatprep.mubr.f32.mxu0 0.0
    %1764 = vmatmul.mubr.f32.gmra.mrb[0].mxu0 %v1426
    %v1765 = vpop.f32.mrb[0].mxu0
    %v1766 = vadd.f32 0.0, %v1765
    %v1767 = vpop.f32.mrb[0].mxu0
    %1768 = vmatprep.mubr.f32.mxu0 0.0
    %1769 = vmatmul.mubr.f32.gmra.mrb[0].mxu0 %v1429
    %v1770 = vpop.f32.mrb[0].mxu0
    %v1771 = vadd.f32 0.0, %v1770
    %v1772 = vpop.f32.mrb[0].mxu0
    %1773 = vmatprep.mubr.f32.mxu0 0.0
    %1774 = vmatmul.mubr.f32.gmra.mrb[0].mxu0 %v1432
    %v1775 = vpop.f32.mrb[0].mxu0
    %v1776 = vadd.f32 0.0, %v1775
    %v1777 = vpop.f32.mrb[0].mxu0
    %1778 = vmatprep.mubr.f32.mxu0 0.0
    %1779 = vmatmul.mubr.f32.gmra.mrb[0].mxu0 %v1435
    %v1780 = vpop.f32.mrb[0].mxu0
    %v1781 = vadd.f32 0.0, %v1780
    %v1782 = vpop.f32.mrb[0].mxu0
    %1783 = vmatprep.mubr.f32.mxu0 0.0
    %1784 = vmatmul.mubr.f32.gmra.mrb[0].mxu0 %v1438
    %v1785 = vpop.f32.mrb[0].mxu0
    %v1786 = vadd.f32 0.0, %v1785
    %v1787 = vpop.f32.mrb[0].mxu0
    %1788 = vmatprep.mubr.f32.mxu0 0.0
    %1789 = vmatmul.mubr.f32.gmra.mrb[0].mxu0 %v1441
    %v1790 = vpop.f32.mrb[0].mxu0
    %v1791 = vadd.f32 0.0, %v1790
    %v1792 = vpop.f32.mrb[0].mxu0
    %1793 = vmatprep.mubr.f32.mxu0 0.0
    %1794 = vmatmul.mubr.f32.gmra.mrb[0].mxu0 %v1444
    %v1795 = vpop.f32.mrb[0].mxu0
    %v1796 = vadd.f32 0.0, %v1795
    %v1797 = vpop.f32.mrb[0].mxu0
    %1798 = vmatprep.mubr.f32.mxu0 0.0
    %1799 = vmatmul.mubr.f32.gmra.mrb[0].mxu0 %v1447
    %v1800 = vpop.f32.mrb[0].mxu0
    %v1801 = vadd.f32 0.0, %v1800
    %v1802 = vpop.f32.mrb[0].mxu0
    %1803 = vmatprep.mubr.f32.mxu0 0.0
    %1804 = vmatmul.mubr.f32.gmra.mrb[0].mxu0 %v1450
    %v1805 = vpop.f32.mrb[0].mxu0
    %v1806 = vadd.f32 0.0, %v1805
    %v1807 = vpop.f32.mrb[0].mxu0
    %1808 = vmatprep.mubr.f32.mxu0 0.0
    %1809 = vmatmul.mubr.f32.gmra.mrb[0].mxu0 %v1453
    %v1810 = vpop.f32.mrb[0].mxu0
    %v1811 = vadd.f32 0.0, %v1810
    %v1812 = vpop.f32.mrb[0].mxu0
    %1813 = vmatprep.mubr.f32.mxu0 0.0
    %1814 = vmatmul.mubr.f32.gmra.mrb[0].mxu0 %v1456
    %v1815 = vpop.f32.mrb[0].mxu0
    %v1816 = vadd.f32 0.0, %v1815
    %v1817 = vpop.f32.mrb[0].mxu0
    %1818 = vmatprep.mubr.f32.mxu0 0.0
    %1819 = vmatmul.mubr.f32.gmra.mrb[0].mxu0 %v1459
    %v1820 = vpop.f32.mrb[0].mxu0
    %v1821 = vadd.f32 0.0, %v1820
    %v1822 = vpop.f32.mrb[0].mxu0
    %1823 = vmatprep.mubr.f32.mxu0 0.0
    %1824 = vmatmul.mubr.f32.gmra.mrb[0].mxu0 %v1462
    %v1825 = vpop.f32.mrb[0].mxu0
    %v1826 = vadd.f32 0.0, %v1825
    %v1827 = vpop.f32.mrb[0].mxu0
    %1828 = vmatprep.mubr.f32.mxu0 0.0
    %1829 = vmatmul.mubr.f32.gmra.mrb[0].mxu0 %v1465
    %v1830 = vpop.f32.mrb[0].mxu0
    %v1831 = vadd.f32 0.0, %v1830
    %v1832 = vpop.f32.mrb[0].mxu0
    %1833 = vmatprep.mubr.f32.mxu0 0.0
    %1834 = vmatmul.mubr.f32.gmra.mrb[0].mxu0 %v1468
    %v1835 = vpop.f32.mrb[0].mxu0
    %v1836 = vadd.f32 0.0, %v1835
    %v1837 = vpop.f32.mrb[0].mxu0
    %1838 = vmatprep.mubr.f32.mxu0 0.0
    %1839 = vmatmul.mubr.f32.gmra.mrb[0].mxu0 %v1471
    %v1840 = vpop.f32.mrb[0].mxu0
    %v1841 = vadd.f32 0.0, %v1840
    %v1842 = vpop.f32.mrb[0].mxu0
    %1843 = vdwg.mxu0
    %v1844 = vtanh.pop %v1550
    %v1845 = vtanh.pop %v1552
    %v1846 = vtanh.pop %v1741
    %v1847 = vtanh.pop %v1556
    %v1848 = vtanh.pop %v1558
    %v1849 = vtanh.pop %v1746
    %v1850 = vtanh.pop %v1562
    %v1851 = vtanh.pop %v1564
    %v1852 = vtanh.pop %v1751
    %v1853 = vtanh.pop %v1568
    %v1854 = vtanh.pop %v1570
    %v1855 = vtanh.pop %v1756
    %v1856 = vtanh.pop %v1574
    %v1857 = vtanh.pop %v1576
    %v1858 = vtanh.pop %v1761
    %v1859 = vtanh.pop %v1580
    %v1860 = vtanh.pop %v1582
    %v1861 = vtanh.pop %v1766
    %v1862 = vtanh.pop %v1586
    %v1863 = vtanh.pop %v1588
    %v1864 = vtanh.pop %v1771
    %v1865 = vtanh.pop %v1592
    %v1866 = vtanh.pop %v1594
    %v1867 = vtanh.pop %v1776
    %v1868 = vtanh.pop %v1598
    %v1869 = vtanh.pop %v1600
    %v1870 = vtanh.pop %v1781
    %v1871 = vtanh.pop %v1604
    %v1872 = vtanh.pop %v1606
    %v1873 = vtanh.pop %v1786
    %v1874 = vtanh.pop %v1610
    %v1875 = vtanh.pop %v1612
    %v1876 = vtanh.pop %v1791
    %v1877 = vtanh.pop %v1616
    %v1878 = vtanh.pop %v1618
    %v1879 = vtanh.pop %v1796
    %v1880 = vtanh.pop %v1622
    %v1881 = vtanh.pop %v1624
    %v1882 = vtanh.pop %v1801
    %v1883 = vtanh.pop %v1628
    %v1884 = vtanh.pop %v1630
    %v1885 = vtanh.pop %v1806
    %v1886 = vtanh.pop %v1634
    %v1887 = vtanh.pop %v1636
    %v1888 = vtanh.pop %v1811
    %v1889 = vtanh.pop %v1640
    %v1890 = vtanh.pop %v1642
    %v1891 = vtanh.pop %v1816
    %v1892 = vtanh.pop %v1646
    %v1893 = vtanh.pop %v1648
    %v1894 = vtanh.pop %v1821
    %v1895 = vtanh.pop %v1652
    %v1896 = vtanh.pop %v1654
    %v1897 = vtanh.pop %v1826
    %v1898 = vtanh.pop %v1658
    %v1899 = vtanh.pop %v1660
    %v1900 = vtanh.pop %v1831
    %v1901 = vtanh.pop %v1664
    %v1902 = vtanh.pop %v1666
    %v1903 = vtanh.pop %v1836
    %v1904 = vtanh.pop %v1670
    %v1905 = vtanh.pop %v1672
    %v1906 = vtanh.pop %v1841
    %v1907 = vld [vmem:[%s2] sm:$0xff]
    %v1908 = vld [vmem:[%s2 + $0x8] sm:$0xff]
    %v1909 = vld [vmem:[%s2 + $0x10] sm:$0xff]
    %v1910 = vld [vmem:[%s2 + $0x18] sm:$0xff]
    %v1911 = vld [vmem:[%s2 + $0x20] sm:$0xff]
    %v1912 = vld [vmem:[%s2 + $0x28] sm:$0xff]
    %v1913 = vld [vmem:[%s2 + $0x30] sm:$0xff]
    %v1914 = vld [vmem:[%s3] sm:$0xff]
    %v1915 = vld [vmem:[%s3 + $0x8] sm:$0xff]
    %v1916 = vld [vmem:[%s3 + $0x10] sm:$0xff]
    %v1917 = vld [vmem:[%s3 + $0x18] sm:$0xff]
    %v1918 = vld [vmem:[%s3 + $0x20] sm:$0xff]
    %v1919 = vld [vmem:[%s3 + $0x28] sm:$0xff]
    %v1920 = vld [vmem:[%s3 + $0x30] sm:$0xff]
    %1922 = vset.pattern.permute.xlu0 0
    %1923 = vperm.xlu0 %1922, %v1914
    %v1924 = vpop.permute.xlu0 %1923
    %1927 = vset.pattern.permute.xlu0 0
    %1928 = vperm.xlu0 %1927, %v1915
    %v1929 = vpop.permute.xlu0 %1928
    %1932 = vset.pattern.permute.xlu0 0
    %1933 = vperm.xlu0 %1932, %v1916
    %v1934 = vpop.permute.xlu0 %1933
    %1937 = vset.pattern.permute.xlu0 0
    %1938 = vperm.xlu0 %1937, %v1917
    %v1939 = vpop.permute.xlu0 %1938
    %1942 = vset.pattern.permute.xlu0 0
    %1943 = vperm.xlu0 %1942, %v1918
    %v1944 = vpop.permute.xlu0 %1943
    %1947 = vset.pattern.permute.xlu0 0
    %1948 = vperm.xlu0 %1947, %v1919
    %v1949 = vpop.permute.xlu0 %1948
    %1952 = vset.pattern.permute.xlu0 0
    %1953 = vperm.xlu0 %1952, %v1920
    %v1954 = vpop.permute.xlu0 %1953
    %vm1956 = vcmask 457728
    %v1958 = vsel %vm1956, %v1907, 0
    %v1961 = vsel %vm1956, %v1908, 0
    %v1964 = vsel %vm1956, %v1909, 0
    %v1967 = vsel %vm1956, %v1910, 0
    %v1970 = vsel %vm1956, %v1911, 0
    %v1973 = vsel %vm1956, %v1912, 0
    %v1976 = vsel %vm1956, %v1913, 0
    %1978 = vmatprep.subr.mxu0 %v1887
    %1979 = vmatpush1.msra.mxu0 %v1886
    %1980 = vmatprep.subr.mxu0 %v1890
    %1981 = vmatpush1.msra.mxu0 %v1889
    %1982 = vmatprep.subr.mxu0 %v1893
    %1983 = vmatpush1.msra.mxu0 %v1892
    %1984 = vmatprep.subr.mxu0 %v1896
    %1985 = vmatpush1.msra.mxu0 %v1895
    %1986 = vmatprep.subr.mxu0 %v1899
    %1987 = vmatpush1.msra.mxu0 %v1898
    %1988 = vmatprep.subr.mxu0 %v1902
    %1989 = vmatpush1.msra.mxu0 %v1901
    %1990 = vmatprep.subr.mxu0 %v1905
    %1991 = vmatpush1.msra.mxu0 %v1904
    %1992 = vmatprep.subr.mxu0 0.0
    %1993 = vmatpush1.msra.mxu0 0.0
    %1994 = vmatprep.subr.mxu0 0.0
    %1995 = vmatpush1.msra.mxu0 0.0
    %1996 = vmatprep.subr.mxu0 0.0
    %1997 = vmatpush1.msra.mxu0 0.0
    %1998 = vmatprep.subr.mxu0 0.0
    %1999 = vmatpush1.msra.mxu0 0.0
    %2000 = vmatprep.subr.mxu0 0.0
    %2001 = vmatpush1.msra.mxu0 0.0
    %2002 = vmatprep.subr.mxu0 0.0
    %2003 = vmatpush1.msra.mxu0 0.0
    %2004 = vmatprep.subr.mxu0 0.0
    %2005 = vmatpush1.msra.mxu0 0.0
    %2006 = vmatprep.subr.mxu0 0.0
    %2007 = vmatpush1.msra.mxu0 0.0
    %2008 = vmatprep.subr.mxu0 0.0
    %2009 = vmatpush1.msra.mxu0 0.0
    %2010 = vmatprep.subr.mxu0 0.0
    %2011 = vmatpush1.msra.mxu0 0.0
    %2012 = vmatprep.subr.mxu0 0.0
    %2013 = vmatpush1.msra.mxu0 0.0
    %2014 = vmatprep.subr.mxu0 0.0
    %2015 = vmatpush1.msra.mxu0 0.0
    %2016 = vmatprep.subr.mxu0 0.0
    %2017 = vmatpush1.msra.mxu0 0.0
    %2018 = vmatprep.subr.mxu0 0.0
    %2019 = vmatpush1.msra.mxu0 0.0
    %2020 = vmatprep.subr.mxu0 0.0
    %2021 = vmatpush1.msra.mxu0 0.0
    %2022 = vmatprep.subr.mxu0 0.0
    %2023 = vmatpush1.msra.mxu0 0.0
    %2024 = vmatprep.subr.mxu0 0.0
    %2025 = vmatpush1.msra.mxu0 0.0
    %2026 = vmatprep.subr.mxu0 0.0
    %2027 = vmatpush1.msra.mxu0 0.0
    %2028 = vmatprep.subr.mxu0 0.0
    %2029 = vmatpush1.msra.mxu0 0.0
    %2030 = vmatprep.subr.mxu0 0.0
    %2031 = vmatpush1.msra.mxu0 0.0
    %2032 = vmatprep.subr.mxu0 0.0
    %2033 = vmatpush1.msra.mxu0 0.0
    %2034 = vmatprep.subr.mxu0 0.0
    %2035 = vmatpush1.msra.mxu0 0.0
    %2036 = vmatprep.subr.mxu0 0.0
    %2037 = vmatpush1.msra.mxu0 0.0
    %2038 = vmatprep.subr.mxu0 0.0
    %2039 = vmatpush1.msra.mxu0 0.0
    %2040 = vmatprep.subr.mxu0 0.0
    %2041 = vmatpush1.msra.mxu0 0.0
    %2042 = vmatprep.mubr.f32.mxu0 0.0
    %2043 = vmatmul.mubr.f32.gmra.mrb[0].mxu0 %v1958
    %v2044 = vpop.f32.mrb[0].mxu0
    %v2045 = vadd.f32 %v1924, %v2044
    %v2046 = vpop.f32.mrb[0].mxu0
    %v2047 = vadd.f32 %v1924, %v2046
    %2048 = vmatprep.mubr.f32.mxu0 0.0
    %2049 = vmatmul.mubr.f32.gmra.mrb[0].mxu0 %v1961
    %v2050 = vpop.f32.mrb[0].mxu0
    %v2051 = vadd.f32 %v1929, %v2050
    %v2052 = vpop.f32.mrb[0].mxu0
    %v2053 = vadd.f32 %v1929, %v2052
    %2054 = vmatprep.mubr.f32.mxu0 0.0
    %2055 = vmatmul.mubr.f32.gmra.mrb[0].mxu0 %v1964
    %v2056 = vpop.f32.mrb[0].mxu0
    %v2057 = vadd.f32 %v1934, %v2056
    %v2058 = vpop.f32.mrb[0].mxu0
    %v2059 = vadd.f32 %v1934, %v2058
    %2060 = vmatprep.mubr.f32.mxu0 0.0
    %2061 = vmatmul.mubr.f32.gmra.mrb[0].mxu0 %v1967
    %v2062 = vpop.f32.mrb[0].mxu0
    %v2063 = vadd.f32 %v1939, %v2062
    %v2064 = vpop.f32.mrb[0].mxu0
    %v2065 = vadd.f32 %v1939, %v2064
    %2066 = vmatprep.mubr.f32.mxu0 0.0
    %2067 = vmatmul.mubr.f32.gmra.mrb[0].mxu0 %v1970
    %v2068 = vpop.f32.mrb[0].mxu0
    %v2069 = vadd.f32 %v1944, %v2068
    %v2070 = vpop.f32.mrb[0].mxu0
    %v2071 = vadd.f32 %v1944, %v2070
    %2072 = vmatprep.mubr.f32.mxu0 0.0
    %2073 = vmatmul.mubr.f32.gmra.mrb[0].mxu0 %v1973
    %v2074 = vpop.f32.mrb[0].mxu0
    %v2075 = vadd.f32 %v1949, %v2074
    %v2076 = vpop.f32.mrb[0].mxu0
    %v2077 = vadd.f32 %v1949, %v2076
    %2078 = vmatprep.mubr.f32.mxu0 0.0
    %2079 = vmatmul.mubr.f32.gmra.mrb[0].mxu0 %v1976
    %v2080 = vpop.f32.mrb[0].mxu0
    %v2081 = vadd.f32 %v1954, %v2080
    %v2082 = vpop.f32.mrb[0].mxu0
    %v2083 = vadd.f32 %v1954, %v2082
    %2084 = vdwg.mxu0
    %2085 = vmatprep.subr.mxu0 0.0
    %2086 = vmatpush1.msra.mxu0 %v1888
    %2087 = vmatprep.subr.mxu0 0.0
    %2088 = vmatpush1.msra.mxu0 %v1891
    %2089 = vmatprep.subr.mxu0 0.0
    %2090 = vmatpush1.msra.mxu0 %v1894
    %2091 = vmatprep.subr.mxu0 0.0
    %2092 = vmatpush1.msra.mxu0 %v1897
    %2093 = vmatprep.subr.mxu0 0.0
    %2094 = vmatpush1.msra.mxu0 %v1900
    %2095 = vmatprep.subr.mxu0 0.0
    %2096 = vmatpush1.msra.mxu0 %v1903
    %2097 = vmatprep.subr.mxu0 0.0
    %2098 = vmatpush1.msra.mxu0 %v1906
    %2099 = vmatprep.subr.mxu0 0.0
    %2100 = vmatpush1.msra.mxu0 0.0
    %2101 = vmatprep.subr.mxu0 0.0
    %2102 = vmatpush1.msra.mxu0 0.0
    %2103 = vmatprep.subr.mxu0 0.0
    %2104 = vmatpush1.msra.mxu0 0.0
    %2105 = vmatprep.subr.mxu0 0.0
    %2106 = vmatpush1.msra.mxu0 0.0
    %2107 = vmatprep.subr.mxu0 0.0
    %2108 = vmatpush1.msra.mxu0 0.0
    %2109 = vmatprep.subr.mxu0 0.0
    %2110 = vmatpush1.msra.mxu0 0.0
    %2111 = vmatprep.subr.mxu0 0.0
    %2112 = vmatpush1.msra.mxu0 0.0
    %2113 = vmatprep.subr.mxu0 0.0
    %2114 = vmatpush1.msra.mxu0 0.0
    %2115 = vmatprep.subr.mxu0 0.0
    %2116 = vmatpush1.msra.mxu0 0.0
    %2117 = vmatprep.subr.mxu0 0.0
    %2118 = vmatpush1.msra.mxu0 0.0
    %2119 = vmatprep.subr.mxu0 0.0
    %2120 = vmatpush1.msra.mxu0 0.0
    %2121 = vmatprep.subr.mxu0 0.0
    %2122 = vmatpush1.msra.mxu0 0.0
    %2123 = vmatprep.subr.mxu0 0.0
    %2124 = vmatpush1.msra.mxu0 0.0
    %2125 = vmatprep.subr.mxu0 0.0
    %2126 = vmatpush1.msra.mxu0 0.0
    %2127 = vmatprep.subr.mxu0 0.0
    %2128 = vmatpush1.msra.mxu0 0.0
    %2129 = vmatprep.subr.mxu0 0.0
    %2130 = vmatpush1.msra.mxu0 0.0
    %2131 = vmatprep.subr.mxu0 0.0
    %2132 = vmatpush1.msra.mxu0 0.0
    %2133 = vmatprep.subr.mxu0 0.0
    %2134 = vmatpush1.msra.mxu0 0.0
    %2135 = vmatprep.subr.mxu0 0.0
    %2136 = vmatpush1.msra.mxu0 0.0
    %2137 = vmatprep.subr.mxu0 0.0
    %2138 = vmatpush1.msra.mxu0 0.0
    %2139 = vmatprep.subr.mxu0 0.0
    %2140 = vmatpush1.msra.mxu0 0.0
    %2141 = vmatprep.subr.mxu0 0.0
    %2142 = vmatpush1.msra.mxu0 0.0
    %2143 = vmatprep.subr.mxu0 0.0
    %2144 = vmatpush1.msra.mxu0 0.0
    %2145 = vmatprep.subr.mxu0 0.0
    %2146 = vmatpush1.msra.mxu0 0.0
    %2147 = vmatprep.subr.mxu0 0.0
    %2148 = vmatpush1.msra.mxu0 0.0
    %2149 = vmatprep.mubr.f32.mxu0 0.0
    %2150 = vmatmul.mubr.f32.gmra.mrb[0].mxu0 %v1958
    %v2151 = vpop.f32.mrb[0].mxu0
    %v2152 = vadd.f32 %v1924, %v2151
    %v2153 = vpop.f32.mrb[0].mxu0
    %2154 = vmatprep.mubr.f32.mxu0 0.0
    %2155 = vmatmul.mubr.f32.gmra.mrb[0].mxu0 %v1961
    %v2156 = vpop.f32.mrb[0].mxu0
    %v2157 = vadd.f32 %v1929, %v2156
    %v2158 = vpop.f32.mrb[0].mxu0
    %2159 = vmatprep.mubr.f32.mxu0 0.0
    %2160 = vmatmul.mubr.f32.gmra.mrb[0].mxu0 %v1964
    %v2161 = vpop.f32.mrb[0].mxu0
    %v2162 = vadd.f32 %v1934, %v2161
    %v2163 = vpop.f32.mrb[0].mxu0
    %2164 = vmatprep.mubr.f32.mxu0 0.0
    %2165 = vmatmul.mubr.f32.gmra.mrb[0].mxu0 %v1967
    %v2166 = vpop.f32.mrb[0].mxu0
    %v2167 = vadd.f32 %v1939, %v2166
    %v2168 = vpop.f32.mrb[0].mxu0
    %2169 = vmatprep.mubr.f32.mxu0 0.0
    %2170 = vmatmul.mubr.f32.gmra.mrb[0].mxu0 %v1970
    %v2171 = vpop.f32.mrb[0].mxu0
    %v2172 = vadd.f32 %v1944, %v2171
    %v2173 = vpop.f32.mrb[0].mxu0
    %2174 = vmatprep.mubr.f32.mxu0 0.0
    %2175 = vmatmul.mubr.f32.gmra.mrb[0].mxu0 %v1973
    %v2176 = vpop.f32.mrb[0].mxu0
    %v2177 = vadd.f32 %v1949, %v2176
    %v2178 = vpop.f32.mrb[0].mxu0
    %2179 = vmatprep.mubr.f32.mxu0 0.0
    %2180 = vmatmul.mubr.f32.gmra.mrb[0].mxu0 %v1976
    %v2181 = vpop.f32.mrb[0].mxu0
    %v2182 = vadd.f32 %v1954, %v2181
    %v2183 = vpop.f32.mrb[0].mxu0
    %2184 = vdwg.mxu0
    %v2185 = vtanh.pop %v2045
    %v2186 = vtanh.pop %v2047
    %v2187 = vtanh.pop %v2152
    %v2188 = vtanh.pop %v2051
    %v2189 = vtanh.pop %v2053
    %v2190 = vtanh.pop %v2157
    %v2191 = vtanh.pop %v2057
    %v2192 = vtanh.pop %v2059
    %v2193 = vtanh.pop %v2162
    %v2194 = vtanh.pop %v2063
    %v2195 = vtanh.pop %v2065
    %v2196 = vtanh.pop %v2167
    %v2197 = vtanh.pop %v2069
    %v2198 = vtanh.pop %v2071
    %v2199 = vtanh.pop %v2172
    %v2200 = vtanh.pop %v2075
    %v2201 = vtanh.pop %v2077
    %v2202 = vtanh.pop %v2177
    %v2203 = vtanh.pop %v2081
    %v2204 = vtanh.pop %v2083
    %v2205 = vtanh.pop %v2182
    %v2206 = vsub.f32 1.0, %v2185
    %v2207 = vsub.f32 1.0, %v2186
    %v2208 = vsub.f32 1.0, %v2187
    %v2209 = vsub.f32 1.0, %v2188
    %v2210 = vsub.f32 1.0, %v2189
    %v2211 = vsub.f32 1.0, %v2190
    %v2212 = vsub.f32 1.0, %v2191
    %v2213 = vsub.f32 1.0, %v2192
    %v2214 = vsub.f32 1.0, %v2193
    %v2215 = vsub.f32 1.0, %v2194
    %v2216 = vsub.f32 1.0, %v2195
    %v2217 = vsub.f32 1.0, %v2196
    %v2218 = vsub.f32 1.0, %v2197
    %v2219 = vsub.f32 1.0, %v2198
    %v2220 = vsub.f32 1.0, %v2199
    %v2221 = vsub.f32 1.0, %v2200
    %v2222 = vsub.f32 1.0, %v2201
    %v2223 = vsub.f32 1.0, %v2202
    %v2224 = vsub.f32 1.0, %v2203
    %v2225 = vsub.f32 1.0, %v2204
    %v2226 = vsub.f32 1.0, %v2205
    %v2227 = vmul.f32 %v2206, %v1844
    %v2228 = vmul.f32 %v2207, %v1845
    %v2229 = vmul.f32 %v2208, %v1846
    %v2230 = vmul.f32 %v2209, %v1847
    %v2231 = vmul.f32 %v2210, %v1848
    %v2232 = vmul.f32 %v2211, %v1849
    %v2233 = vmul.f32 %v2212, %v1850
    %v2234 = vmul.f32 %v2213, %v1851
    %v2235 = vmul.f32 %v2214, %v1852
    %v2236 = vmul.f32 %v2215, %v1853
    %v2237 = vmul.f32 %v2216, %v1854
    %v2238 = vmul.f32 %v2217, %v1855
    %v2239 = vmul.f32 %v2218, %v1856
    %v2240 = vmul.f32 %v2219, %v1857
    %v2241 = vmul.f32 %v2220, %v1858
    %v2242 = vmul.f32 %v2221, %v1859
    %v2243 = vmul.f32 %v2222, %v1860
    %v2244 = vmul.f32 %v2223, %v1861
    %v2245 = vmul.f32 %v2224, %v1862
    %v2246 = vmul.f32 %v2225, %v1863
    %v2247 = vmul.f32 %v2226, %v1864
    %v2248 = vmul.f32 %v2185, %v1865
    %v2249 = vmul.f32 %v2186, %v1866
    %v2250 = vmul.f32 %v2187, %v1867
    %v2251 = vmul.f32 %v2188, %v1868
    %v2252 = vmul.f32 %v2189, %v1869
    %v2253 = vmul.f32 %v2190, %v1870
    %v2254 = vmul.f32 %v2191, %v1871
    %v2255 = vmul.f32 %v2192, %v1872
    %v2256 = vmul.f32 %v2193, %v1873
    %v2257 = vmul.f32 %v2194, %v1874
    %v2258 = vmul.f32 %v2195, %v1875
    %v2259 = vmul.f32 %v2196, %v1876
    %v2260 = vmul.f32 %v2197, %v1877
    %v2261 = vmul.f32 %v2198, %v1878
    %v2262 = vmul.f32 %v2199, %v1879
    %v2263 = vmul.f32 %v2200, %v1880
    %v2264 = vmul.f32 %v2201, %v1881
    %v2265 = vmul.f32 %v2202, %v1882
    %v2266 = vmul.f32 %v2203, %v1883
    %v2267 = vmul.f32 %v2204, %v1884
    %v2268 = vmul.f32 %v2205, %v1885
    %v2269 = vadd.f32 %v2227, %v2248
    %v2270 = vadd.f32 %v2228, %v2249
    %v2271 = vadd.f32 %v2229, %v2250
    %v2272 = vadd.f32 %v2230, %v2251
    %v2273 = vadd.f32 %v2231, %v2252
    %v2274 = vadd.f32 %v2232, %v2253
    %v2275 = vadd.f32 %v2233, %v2254
    %v2276 = vadd.f32 %v2234, %v2255
    %v2277 = vadd.f32 %v2235, %v2256
    %v2278 = vadd.f32 %v2236, %v2257
    %v2279 = vadd.f32 %v2237, %v2258
    %v2280 = vadd.f32 %v2238, %v2259
    %v2281 = vadd.f32 %v2239, %v2260
    %v2282 = vadd.f32 %v2240, %v2261
    %v2283 = vadd.f32 %v2241, %v2262
    %v2284 = vadd.f32 %v2242, %v2263
    %v2285 = vadd.f32 %v2243, %v2264
    %v2286 = vadd.f32 %v2244, %v2265
    %v2287 = vadd.f32 %v2245, %v2266
    %v2288 = vadd.f32 %v2246, %v2267
    %v2289 = vadd.f32 %v2247, %v2268
    %s2290 = scalar_lea.vmem %s2, 56
    %v2291 = vld [vmem:[%s2290] sm:$0xff]
    %v2292 = vld [vmem:[%s2290 + $0x8] sm:$0xff]
    %v2293 = vld [vmem:[%s2290 + $0x10] sm:$0xff]
    %v2294 = vld [vmem:[%s2290 + $0x18] sm:$0xff]
    %v2295 = vld [vmem:[%s2290 + $0x20] sm:$0xff]
    %v2296 = vld [vmem:[%s2290 + $0x28] sm:$0xff]
    %v2297 = vld [vmem:[%s2290 + $0x30] sm:$0xff]
    %s2298 = scalar_lea.vmem %s3, 56
    %v2299 = vld [vmem:[%s2298] sm:$0xff]
    %v2300 = vld [vmem:[%s2298 + $0x8] sm:$0xff]
    %v2301 = vld [vmem:[%s2298 + $0x10] sm:$0xff]
    %v2302 = vld [vmem:[%s2298 + $0x18] sm:$0xff]
    %v2303 = vld [vmem:[%s2298 + $0x20] sm:$0xff]
    %v2304 = vld [vmem:[%s2298 + $0x28] sm:$0xff]
    %v2305 = vld [vmem:[%s2298 + $0x30] sm:$0xff]
    %2307 = vset.pattern.permute.xlu0 0
    %2308 = vperm.xlu0 %2307, %v2299
    %v2309 = vpop.permute.xlu0 %2308
    %2312 = vset.pattern.permute.xlu0 0
    %2313 = vperm.xlu0 %2312, %v2300
    %v2314 = vpop.permute.xlu0 %2313
    %2317 = vset.pattern.permute.xlu0 0
    %2318 = vperm.xlu0 %2317, %v2301
    %v2319 = vpop.permute.xlu0 %2318
    %2322 = vset.pattern.permute.xlu0 0
    %2323 = vperm.xlu0 %2322, %v2302
    %v2324 = vpop.permute.xlu0 %2323
    %2327 = vset.pattern.permute.xlu0 0
    %2328 = vperm.xlu0 %2327, %v2303
    %v2329 = vpop.permute.xlu0 %2328
    %2332 = vset.pattern.permute.xlu0 0
    %2333 = vperm.xlu0 %2332, %v2304
    %v2334 = vpop.permute.xlu0 %2333
    %2337 = vset.pattern.permute.xlu0 0
    %2338 = vperm.xlu0 %2337, %v2305
    %v2339 = vpop.permute.xlu0 %2338
    %v2342 = vsel %vm1956, %v2291, 0
    %v2345 = vsel %vm1956, %v2292, 0
    %v2348 = vsel %vm1956, %v2293, 0
    %v2351 = vsel %vm1956, %v2294, 0
    %v2354 = vsel %vm1956, %v2295, 0
    %v2357 = vsel %vm1956, %v2296, 0
    %v2360 = vsel %vm1956, %v2297, 0
    %2362 = vmatprep.subr.mxu0 %v2270
    %2363 = vmatpush1.msra.mxu0 %v2269
    %2364 = vmatprep.subr.mxu0 %v2273
    %2365 = vmatpush1.msra.mxu0 %v2272
    %2366 = vmatprep.subr.mxu0 %v2276
    %2367 = vmatpush1.msra.mxu0 %v2275
    %2368 = vmatprep.subr.mxu0 %v2279
    %2369 = vmatpush1.msra.mxu0 %v2278
    %2370 = vmatprep.subr.mxu0 %v2282
    %2371 = vmatpush1.msra.mxu0 %v2281
    %2372 = vmatprep.subr.mxu0 %v2285
    %2373 = vmatpush1.msra.mxu0 %v2284
    %2374 = vmatprep.subr.mxu0 %v2288
    %2375 = vmatpush1.msra.mxu0 %v2287
    %2376 = vmatprep.subr.mxu0 0.0
    %2377 = vmatpush1.msra.mxu0 0.0
    %2378 = vmatprep.subr.mxu0 0.0
    %2379 = vmatpush1.msra.mxu0 0.0
    %2380 = vmatprep.subr.mxu0 0.0
    %2381 = vmatpush1.msra.mxu0 0.0
    %2382 = vmatprep.subr.mxu0 0.0
    %2383 = vmatpush1.msra.mxu0 0.0
    %2384 = vmatprep.subr.mxu0 0.0
    %2385 = vmatpush1.msra.mxu0 0.0
    %2386 = vmatprep.subr.mxu0 0.0
    %2387 = vmatpush1.msra.mxu0 0.0
    %2388 = vmatprep.subr.mxu0 0.0
    %2389 = vmatpush1.msra.mxu0 0.0
    %2390 = vmatprep.subr.mxu0 0.0
    %2391 = vmatpush1.msra.mxu0 0.0
    %2392 = vmatprep.subr.mxu0 0.0
    %2393 = vmatpush1.msra.mxu0 0.0
    %2394 = vmatprep.subr.mxu0 0.0
    %2395 = vmatpush1.msra.mxu0 0.0
    %2396 = vmatprep.subr.mxu0 0.0
    %2397 = vmatpush1.msra.mxu0 0.0
    %2398 = vmatprep.subr.mxu0 0.0
    %2399 = vmatpush1.msra.mxu0 0.0
    %2400 = vmatprep.subr.mxu0 0.0
    %2401 = vmatpush1.msra.mxu0 0.0
    %2402 = vmatprep.subr.mxu0 0.0
    %2403 = vmatpush1.msra.mxu0 0.0
    %2404 = vmatprep.subr.mxu0 0.0
    %2405 = vmatpush1.msra.mxu0 0.0
    %2406 = vmatprep.subr.mxu0 0.0
    %2407 = vmatpush1.msra.mxu0 0.0
    %2408 = vmatprep.subr.mxu0 0.0
    %2409 = vmatpush1.msra.mxu0 0.0
    %2410 = vmatprep.subr.mxu0 0.0
    %2411 = vmatpush1.msra.mxu0 0.0
    %2412 = vmatprep.subr.mxu0 0.0
    %2413 = vmatpush1.msra.mxu0 0.0
    %2414 = vmatprep.subr.mxu0 0.0
    %2415 = vmatpush1.msra.mxu0 0.0
    %2416 = vmatprep.subr.mxu0 0.0
    %2417 = vmatpush1.msra.mxu0 0.0
    %2418 = vmatprep.subr.mxu0 0.0
    %2419 = vmatpush1.msra.mxu0 0.0
    %2420 = vmatprep.subr.mxu0 0.0
    %2421 = vmatpush1.msra.mxu0 0.0
    %2422 = vmatprep.subr.mxu0 0.0
    %2423 = vmatpush1.msra.mxu0 0.0
    %2424 = vmatprep.subr.mxu0 0.0
    %2425 = vmatpush1.msra.mxu0 0.0
    %2426 = vmatprep.mubr.f32.mxu0 0.0
    %2427 = vmatmul.mubr.f32.gmra.mrb[0].mxu0 %v2342
    %v2428 = vpop.f32.mrb[0].mxu0
    %v2429 = vadd.f32 %v2309, %v2428
    %v2430 = vpop.f32.mrb[0].mxu0
    %v2431 = vadd.f32 %v2309, %v2430
    %2432 = vmatprep.mubr.f32.mxu0 0.0
    %2433 = vmatmul.mubr.f32.gmra.mrb[0].mxu0 %v2345
    %v2434 = vpop.f32.mrb[0].mxu0
    %v2435 = vadd.f32 %v2314, %v2434
    %v2436 = vpop.f32.mrb[0].mxu0
    %v2437 = vadd.f32 %v2314, %v2436
    %2438 = vmatprep.mubr.f32.mxu0 0.0
    %2439 = vmatmul.mubr.f32.gmra.mrb[0].mxu0 %v2348
    %v2440 = vpop.f32.mrb[0].mxu0
    %v2441 = vadd.f32 %v2319, %v2440
    %v2442 = vpop.f32.mrb[0].mxu0
    %v2443 = vadd.f32 %v2319, %v2442
    %2444 = vmatprep.mubr.f32.mxu0 0.0
    %2445 = vmatmul.mubr.f32.gmra.mrb[0].mxu0 %v2351
    %v2446 = vpop.f32.mrb[0].mxu0
    %v2447 = vadd.f32 %v2324, %v2446
    %v2448 = vpop.f32.mrb[0].mxu0
    %v2449 = vadd.f32 %v2324, %v2448
    %2450 = vmatprep.mubr.f32.mxu0 0.0
    %2451 = vmatmul.mubr.f32.gmra.mrb[0].mxu0 %v2354
    %v2452 = vpop.f32.mrb[0].mxu0
    %v2453 = vadd.f32 %v2329, %v2452
    %v2454 = vpop.f32.mrb[0].mxu0
    %v2455 = vadd.f32 %v2329, %v2454
    %2456 = vmatprep.mubr.f32.mxu0 0.0
    %2457 = vmatmul.mubr.f32.gmra.mrb[0].mxu0 %v2357
    %v2458 = vpop.f32.mrb[0].mxu0
    %v2459 = vadd.f32 %v2334, %v2458
    %v2460 = vpop.f32.mrb[0].mxu0
    %v2461 = vadd.f32 %v2334, %v2460
    %2462 = vmatprep.mubr.f32.mxu0 0.0
    %2463 = vmatmul.mubr.f32.gmra.mrb[0].mxu0 %v2360
    %v2464 = vpop.f32.mrb[0].mxu0
    %v2465 = vadd.f32 %v2339, %v2464
    %v2466 = vpop.f32.mrb[0].mxu0
    %v2467 = vadd.f32 %v2339, %v2466
    %2468 = vdwg.mxu0
    %2469 = vmatprep.subr.mxu0 0.0
    %2470 = vmatpush1.msra.mxu0 %v2271
    %2471 = vmatprep.subr.mxu0 0.0
    %2472 = vmatpush1.msra.mxu0 %v2274
    %2473 = vmatprep.subr.mxu0 0.0
    %2474 = vmatpush1.msra.mxu0 %v2277
    %2475 = vmatprep.subr.mxu0 0.0
    %2476 = vmatpush1.msra.mxu0 %v2280
    %2477 = vmatprep.subr.mxu0 0.0
    %2478 = vmatpush1.msra.mxu0 %v2283
    %2479 = vmatprep.subr.mxu0 0.0
    %2480 = vmatpush1.msra.mxu0 %v2286
    %2481 = vmatprep.subr.mxu0 0.0
    %2482 = vmatpush1.msra.mxu0 %v2289
    %2483 = vmatprep.subr.mxu0 0.0
    %2484 = vmatpush1.msra.mxu0 0.0
    %2485 = vmatprep.subr.mxu0 0.0
    %2486 = vmatpush1.msra.mxu0 0.0
    %2487 = vmatprep.subr.mxu0 0.0
    %2488 = vmatpush1.msra.mxu0 0.0
    %2489 = vmatprep.subr.mxu0 0.0
    %2490 = vmatpush1.msra.mxu0 0.0
    %2491 = vmatprep.subr.mxu0 0.0
    %2492 = vmatpush1.msra.mxu0 0.0
    %2493 = vmatprep.subr.mxu0 0.0
    %2494 = vmatpush1.msra.mxu0 0.0
    %2495 = vmatprep.subr.mxu0 0.0
    %2496 = vmatpush1.msra.mxu0 0.0
    %2497 = vmatprep.subr.mxu0 0.0
    %2498 = vmatpush1.msra.mxu0 0.0
    %2499 = vmatprep.subr.mxu0 0.0
    %2500 = vmatpush1.msra.mxu0 0.0
    %2501 = vmatprep.subr.mxu0 0.0
    %2502 = vmatpush1.msra.mxu0 0.0
    %2503 = vmatprep.subr.mxu0 0.0
    %2504 = vmatpush1.msra.mxu0 0.0
    %2505 = vmatprep.subr.mxu0 0.0
    %2506 = vmatpush1.msra.mxu0 0.0
    %2507 = vmatprep.subr.mxu0 0.0
    %2508 = vmatpush1.msra.mxu0 0.0
    %2509 = vmatprep.subr.mxu0 0.0
    %2510 = vmatpush1.msra.mxu0 0.0
    %2511 = vmatprep.subr.mxu0 0.0
    %2512 = vmatpush1.msra.mxu0 0.0
    %2513 = vmatprep.subr.mxu0 0.0
    %2514 = vmatpush1.msra.mxu0 0.0
    %2515 = vmatprep.subr.mxu0 0.0
    %2516 = vmatpush1.msra.mxu0 0.0
    %2517 = vmatprep.subr.mxu0 0.0
    %2518 = vmatpush1.msra.mxu0 0.0
    %2519 = vmatprep.subr.mxu0 0.0
    %2520 = vmatpush1.msra.mxu0 0.0
    %2521 = vmatprep.subr.mxu0 0.0
    %2522 = vmatpush1.msra.mxu0 0.0
    %2523 = vmatprep.subr.mxu0 0.0
    %2524 = vmatpush1.msra.mxu0 0.0
    %2525 = vmatprep.subr.mxu0 0.0
    %2526 = vmatpush1.msra.mxu0 0.0
    %2527 = vmatprep.subr.mxu0 0.0
    %2528 = vmatpush1.msra.mxu0 0.0
    %2529 = vmatprep.subr.mxu0 0.0
    %2530 = vmatpush1.msra.mxu0 0.0
    %2531 = vmatprep.subr.mxu0 0.0
    %2532 = vmatpush1.msra.mxu0 0.0
    %2533 = vmatprep.mubr.f32.mxu0 0.0
    %2534 = vmatmul.mubr.f32.gmra.mrb[0].mxu0 %v2342
    %v2535 = vpop.f32.mrb[0].mxu0
    %v2536 = vadd.f32 %v2309, %v2535
    %v2537 = vpop.f32.mrb[0].mxu0
    %2538 = vmatprep.mubr.f32.mxu0 0.0
    %2539 = vmatmul.mubr.f32.gmra.mrb[0].mxu0 %v2345
    %v2540 = vpop.f32.mrb[0].mxu0
    %v2541 = vadd.f32 %v2314, %v2540
    %v2542 = vpop.f32.mrb[0].mxu0
    %2543 = vmatprep.mubr.f32.mxu0 0.0
    %2544 = vmatmul.mubr.f32.gmra.mrb[0].mxu0 %v2348
    %v2545 = vpop.f32.mrb[0].mxu0
    %v2546 = vadd.f32 %v2319, %v2545
    %v2547 = vpop.f32.mrb[0].mxu0
    %2548 = vmatprep.mubr.f32.mxu0 0.0
    %2549 = vmatmul.mubr.f32.gmra.mrb[0].mxu0 %v2351
    %v2550 = vpop.f32.mrb[0].mxu0
    %v2551 = vadd.f32 %v2324, %v2550
    %v2552 = vpop.f32.mrb[0].mxu0
    %2553 = vmatprep.mubr.f32.mxu0 0.0
    %2554 = vmatmul.mubr.f32.gmra.mrb[0].mxu0 %v2354
    %v2555 = vpop.f32.mrb[0].mxu0
    %v2556 = vadd.f32 %v2329, %v2555
    %v2557 = vpop.f32.mrb[0].mxu0
    %2558 = vmatprep.mubr.f32.mxu0 0.0
    %2559 = vmatmul.mubr.f32.gmra.mrb[0].mxu0 %v2357
    %v2560 = vpop.f32.mrb[0].mxu0
    %v2561 = vadd.f32 %v2334, %v2560
    %v2562 = vpop.f32.mrb[0].mxu0
    %2563 = vmatprep.mubr.f32.mxu0 0.0
    %2564 = vmatmul.mubr.f32.gmra.mrb[0].mxu0 %v2360
    %v2565 = vpop.f32.mrb[0].mxu0
    %v2566 = vadd.f32 %v2339, %v2565
    %v2567 = vpop.f32.mrb[0].mxu0
    %2568 = vdwg.mxu0
    %v2569 = vtanh.pop %v2429
    %v2570 = vtanh.pop %v2431
    %v2571 = vtanh.pop %v2536
    %v2572 = vtanh.pop %v2435
    %v2573 = vtanh.pop %v2437
    %v2574 = vtanh.pop %v2541
    %v2575 = vtanh.pop %v2441
    %v2576 = vtanh.pop %v2443
    %v2577 = vtanh.pop %v2546
    %v2578 = vtanh.pop %v2447
    %v2579 = vtanh.pop %v2449
    %v2580 = vtanh.pop %v2551
    %v2581 = vtanh.pop %v2453
    %v2582 = vtanh.pop %v2455
    %v2583 = vtanh.pop %v2556
    %v2584 = vtanh.pop %v2459
    %v2585 = vtanh.pop %v2461
    %v2586 = vtanh.pop %v2561
    %v2587 = vtanh.pop %v2465
    %v2588 = vtanh.pop %v2467
    %v2589 = vtanh.pop %v2566
    %v2590 = vsub.f32 1.0, %v2569
    %v2591 = vsub.f32 1.0, %v2570
    %v2592 = vsub.f32 1.0, %v2571
    %v2593 = vsub.f32 1.0, %v2572
    %v2594 = vsub.f32 1.0, %v2573
    %v2595 = vsub.f32 1.0, %v2574
    %v2596 = vsub.f32 1.0, %v2575
    %v2597 = vsub.f32 1.0, %v2576
    %v2598 = vsub.f32 1.0, %v2577
    %v2599 = vsub.f32 1.0, %v2578
    %v2600 = vsub.f32 1.0, %v2579
    %v2601 = vsub.f32 1.0, %v2580
    %v2602 = vsub.f32 1.0, %v2581
    %v2603 = vsub.f32 1.0, %v2582
    %v2604 = vsub.f32 1.0, %v2583
    %v2605 = vsub.f32 1.0, %v2584
    %v2606 = vsub.f32 1.0, %v2585
    %v2607 = vsub.f32 1.0, %v2586
    %v2608 = vsub.f32 1.0, %v2587
    %v2609 = vsub.f32 1.0, %v2588
    %v2610 = vsub.f32 1.0, %v2589
    %v2611 = vmul.f32 %v2590, %v1844
    %v2612 = vmul.f32 %v2591, %v1845
    %v2613 = vmul.f32 %v2592, %v1846
    %v2614 = vmul.f32 %v2593, %v1847
    %v2615 = vmul.f32 %v2594, %v1848
    %v2616 = vmul.f32 %v2595, %v1849
    %v2617 = vmul.f32 %v2596, %v1850
    %v2618 = vmul.f32 %v2597, %v1851
    %v2619 = vmul.f32 %v2598, %v1852
    %v2620 = vmul.f32 %v2599, %v1853
    %v2621 = vmul.f32 %v2600, %v1854
    %v2622 = vmul.f32 %v2601, %v1855
    %v2623 = vmul.f32 %v2602, %v1856
    %v2624 = vmul.f32 %v2603, %v1857
    %v2625 = vmul.f32 %v2604, %v1858
    %v2626 = vmul.f32 %v2605, %v1859
    %v2627 = vmul.f32 %v2606, %v1860
    %v2628 = vmul.f32 %v2607, %v1861
    %v2629 = vmul.f32 %v2608, %v1862
    %v2630 = vmul.f32 %v2609, %v1863
    %v2631 = vmul.f32 %v2610, %v1864
    %v2632 = vmul.f32 %v2569, %v1865
    %v2633 = vmul.f32 %v2570, %v1866
    %v2634 = vmul.f32 %v2571, %v1867
    %v2635 = vmul.f32 %v2572, %v1868
    %v2636 = vmul.f32 %v2573, %v1869
    %v2637 = vmul.f32 %v2574, %v1870
    %v2638 = vmul.f32 %v2575, %v1871
    %v2639 = vmul.f32 %v2576, %v1872
    %v2640 = vmul.f32 %v2577, %v1873
    %v2641 = vmul.f32 %v2578, %v1874
    %v2642 = vmul.f32 %v2579, %v1875
    %v2643 = vmul.f32 %v2580, %v1876
    %v2644 = vmul.f32 %v2581, %v1877
    %v2645 = vmul.f32 %v2582, %v1878
    %v2646 = vmul.f32 %v2583, %v1879
    %v2647 = vmul.f32 %v2584, %v1880
    %v2648 = vmul.f32 %v2585, %v1881
    %v2649 = vmul.f32 %v2586, %v1882
    %v2650 = vmul.f32 %v2587, %v1883
    %v2651 = vmul.f32 %v2588, %v1884
    %v2652 = vmul.f32 %v2589, %v1885
    %v2653 = vadd.f32 %v2611, %v2632
    %v2654 = vadd.f32 %v2612, %v2633
    %v2655 = vadd.f32 %v2613, %v2634
    %v2656 = vadd.f32 %v2614, %v2635
    %v2657 = vadd.f32 %v2615, %v2636
    %v2658 = vadd.f32 %v2616, %v2637
    %v2659 = vadd.f32 %v2617, %v2638
    %v2660 = vadd.f32 %v2618, %v2639
    %v2661 = vadd.f32 %v2619, %v2640
    %v2662 = vadd.f32 %v2620, %v2641
    %v2663 = vadd.f32 %v2621, %v2642
    %v2664 = vadd.f32 %v2622, %v2643
    %v2665 = vadd.f32 %v2623, %v2644
    %v2666 = vadd.f32 %v2624, %v2645
    %v2667 = vadd.f32 %v2625, %v2646
    %v2668 = vadd.f32 %v2626, %v2647
    %v2669 = vadd.f32 %v2627, %v2648
    %v2670 = vadd.f32 %v2628, %v2649
    %v2671 = vadd.f32 %v2629, %v2650
    %v2672 = vadd.f32 %v2630, %v2651
    %v2673 = vadd.f32 %v2631, %v2652
    %s2674 = scalar_lea.vmem %s2, 112
    %v2675 = vld [vmem:[%s2674] sm:$0xff]
    %v2676 = vld [vmem:[%s2674 + $0x8] sm:$0xff]
    %v2677 = vld [vmem:[%s2674 + $0x10] sm:$0xff]
    %v2678 = vld [vmem:[%s2674 + $0x18] sm:$0xff]
    %v2679 = vld [vmem:[%s2674 + $0x20] sm:$0xff]
    %v2680 = vld [vmem:[%s2674 + $0x28] sm:$0xff]
    %v2681 = vld [vmem:[%s2674 + $0x30] sm:$0xff]
    %s2682 = scalar_lea.vmem %s3, 112
    %v2683 = vld [vmem:[%s2682] sm:$0xff]
    %v2684 = vld [vmem:[%s2682 + $0x8] sm:$0xff]
    %v2685 = vld [vmem:[%s2682 + $0x10] sm:$0xff]
    %v2686 = vld [vmem:[%s2682 + $0x18] sm:$0xff]
    %v2687 = vld [vmem:[%s2682 + $0x20] sm:$0xff]
    %v2688 = vld [vmem:[%s2682 + $0x28] sm:$0xff]
    %v2689 = vld [vmem:[%s2682 + $0x30] sm:$0xff]
    %2691 = vset.pattern.permute.xlu0 0
    %2692 = vperm.xlu0 %2691, %v2683
    %v2693 = vpop.permute.xlu0 %2692
    %2696 = vset.pattern.permute.xlu0 0
    %2697 = vperm.xlu0 %2696, %v2684
    %v2698 = vpop.permute.xlu0 %2697
    %2701 = vset.pattern.permute.xlu0 0
    %2702 = vperm.xlu0 %2701, %v2685
    %v2703 = vpop.permute.xlu0 %2702
    %2706 = vset.pattern.permute.xlu0 0
    %2707 = vperm.xlu0 %2706, %v2686
    %v2708 = vpop.permute.xlu0 %2707
    %2711 = vset.pattern.permute.xlu0 0
    %2712 = vperm.xlu0 %2711, %v2687
    %v2713 = vpop.permute.xlu0 %2712
    %2716 = vset.pattern.permute.xlu0 0
    %2717 = vperm.xlu0 %2716, %v2688
    %v2718 = vpop.permute.xlu0 %2717
    %2721 = vset.pattern.permute.xlu0 0
    %2722 = vperm.xlu0 %2721, %v2689
    %v2723 = vpop.permute.xlu0 %2722
    %v2726 = vsel %vm1956, %v2675, 0
    %v2729 = vsel %vm1956, %v2676, 0
    %v2732 = vsel %vm1956, %v2677, 0
    %v2735 = vsel %vm1956, %v2678, 0
    %v2738 = vsel %vm1956, %v2679, 0
    %v2741 = vsel %vm1956, %v2680, 0
    %v2744 = vsel %vm1956, %v2681, 0
    %2746 = vmatprep.subr.mxu0 %v2654
    %2747 = vmatpush1.msra.mxu0 %v2653
    %2748 = vmatprep.subr.mxu0 %v2657
    %2749 = vmatpush1.msra.mxu0 %v2656
    %2750 = vmatprep.subr.mxu0 %v2660
    %2751 = vmatpush1.msra.mxu0 %v2659
    %2752 = vmatprep.subr.mxu0 %v2663
    %2753 = vmatpush1.msra.mxu0 %v2662
    %2754 = vmatprep.subr.mxu0 %v2666
    %2755 = vmatpush1.msra.mxu0 %v2665
    %2756 = vmatprep.subr.mxu0 %v2669
    %2757 = vmatpush1.msra.mxu0 %v2668
    %2758 = vmatprep.subr.mxu0 %v2672
    %2759 = vmatpush1.msra.mxu0 %v2671
    %2760 = vmatprep.subr.mxu0 0.0
    %2761 = vmatpush1.msra.mxu0 0.0
    %2762 = vmatprep.subr.mxu0 0.0
    %2763 = vmatpush1.msra.mxu0 0.0
    %2764 = vmatprep.subr.mxu0 0.0
    %2765 = vmatpush1.msra.mxu0 0.0
    %2766 = vmatprep.subr.mxu0 0.0
    %2767 = vmatpush1.msra.mxu0 0.0
    %2768 = vmatprep.subr.mxu0 0.0
    %2769 = vmatpush1.msra.mxu0 0.0
    %2770 = vmatprep.subr.mxu0 0.0
    %2771 = vmatpush1.msra.mxu0 0.0
    %2772 = vmatprep.subr.mxu0 0.0
    %2773 = vmatpush1.msra.mxu0 0.0
    %2774 = vmatprep.subr.mxu0 0.0
    %2775 = vmatpush1.msra.mxu0 0.0
    %2776 = vmatprep.subr.mxu0 0.0
    %2777 = vmatpush1.msra.mxu0 0.0
    %2778 = vmatprep.subr.mxu0 0.0
    %2779 = vmatpush1.msra.mxu0 0.0
    %2780 = vmatprep.subr.mxu0 0.0
    %2781 = vmatpush1.msra.mxu0 0.0
    %2782 = vmatprep.subr.mxu0 0.0
    %2783 = vmatpush1.msra.mxu0 0.0
    %2784 = vmatprep.subr.mxu0 0.0
    %2785 = vmatpush1.msra.mxu0 0.0
    %2786 = vmatprep.subr.mxu0 0.0
    %2787 = vmatpush1.msra.mxu0 0.0
    %2788 = vmatprep.subr.mxu0 0.0
    %2789 = vmatpush1.msra.mxu0 0.0
    %2790 = vmatprep.subr.mxu0 0.0
    %2791 = vmatpush1.msra.mxu0 0.0
    %2792 = vmatprep.subr.mxu0 0.0
    %2793 = vmatpush1.msra.mxu0 0.0
    %2794 = vmatprep.subr.mxu0 0.0
    %2795 = vmatpush1.msra.mxu0 0.0
    %2796 = vmatprep.subr.mxu0 0.0
    %2797 = vmatpush1.msra.mxu0 0.0
    %2798 = vmatprep.subr.mxu0 0.0
    %2799 = vmatpush1.msra.mxu0 0.0
    %2800 = vmatprep.subr.mxu0 0.0
    %2801 = vmatpush1.msra.mxu0 0.0
    %2802 = vmatprep.subr.mxu0 0.0
    %2803 = vmatpush1.msra.mxu0 0.0
    %2804 = vmatprep.subr.mxu0 0.0
    %2805 = vmatpush1.msra.mxu0 0.0
    %2806 = vmatprep.subr.mxu0 0.0
    %2807 = vmatpush1.msra.mxu0 0.0
    %2808 = vmatprep.subr.mxu0 0.0
    %2809 = vmatpush1.msra.mxu0 0.0
    %2810 = vmatprep.mubr.f32.mxu0 0.0
    %2811 = vmatmul.mubr.f32.gmra.mrb[0].mxu0 %v2726
    %v2812 = vpop.f32.mrb[0].mxu0
    %v2813 = vadd.f32 %v2693, %v2812
    %v2814 = vpop.f32.mrb[0].mxu0
    %v2815 = vadd.f32 %v2693, %v2814
    %2816 = vmatprep.mubr.f32.mxu0 0.0
    %2817 = vmatmul.mubr.f32.gmra.mrb[0].mxu0 %v2729
    %v2818 = vpop.f32.mrb[0].mxu0
    %v2819 = vadd.f32 %v2698, %v2818
    %v2820 = vpop.f32.mrb[0].mxu0
    %v2821 = vadd.f32 %v2698, %v2820
    %2822 = vmatprep.mubr.f32.mxu0 0.0
    %2823 = vmatmul.mubr.f32.gmra.mrb[0].mxu0 %v2732
    %v2824 = vpop.f32.mrb[0].mxu0
    %v2825 = vadd.f32 %v2703, %v2824
    %v2826 = vpop.f32.mrb[0].mxu0
    %v2827 = vadd.f32 %v2703, %v2826
    %2828 = vmatprep.mubr.f32.mxu0 0.0
    %2829 = vmatmul.mubr.f32.gmra.mrb[0].mxu0 %v2735
    %v2830 = vpop.f32.mrb[0].mxu0
    %v2831 = vadd.f32 %v2708, %v2830
    %v2832 = vpop.f32.mrb[0].mxu0
    %v2833 = vadd.f32 %v2708, %v2832
    %2834 = vmatprep.mubr.f32.mxu0 0.0
    %2835 = vmatmul.mubr.f32.gmra.mrb[0].mxu0 %v2738
    %v2836 = vpop.f32.mrb[0].mxu0
    %v2837 = vadd.f32 %v2713, %v2836
    %v2838 = vpop.f32.mrb[0].mxu0
    %v2839 = vadd.f32 %v2713, %v2838
    %2840 = vmatprep.mubr.f32.mxu0 0.0
    %2841 = vmatmul.mubr.f32.gmra.mrb[0].mxu0 %v2741
    %v2842 = vpop.f32.mrb[0].mxu0
    %v2843 = vadd.f32 %v2718, %v2842
    %v2844 = vpop.f32.mrb[0].mxu0
    %v2845 = vadd.f32 %v2718, %v2844
    %2846 = vmatprep.mubr.f32.mxu0 0.0
    %2847 = vmatmul.mubr.f32.gmra.mrb[0].mxu0 %v2744
    %v2848 = vpop.f32.mrb[0].mxu0
    %v2849 = vadd.f32 %v2723, %v2848
    %v2850 = vpop.f32.mrb[0].mxu0
    %v2851 = vadd.f32 %v2723, %v2850
    %2852 = vdwg.mxu0
    %2853 = vmatprep.subr.mxu0 0.0
    %2854 = vmatpush1.msra.mxu0 %v2655
    %2855 = vmatprep.subr.mxu0 0.0
    %2856 = vmatpush1.msra.mxu0 %v2658
    %2857 = vmatprep.subr.mxu0 0.0
    %2858 = vmatpush1.msra.mxu0 %v2661
    %2859 = vmatprep.subr.mxu0 0.0
    %2860 = vmatpush1.msra.mxu0 %v2664
    %2861 = vmatprep.subr.mxu0 0.0
    %2862 = vmatpush1.msra.mxu0 %v2667
    %2863 = vmatprep.subr.mxu0 0.0
    %2864 = vmatpush1.msra.mxu0 %v2670
    %2865 = vmatprep.subr.mxu0 0.0
    %2866 = vmatpush1.msra.mxu0 %v2673
    %2867 = vmatprep.subr.mxu0 0.0
    %2868 = vmatpush1.msra.mxu0 0.0
    %2869 = vmatprep.subr.mxu0 0.0
    %2870 = vmatpush1.msra.mxu0 0.0
    %2871 = vmatprep.subr.mxu0 0.0
    %2872 = vmatpush1.msra.mxu0 0.0
    %2873 = vmatprep.subr.mxu0 0.0
    %2874 = vmatpush1.msra.mxu0 0.0
    %2875 = vmatprep.subr.mxu0 0.0
    %2876 = vmatpush1.msra.mxu0 0.0
    %2877 = vmatprep.subr.mxu0 0.0
    %2878 = vmatpush1.msra.mxu0 0.0
    %2879 = vmatprep.subr.mxu0 0.0
    %2880 = vmatpush1.msra.mxu0 0.0
    %2881 = vmatprep.subr.mxu0 0.0
    %2882 = vmatpush1.msra.mxu0 0.0
    %2883 = vmatprep.subr.mxu0 0.0
    %2884 = vmatpush1.msra.mxu0 0.0
    %2885 = vmatprep.subr.mxu0 0.0
    %2886 = vmatpush1.msra.mxu0 0.0
    %2887 = vmatprep.subr.mxu0 0.0
    %2888 = vmatpush1.msra.mxu0 0.0
    %2889 = vmatprep.subr.mxu0 0.0
    %2890 = vmatpush1.msra.mxu0 0.0
    %2891 = vmatprep.subr.mxu0 0.0
    %2892 = vmatpush1.msra.mxu0 0.0
    %2893 = vmatprep.subr.mxu0 0.0
    %2894 = vmatpush1.msra.mxu0 0.0
    %2895 = vmatprep.subr.mxu0 0.0
    %2896 = vmatpush1.msra.mxu0 0.0
    %2897 = vmatprep.subr.mxu0 0.0
    %2898 = vmatpush1.msra.mxu0 0.0
    %2899 = vmatprep.subr.mxu0 0.0
    %2900 = vmatpush1.msra.mxu0 0.0
    %2901 = vmatprep.subr.mxu0 0.0
    %2902 = vmatpush1.msra.mxu0 0.0
    %2903 = vmatprep.subr.mxu0 0.0
    %2904 = vmatpush1.msra.mxu0 0.0
    %2905 = vmatprep.subr.mxu0 0.0
    %2906 = vmatpush1.msra.mxu0 0.0
    %2907 = vmatprep.subr.mxu0 0.0
    %2908 = vmatpush1.msra.mxu0 0.0
    %2909 = vmatprep.subr.mxu0 0.0
    %2910 = vmatpush1.msra.mxu0 0.0
    %2911 = vmatprep.subr.mxu0 0.0
    %2912 = vmatpush1.msra.mxu0 0.0
    %2913 = vmatprep.subr.mxu0 0.0
    %2914 = vmatpush1.msra.mxu0 0.0
    %2915 = vmatprep.subr.mxu0 0.0
    %2916 = vmatpush1.msra.mxu0 0.0
    %2917 = vmatprep.mubr.f32.mxu0 0.0
    %2918 = vmatmul.mubr.f32.gmra.mrb[0].mxu0 %v2726
    %v2919 = vpop.f32.mrb[0].mxu0
    %v2920 = vadd.f32 %v2693, %v2919
    %v2921 = vpop.f32.mrb[0].mxu0
    %2922 = vmatprep.mubr.f32.mxu0 0.0
    %2923 = vmatmul.mubr.f32.gmra.mrb[0].mxu0 %v2729
    %v2924 = vpop.f32.mrb[0].mxu0
    %v2925 = vadd.f32 %v2698, %v2924
    %v2926 = vpop.f32.mrb[0].mxu0
    %2927 = vmatprep.mubr.f32.mxu0 0.0
    %2928 = vmatmul.mubr.f32.gmra.mrb[0].mxu0 %v2732
    %v2929 = vpop.f32.mrb[0].mxu0
    %v2930 = vadd.f32 %v2703, %v2929
    %v2931 = vpop.f32.mrb[0].mxu0
    %2932 = vmatprep.mubr.f32.mxu0 0.0
    %2933 = vmatmul.mubr.f32.gmra.mrb[0].mxu0 %v2735
    %v2934 = vpop.f32.mrb[0].mxu0
    %v2935 = vadd.f32 %v2708, %v2934
    %v2936 = vpop.f32.mrb[0].mxu0
    %2937 = vmatprep.mubr.f32.mxu0 0.0
    %2938 = vmatmul.mubr.f32.gmra.mrb[0].mxu0 %v2738
    %v2939 = vpop.f32.mrb[0].mxu0
    %v2940 = vadd.f32 %v2713, %v2939
    %v2941 = vpop.f32.mrb[0].mxu0
    %2942 = vmatprep.mubr.f32.mxu0 0.0
    %2943 = vmatmul.mubr.f32.gmra.mrb[0].mxu0 %v2741
    %v2944 = vpop.f32.mrb[0].mxu0
    %v2945 = vadd.f32 %v2718, %v2944
    %v2946 = vpop.f32.mrb[0].mxu0
    %2947 = vmatprep.mubr.f32.mxu0 0.0
    %2948 = vmatmul.mubr.f32.gmra.mrb[0].mxu0 %v2744
    %v2949 = vpop.f32.mrb[0].mxu0
    %v2950 = vadd.f32 %v2723, %v2949
    %v2951 = vpop.f32.mrb[0].mxu0
    %2952 = vdwg.mxu0
    %v2953 = vtanh.pop %v2813
    %v2954 = vtanh.pop %v2815
    %v2955 = vtanh.pop %v2920
    %v2956 = vtanh.pop %v2819
    %v2957 = vtanh.pop %v2821
    %v2958 = vtanh.pop %v2925
    %v2959 = vtanh.pop %v2825
    %v2960 = vtanh.pop %v2827
    %v2961 = vtanh.pop %v2930
    %v2962 = vtanh.pop %v2831
    %v2963 = vtanh.pop %v2833
    %v2964 = vtanh.pop %v2935
    %v2965 = vtanh.pop %v2837
    %v2966 = vtanh.pop %v2839
    %v2967 = vtanh.pop %v2940
    %v2968 = vtanh.pop %v2843
    %v2969 = vtanh.pop %v2845
    %v2970 = vtanh.pop %v2945
    %v2971 = vtanh.pop %v2849
    %v2972 = vtanh.pop %v2851
    %v2973 = vtanh.pop %v2950
    %v2974 = vsub.f32 1.0, %v2953
    %v2975 = vsub.f32 1.0, %v2954
    %v2976 = vsub.f32 1.0, %v2955
    %v2977 = vsub.f32 1.0, %v2956
    %v2978 = vsub.f32 1.0, %v2957
    %v2979 = vsub.f32 1.0, %v2958
    %v2980 = vsub.f32 1.0, %v2959
    %v2981 = vsub.f32 1.0, %v2960
    %v2982 = vsub.f32 1.0, %v2961
    %v2983 = vsub.f32 1.0, %v2962
    %v2984 = vsub.f32 1.0, %v2963
    %v2985 = vsub.f32 1.0, %v2964
    %v2986 = vsub.f32 1.0, %v2965
    %v2987 = vsub.f32 1.0, %v2966
    %v2988 = vsub.f32 1.0, %v2967
    %v2989 = vsub.f32 1.0, %v2968
    %v2990 = vsub.f32 1.0, %v2969
    %v2991 = vsub.f32 1.0, %v2970
    %v2992 = vsub.f32 1.0, %v2971
    %v2993 = vsub.f32 1.0, %v2972
    %v2994 = vsub.f32 1.0, %v2973
    %v2995 = vmul.f32 %v2974, %v1844
    %v2996 = vmul.f32 %v2975, %v1845
    %v2997 = vmul.f32 %v2976, %v1846
    %v2998 = vmul.f32 %v2977, %v1847
    %v2999 = vmul.f32 %v2978, %v1848
    %v3000 = vmul.f32 %v2979, %v1849
    %v3001 = vmul.f32 %v2980, %v1850
    %v3002 = vmul.f32 %v2981, %v1851
    %v3003 = vmul.f32 %v2982, %v1852
    %v3004 = vmul.f32 %v2983, %v1853
    %v3005 = vmul.f32 %v2984, %v1854
    %v3006 = vmul.f32 %v2985, %v1855
    %v3007 = vmul.f32 %v2986, %v1856
    %v3008 = vmul.f32 %v2987, %v1857
    %v3009 = vmul.f32 %v2988, %v1858
    %v3010 = vmul.f32 %v2989, %v1859
    %v3011 = vmul.f32 %v2990, %v1860
    %v3012 = vmul.f32 %v2991, %v1861
    %v3013 = vmul.f32 %v2992, %v1862
    %v3014 = vmul.f32 %v2993, %v1863
    %v3015 = vmul.f32 %v2994, %v1864
    %v3016 = vmul.f32 %v2953, %v1865
    %v3017 = vmul.f32 %v2954, %v1866
    %v3018 = vmul.f32 %v2955, %v1867
    %v3019 = vmul.f32 %v2956, %v1868
    %v3020 = vmul.f32 %v2957, %v1869
    %v3021 = vmul.f32 %v2958, %v1870
    %v3022 = vmul.f32 %v2959, %v1871
    %v3023 = vmul.f32 %v2960, %v1872
    %v3024 = vmul.f32 %v2961, %v1873
    %v3025 = vmul.f32 %v2962, %v1874
    %v3026 = vmul.f32 %v2963, %v1875
    %v3027 = vmul.f32 %v2964, %v1876
    %v3028 = vmul.f32 %v2965, %v1877
    %v3029 = vmul.f32 %v2966, %v1878
    %v3030 = vmul.f32 %v2967, %v1879
    %v3031 = vmul.f32 %v2968, %v1880
    %v3032 = vmul.f32 %v2969, %v1881
    %v3033 = vmul.f32 %v2970, %v1882
    %v3034 = vmul.f32 %v2971, %v1883
    %v3035 = vmul.f32 %v2972, %v1884
    %v3036 = vmul.f32 %v2973, %v1885
    %v3037 = vadd.f32 %v2995, %v3016
    %v3038 = vadd.f32 %v2996, %v3017
    %v3039 = vadd.f32 %v2997, %v3018
    %v3040 = vadd.f32 %v2998, %v3019
    %v3041 = vadd.f32 %v2999, %v3020
    %v3042 = vadd.f32 %v3000, %v3021
    %v3043 = vadd.f32 %v3001, %v3022
    %v3044 = vadd.f32 %v3002, %v3023
    %v3045 = vadd.f32 %v3003, %v3024
    %v3046 = vadd.f32 %v3004, %v3025
    %v3047 = vadd.f32 %v3005, %v3026
    %v3048 = vadd.f32 %v3006, %v3027
    %v3049 = vadd.f32 %v3007, %v3028
    %v3050 = vadd.f32 %v3008, %v3029
    %v3051 = vadd.f32 %v3009, %v3030
    %v3052 = vadd.f32 %v3010, %v3031
    %v3053 = vadd.f32 %v3011, %v3032
    %v3054 = vadd.f32 %v3012, %v3033
    %v3055 = vadd.f32 %v3013, %v3034
    %v3056 = vadd.f32 %v3014, %v3035
    %v3057 = vadd.f32 %v3015, %v3036
    %s3058 = scalar_lea.vmem %s2, 168
    %v3059 = vld [vmem:[%s3058] sm:$0xff]
    %v3060 = vld [vmem:[%s3058 + $0x8] sm:$0xff]
    %v3061 = vld [vmem:[%s3058 + $0x10] sm:$0xff]
    %v3062 = vld [vmem:[%s3058 + $0x18] sm:$0xff]
    %v3063 = vld [vmem:[%s3058 + $0x20] sm:$0xff]
    %v3064 = vld [vmem:[%s3058 + $0x28] sm:$0xff]
    %v3065 = vld [vmem:[%s3058 + $0x30] sm:$0xff]
    %s3066 = scalar_lea.vmem %s3, 168
    %v3067 = vld [vmem:[%s3066] sm:$0xff]
    %v3068 = vld [vmem:[%s3066 + $0x8] sm:$0xff]
    %v3069 = vld [vmem:[%s3066 + $0x10] sm:$0xff]
    %v3070 = vld [vmem:[%s3066 + $0x18] sm:$0xff]
    %v3071 = vld [vmem:[%s3066 + $0x20] sm:$0xff]
    %v3072 = vld [vmem:[%s3066 + $0x28] sm:$0xff]
    %v3073 = vld [vmem:[%s3066 + $0x30] sm:$0xff]
    %3075 = vset.pattern.permute.xlu0 0
    %3076 = vperm.xlu0 %3075, %v3067
    %v3077 = vpop.permute.xlu0 %3076
    %3080 = vset.pattern.permute.xlu0 0
    %3081 = vperm.xlu0 %3080, %v3068
    %v3082 = vpop.permute.xlu0 %3081
    %3085 = vset.pattern.permute.xlu0 0
    %3086 = vperm.xlu0 %3085, %v3069
    %v3087 = vpop.permute.xlu0 %3086
    %3090 = vset.pattern.permute.xlu0 0
    %3091 = vperm.xlu0 %3090, %v3070
    %v3092 = vpop.permute.xlu0 %3091
    %3095 = vset.pattern.permute.xlu0 0
    %3096 = vperm.xlu0 %3095, %v3071
    %v3097 = vpop.permute.xlu0 %3096
    %3100 = vset.pattern.permute.xlu0 0
    %3101 = vperm.xlu0 %3100, %v3072
    %v3102 = vpop.permute.xlu0 %3101
    %3105 = vset.pattern.permute.xlu0 0
    %3106 = vperm.xlu0 %3105, %v3073
    %v3107 = vpop.permute.xlu0 %3106
    %v3110 = vsel %vm1956, %v3059, 0
    %v3113 = vsel %vm1956, %v3060, 0
    %v3116 = vsel %vm1956, %v3061, 0
    %v3119 = vsel %vm1956, %v3062, 0
    %v3122 = vsel %vm1956, %v3063, 0
    %v3125 = vsel %vm1956, %v3064, 0
    %v3128 = vsel %vm1956, %v3065, 0
    %3130 = vmatprep.subr.mxu0 %v3038
    %3131 = vmatpush1.msra.mxu0 %v3037
    %3132 = vmatprep.subr.mxu0 %v3041
    %3133 = vmatpush1.msra.mxu0 %v3040
    %3134 = vmatprep.subr.mxu0 %v3044
    %3135 = vmatpush1.msra.mxu0 %v3043
    %3136 = vmatprep.subr.mxu0 %v3047
    %3137 = vmatpush1.msra.mxu0 %v3046
    %3138 = vmatprep.subr.mxu0 %v3050
    %3139 = vmatpush1.msra.mxu0 %v3049
    %3140 = vmatprep.subr.mxu0 %v3053
    %3141 = vmatpush1.msra.mxu0 %v3052
    %3142 = vmatprep.subr.mxu0 %v3056
    %3143 = vmatpush1.msra.mxu0 %v3055
    %3144 = vmatprep.subr.mxu0 0.0
    %3145 = vmatpush1.msra.mxu0 0.0
    %3146 = vmatprep.subr.mxu0 0.0
    %3147 = vmatpush1.msra.mxu0 0.0
    %3148 = vmatprep.subr.mxu0 0.0
    %3149 = vmatpush1.msra.mxu0 0.0
    %3150 = vmatprep.subr.mxu0 0.0
    %3151 = vmatpush1.msra.mxu0 0.0
    %3152 = vmatprep.subr.mxu0 0.0
    %3153 = vmatpush1.msra.mxu0 0.0
    %3154 = vmatprep.subr.mxu0 0.0
    %3155 = vmatpush1.msra.mxu0 0.0
    %3156 = vmatprep.subr.mxu0 0.0
    %3157 = vmatpush1.msra.mxu0 0.0
    %3158 = vmatprep.subr.mxu0 0.0
    %3159 = vmatpush1.msra.mxu0 0.0
    %3160 = vmatprep.subr.mxu0 0.0
    %3161 = vmatpush1.msra.mxu0 0.0
    %3162 = vmatprep.subr.mxu0 0.0
    %3163 = vmatpush1.msra.mxu0 0.0
    %3164 = vmatprep.subr.mxu0 0.0
    %3165 = vmatpush1.msra.mxu0 0.0
    %3166 = vmatprep.subr.mxu0 0.0
    %3167 = vmatpush1.msra.mxu0 0.0
    %3168 = vmatprep.subr.mxu0 0.0
    %3169 = vmatpush1.msra.mxu0 0.0
    %3170 = vmatprep.subr.mxu0 0.0
    %3171 = vmatpush1.msra.mxu0 0.0
    %3172 = vmatprep.subr.mxu0 0.0
    %3173 = vmatpush1.msra.mxu0 0.0
    %3174 = vmatprep.subr.mxu0 0.0
    %3175 = vmatpush1.msra.mxu0 0.0
    %3176 = vmatprep.subr.mxu0 0.0
    %3177 = vmatpush1.msra.mxu0 0.0
    %3178 = vmatprep.subr.mxu0 0.0
    %3179 = vmatpush1.msra.mxu0 0.0
    %3180 = vmatprep.subr.mxu0 0.0
    %3181 = vmatpush1.msra.mxu0 0.0
    %3182 = vmatprep.subr.mxu0 0.0
    %3183 = vmatpush1.msra.mxu0 0.0
    %3184 = vmatprep.subr.mxu0 0.0
    %3185 = vmatpush1.msra.mxu0 0.0
    %3186 = vmatprep.subr.mxu0 0.0
    %3187 = vmatpush1.msra.mxu0 0.0
    %3188 = vmatprep.subr.mxu0 0.0
    %3189 = vmatpush1.msra.mxu0 0.0
    %3190 = vmatprep.subr.mxu0 0.0
    %3191 = vmatpush1.msra.mxu0 0.0
    %3192 = vmatprep.subr.mxu0 0.0
    %3193 = vmatpush1.msra.mxu0 0.0
    %3194 = vmatprep.mubr.f32.mxu0 0.0
    %3195 = vmatmul.mubr.f32.gmra.mrb[0].mxu0 %v3110
    %v3196 = vpop.f32.mrb[0].mxu0
    %v3197 = vadd.f32 %v3077, %v3196
    %v3198 = vpop.f32.mrb[0].mxu0
    %v3199 = vadd.f32 %v3077, %v3198
    %3200 = vmatprep.mubr.f32.mxu0 0.0
    %3201 = vmatmul.mubr.f32.gmra.mrb[0].mxu0 %v3113
    %v3202 = vpop.f32.mrb[0].mxu0
    %v3203 = vadd.f32 %v3082, %v3202
    %v3204 = vpop.f32.mrb[0].mxu0
    %v3205 = vadd.f32 %v3082, %v3204
    %3206 = vmatprep.mubr.f32.mxu0 0.0
    %3207 = vmatmul.mubr.f32.gmra.mrb[0].mxu0 %v3116
    %v3208 = vpop.f32.mrb[0].mxu0
    %v3209 = vadd.f32 %v3087, %v3208
    %v3210 = vpop.f32.mrb[0].mxu0
    %v3211 = vadd.f32 %v3087, %v3210
    %3212 = vmatprep.mubr.f32.mxu0 0.0
    %3213 = vmatmul.mubr.f32.gmra.mrb[0].mxu0 %v3119
    %v3214 = vpop.f32.mrb[0].mxu0
    %v3215 = vadd.f32 %v3092, %v3214
    %v3216 = vpop.f32.mrb[0].mxu0
    %v3217 = vadd.f32 %v3092, %v3216
    %3218 = vmatprep.mubr.f32.mxu0 0.0
    %3219 = vmatmul.mubr.f32.gmra.mrb[0].mxu0 %v3122
    %v3220 = vpop.f32.mrb[0].mxu0
    %v3221 = vadd.f32 %v3097, %v3220
    %v3222 = vpop.f32.mrb[0].mxu0
    %v3223 = vadd.f32 %v3097, %v3222
    %3224 = vmatprep.mubr.f32.mxu0 0.0
    %3225 = vmatmul.mubr.f32.gmra.mrb[0].mxu0 %v3125
    %v3226 = vpop.f32.mrb[0].mxu0
    %v3227 = vadd.f32 %v3102, %v3226
    %v3228 = vpop.f32.mrb[0].mxu0
    %v3229 = vadd.f32 %v3102, %v3228
    %3230 = vmatprep.mubr.f32.mxu0 0.0
    %3231 = vmatmul.mubr.f32.gmra.mrb[0].mxu0 %v3128
    %v3232 = vpop.f32.mrb[0].mxu0
    %v3233 = vadd.f32 %v3107, %v3232
    %v3234 = vpop.f32.mrb[0].mxu0
    %v3235 = vadd.f32 %v3107, %v3234
    %3236 = vdwg.mxu0
    %3237 = vmatprep.subr.mxu0 0.0
    %3238 = vmatpush1.msra.mxu0 %v3039
    %3239 = vmatprep.subr.mxu0 0.0
    %3240 = vmatpush1.msra.mxu0 %v3042
    %3241 = vmatprep.subr.mxu0 0.0
    %3242 = vmatpush1.msra.mxu0 %v3045
    %3243 = vmatprep.subr.mxu0 0.0
    %3244 = vmatpush1.msra.mxu0 %v3048
    %3245 = vmatprep.subr.mxu0 0.0
    %3246 = vmatpush1.msra.mxu0 %v3051
    %3247 = vmatprep.subr.mxu0 0.0
    %3248 = vmatpush1.msra.mxu0 %v3054
    %3249 = vmatprep.subr.mxu0 0.0
    %3250 = vmatpush1.msra.mxu0 %v3057
    %3251 = vmatprep.subr.mxu0 0.0
    %3252 = vmatpush1.msra.mxu0 0.0
    %3253 = vmatprep.subr.mxu0 0.0
    %3254 = vmatpush1.msra.mxu0 0.0
    %3255 = vmatprep.subr.mxu0 0.0
    %3256 = vmatpush1.msra.mxu0 0.0
    %3257 = vmatprep.subr.mxu0 0.0
    %3258 = vmatpush1.msra.mxu0 0.0
    %3259 = vmatprep.subr.mxu0 0.0
    %3260 = vmatpush1.msra.mxu0 0.0
    %3261 = vmatprep.subr.mxu0 0.0
    %3262 = vmatpush1.msra.mxu0 0.0
    %3263 = vmatprep.subr.mxu0 0.0
    %3264 = vmatpush1.msra.mxu0 0.0
    %3265 = vmatprep.subr.mxu0 0.0
    %3266 = vmatpush1.msra.mxu0 0.0
    %3267 = vmatprep.subr.mxu0 0.0
    %3268 = vmatpush1.msra.mxu0 0.0
    %3269 = vmatprep.subr.mxu0 0.0
    %3270 = vmatpush1.msra.mxu0 0.0
    %3271 = vmatprep.subr.mxu0 0.0
    %3272 = vmatpush1.msra.mxu0 0.0
    %3273 = vmatprep.subr.mxu0 0.0
    %3274 = vmatpush1.msra.mxu0 0.0
    %3275 = vmatprep.subr.mxu0 0.0
    %3276 = vmatpush1.msra.mxu0 0.0
    %3277 = vmatprep.subr.mxu0 0.0
    %3278 = vmatpush1.msra.mxu0 0.0
    %3279 = vmatprep.subr.mxu0 0.0
    %3280 = vmatpush1.msra.mxu0 0.0
    %3281 = vmatprep.subr.mxu0 0.0
    %3282 = vmatpush1.msra.mxu0 0.0
    %3283 = vmatprep.subr.mxu0 0.0
    %3284 = vmatpush1.msra.mxu0 0.0
    %3285 = vmatprep.subr.mxu0 0.0
    %3286 = vmatpush1.msra.mxu0 0.0
    %3287 = vmatprep.subr.mxu0 0.0
    %3288 = vmatpush1.msra.mxu0 0.0
    %3289 = vmatprep.subr.mxu0 0.0
    %3290 = vmatpush1.msra.mxu0 0.0
    %3291 = vmatprep.subr.mxu0 0.0
    %3292 = vmatpush1.msra.mxu0 0.0
    %3293 = vmatprep.subr.mxu0 0.0
    %3294 = vmatpush1.msra.mxu0 0.0
    %3295 = vmatprep.subr.mxu0 0.0
    %3296 = vmatpush1.msra.mxu0 0.0
    %3297 = vmatprep.subr.mxu0 0.0
    %3298 = vmatpush1.msra.mxu0 0.0
    %3299 = vmatprep.subr.mxu0 0.0
    %3300 = vmatpush1.msra.mxu0 0.0
    %3301 = vmatprep.mubr.f32.mxu0 0.0
    %3302 = vmatmul.mubr.f32.gmra.mrb[0].mxu0 %v3110
    %v3303 = vpop.f32.mrb[0].mxu0
    %v3304 = vadd.f32 %v3077, %v3303
    %v3305 = vpop.f32.mrb[0].mxu0
    %3306 = vmatprep.mubr.f32.mxu0 0.0
    %3307 = vmatmul.mubr.f32.gmra.mrb[0].mxu0 %v3113
    %v3308 = vpop.f32.mrb[0].mxu0
    %v3309 = vadd.f32 %v3082, %v3308
    %v3310 = vpop.f32.mrb[0].mxu0
    %3311 = vmatprep.mubr.f32.mxu0 0.0
    %3312 = vmatmul.mubr.f32.gmra.mrb[0].mxu0 %v3116
    %v3313 = vpop.f32.mrb[0].mxu0
    %v3314 = vadd.f32 %v3087, %v3313
    %v3315 = vpop.f32.mrb[0].mxu0
    %3316 = vmatprep.mubr.f32.mxu0 0.0
    %3317 = vmatmul.mubr.f32.gmra.mrb[0].mxu0 %v3119
    %v3318 = vpop.f32.mrb[0].mxu0
    %v3319 = vadd.f32 %v3092, %v3318
    %v3320 = vpop.f32.mrb[0].mxu0
    %3321 = vmatprep.mubr.f32.mxu0 0.0
    %3322 = vmatmul.mubr.f32.gmra.mrb[0].mxu0 %v3122
    %v3323 = vpop.f32.mrb[0].mxu0
    %v3324 = vadd.f32 %v3097, %v3323
    %v3325 = vpop.f32.mrb[0].mxu0
    %3326 = vmatprep.mubr.f32.mxu0 0.0
    %3327 = vmatmul.mubr.f32.gmra.mrb[0].mxu0 %v3125
    %v3328 = vpop.f32.mrb[0].mxu0
    %v3329 = vadd.f32 %v3102, %v3328
    %v3330 = vpop.f32.mrb[0].mxu0
    %3331 = vmatprep.mubr.f32.mxu0 0.0
    %3332 = vmatmul.mubr.f32.gmra.mrb[0].mxu0 %v3128
    %v3333 = vpop.f32.mrb[0].mxu0
    %v3334 = vadd.f32 %v3107, %v3333
    %v3335 = vpop.f32.mrb[0].mxu0
    %3336 = vdwg.mxu0
    %v3337 = vtanh.pop %v3197
    %v3338 = vtanh.pop %v3199
    %v3339 = vtanh.pop %v3304
    %v3340 = vtanh.pop %v3203
    %v3341 = vtanh.pop %v3205
    %v3342 = vtanh.pop %v3309
    %v3343 = vtanh.pop %v3209
    %v3344 = vtanh.pop %v3211
    %v3345 = vtanh.pop %v3314
    %v3346 = vtanh.pop %v3215
    %v3347 = vtanh.pop %v3217
    %v3348 = vtanh.pop %v3319
    %v3349 = vtanh.pop %v3221
    %v3350 = vtanh.pop %v3223
    %v3351 = vtanh.pop %v3324
    %v3352 = vtanh.pop %v3227
    %v3353 = vtanh.pop %v3229
    %v3354 = vtanh.pop %v3329
    %v3355 = vtanh.pop %v3233
    %v3356 = vtanh.pop %v3235
    %v3357 = vtanh.pop %v3334
    %v3358 = vsub.f32 1.0, %v3337
    %v3359 = vsub.f32 1.0, %v3338
    %v3360 = vsub.f32 1.0, %v3339
    %v3361 = vsub.f32 1.0, %v3340
    %v3362 = vsub.f32 1.0, %v3341
    %v3363 = vsub.f32 1.0, %v3342
    %v3364 = vsub.f32 1.0, %v3343
    %v3365 = vsub.f32 1.0, %v3344
    %v3366 = vsub.f32 1.0, %v3345
    %v3367 = vsub.f32 1.0, %v3346
    %v3368 = vsub.f32 1.0, %v3347
    %v3369 = vsub.f32 1.0, %v3348
    %v3370 = vsub.f32 1.0, %v3349
    %v3371 = vsub.f32 1.0, %v3350
    %v3372 = vsub.f32 1.0, %v3351
    %v3373 = vsub.f32 1.0, %v3352
    %v3374 = vsub.f32 1.0, %v3353
    %v3375 = vsub.f32 1.0, %v3354
    %v3376 = vsub.f32 1.0, %v3355
    %v3377 = vsub.f32 1.0, %v3356
    %v3378 = vsub.f32 1.0, %v3357
    %v3379 = vmul.f32 %v3358, %v1844
    %v3380 = vmul.f32 %v3359, %v1845
    %v3381 = vmul.f32 %v3360, %v1846
    %v3382 = vmul.f32 %v3361, %v1847
    %v3383 = vmul.f32 %v3362, %v1848
    %v3384 = vmul.f32 %v3363, %v1849
    %v3385 = vmul.f32 %v3364, %v1850
    %v3386 = vmul.f32 %v3365, %v1851
    %v3387 = vmul.f32 %v3366, %v1852
    %v3388 = vmul.f32 %v3367, %v1853
    %v3389 = vmul.f32 %v3368, %v1854
    %v3390 = vmul.f32 %v3369, %v1855
    %v3391 = vmul.f32 %v3370, %v1856
    %v3392 = vmul.f32 %v3371, %v1857
    %v3393 = vmul.f32 %v3372, %v1858
    %v3394 = vmul.f32 %v3373, %v1859
    %v3395 = vmul.f32 %v3374, %v1860
    %v3396 = vmul.f32 %v3375, %v1861
    %v3397 = vmul.f32 %v3376, %v1862
    %v3398 = vmul.f32 %v3377, %v1863
    %v3399 = vmul.f32 %v3378, %v1864
    %v3400 = vmul.f32 %v3337, %v1865
    %v3401 = vmul.f32 %v3338, %v1866
    %v3402 = vmul.f32 %v3339, %v1867
    %v3403 = vmul.f32 %v3340, %v1868
    %v3404 = vmul.f32 %v3341, %v1869
    %v3405 = vmul.f32 %v3342, %v1870
    %v3406 = vmul.f32 %v3343, %v1871
    %v3407 = vmul.f32 %v3344, %v1872
    %v3408 = vmul.f32 %v3345, %v1873
    %v3409 = vmul.f32 %v3346, %v1874
    %v3410 = vmul.f32 %v3347, %v1875
    %v3411 = vmul.f32 %v3348, %v1876
    %v3412 = vmul.f32 %v3349, %v1877
    %v3413 = vmul.f32 %v3350, %v1878
    %v3414 = vmul.f32 %v3351, %v1879
    %v3415 = vmul.f32 %v3352, %v1880
    %v3416 = vmul.f32 %v3353, %v1881
    %v3417 = vmul.f32 %v3354, %v1882
    %v3418 = vmul.f32 %v3355, %v1883
    %v3419 = vmul.f32 %v3356, %v1884
    %v3420 = vmul.f32 %v3357, %v1885
    %v3421 = vadd.f32 %v3379, %v3400
    %v3422 = vadd.f32 %v3380, %v3401
    %v3423 = vadd.f32 %v3381, %v3402
    %v3424 = vadd.f32 %v3382, %v3403
    %v3425 = vadd.f32 %v3383, %v3404
    %v3426 = vadd.f32 %v3384, %v3405
    %v3427 = vadd.f32 %v3385, %v3406
    %v3428 = vadd.f32 %v3386, %v3407
    %v3429 = vadd.f32 %v3387, %v3408
    %v3430 = vadd.f32 %v3388, %v3409
    %v3431 = vadd.f32 %v3389, %v3410
    %v3432 = vadd.f32 %v3390, %v3411
    %v3433 = vadd.f32 %v3391, %v3412
    %v3434 = vadd.f32 %v3392, %v3413
    %v3435 = vadd.f32 %v3393, %v3414
    %v3436 = vadd.f32 %v3394, %v3415
    %v3437 = vadd.f32 %v3395, %v3416
    %v3438 = vadd.f32 %v3396, %v3417
    %v3439 = vadd.f32 %v3397, %v3418
    %v3440 = vadd.f32 %v3398, %v3419
    %v3441 = vadd.f32 %v3399, %v3420
    %v3442 = vld [vmem:[%s4] sm:$0x1]
    %v3443 = vld [vmem:[#allocation2] sm:$0x1]
    %3445 = vset.pattern.permute.xlu0 0
    %3446 = vperm.xlu0 %3445, %v3443
    %v3447 = vpop.permute.xlu0 %3446
    %v3449 = vlaneseq
    %v3450 = vshrl.u32 %v3449, 7
    %v3451 = vsub.s32 0, %v3450
    %v3452 = vrot.slane %v3447, %v3451
    %v3454 = vsel %vm1956, %v3442, 0
    %3456 = vmatprep.subr.mxu0 %v3422
    %3457 = vmatpush1.msra.mxu0 %v3421
    %3458 = vmatprep.subr.mxu0 %v3425
    %3459 = vmatpush1.msra.mxu0 %v3424
    %3460 = vmatprep.subr.mxu0 %v3428
    %3461 = vmatpush1.msra.mxu0 %v3427
    %3462 = vmatprep.subr.mxu0 %v3431
    %3463 = vmatpush1.msra.mxu0 %v3430
    %3464 = vmatprep.subr.mxu0 %v3434
    %3465 = vmatpush1.msra.mxu0 %v3433
    %3466 = vmatprep.subr.mxu0 %v3437
    %3467 = vmatpush1.msra.mxu0 %v3436
    %3468 = vmatprep.subr.mxu0 %v3440
    %3469 = vmatpush1.msra.mxu0 %v3439
    %3470 = vmatprep.subr.mxu0 0.0
    %3471 = vmatpush1.msra.mxu0 0.0
    %3472 = vmatprep.subr.mxu0 0.0
    %3473 = vmatpush1.msra.mxu0 0.0
    %3474 = vmatprep.subr.mxu0 0.0
    %3475 = vmatpush1.msra.mxu0 0.0
    %3476 = vmatprep.subr.mxu0 0.0
    %3477 = vmatpush1.msra.mxu0 0.0
    %3478 = vmatprep.subr.mxu0 0.0
    %3479 = vmatpush1.msra.mxu0 0.0
    %3480 = vmatprep.subr.mxu0 0.0
    %3481 = vmatpush1.msra.mxu0 0.0
    %3482 = vmatprep.subr.mxu0 0.0
    %3483 = vmatpush1.msra.mxu0 0.0
    %3484 = vmatprep.subr.mxu0 0.0
    %3485 = vmatpush1.msra.mxu0 0.0
    %3486 = vmatprep.subr.mxu0 0.0
    %3487 = vmatpush1.msra.mxu0 0.0
    %3488 = vmatprep.subr.mxu0 0.0
    %3489 = vmatpush1.msra.mxu0 0.0
    %3490 = vmatprep.subr.mxu0 0.0
    %3491 = vmatpush1.msra.mxu0 0.0
    %3492 = vmatprep.subr.mxu0 0.0
    %3493 = vmatpush1.msra.mxu0 0.0
    %3494 = vmatprep.subr.mxu0 0.0
    %3495 = vmatpush1.msra.mxu0 0.0
    %3496 = vmatprep.subr.mxu0 0.0
    %3497 = vmatpush1.msra.mxu0 0.0
    %3498 = vmatprep.subr.mxu0 0.0
    %3499 = vmatpush1.msra.mxu0 0.0
    %3500 = vmatprep.subr.mxu0 0.0
    %3501 = vmatpush1.msra.mxu0 0.0
    %3502 = vmatprep.subr.mxu0 0.0
    %3503 = vmatpush1.msra.mxu0 0.0
    %3504 = vmatprep.subr.mxu0 0.0
    %3505 = vmatpush1.msra.mxu0 0.0
    %3506 = vmatprep.subr.mxu0 0.0
    %3507 = vmatpush1.msra.mxu0 0.0
    %3508 = vmatprep.subr.mxu0 0.0
    %3509 = vmatpush1.msra.mxu0 0.0
    %3510 = vmatprep.subr.mxu0 0.0
    %3511 = vmatpush1.msra.mxu0 0.0
    %3512 = vmatprep.subr.mxu0 0.0
    %3513 = vmatpush1.msra.mxu0 0.0
    %3514 = vmatprep.subr.mxu0 0.0
    %3515 = vmatpush1.msra.mxu0 0.0
    %3516 = vmatprep.subr.mxu0 0.0
    %3517 = vmatpush1.msra.mxu0 0.0
    %3518 = vmatprep.subr.mxu0 0.0
    %3519 = vmatpush1.msra.mxu0 0.0
    %3520 = vmatprep.mubr.f32.mxu0 0.0
    %3521 = vmatmul.mubr.f32.gmra.mrb[0].mxu0 %v3454
    %v3522 = vpop.f32.mrb[0].mxu0
    %v3523 = vadd.f32 %v3452, %v3522
    %v3524 = vpop.f32.mrb[0].mxu0
    %v3525 = vadd.f32 %v3452, %v3524
    %3526 = vdwg.mxu0
    %3527 = vmatprep.subr.mxu0 0.0
    %3528 = vmatpush1.msra.mxu0 %v3423
    %3529 = vmatprep.subr.mxu0 0.0
    %3530 = vmatpush1.msra.mxu0 %v3426
    %3531 = vmatprep.subr.mxu0 0.0
    %3532 = vmatpush1.msra.mxu0 %v3429
    %3533 = vmatprep.subr.mxu0 0.0
    %3534 = vmatpush1.msra.mxu0 %v3432
    %3535 = vmatprep.subr.mxu0 0.0
    %3536 = vmatpush1.msra.mxu0 %v3435
    %3537 = vmatprep.subr.mxu0 0.0
    %3538 = vmatpush1.msra.mxu0 %v3438
    %3539 = vmatprep.subr.mxu0 0.0
    %3540 = vmatpush1.msra.mxu0 %v3441
    %3541 = vmatprep.subr.mxu0 0.0
    %3542 = vmatpush1.msra.mxu0 0.0
    %3543 = vmatprep.subr.mxu0 0.0
    %3544 = vmatpush1.msra.mxu0 0.0
    %3545 = vmatprep.subr.mxu0 0.0
    %3546 = vmatpush1.msra.mxu0 0.0
    %3547 = vmatprep.subr.mxu0 0.0
    %3548 = vmatpush1.msra.mxu0 0.0
    %3549 = vmatprep.subr.mxu0 0.0
    %3550 = vmatpush1.msra.mxu0 0.0
    %3551 = vmatprep.subr.mxu0 0.0
    %3552 = vmatpush1.msra.mxu0 0.0
    %3553 = vmatprep.subr.mxu0 0.0
    %3554 = vmatpush1.msra.mxu0 0.0
    %3555 = vmatprep.subr.mxu0 0.0
    %3556 = vmatpush1.msra.mxu0 0.0
    %3557 = vmatprep.subr.mxu0 0.0
    %3558 = vmatpush1.msra.mxu0 0.0
    %3559 = vmatprep.subr.mxu0 0.0
    %3560 = vmatpush1.msra.mxu0 0.0
    %3561 = vmatprep.subr.mxu0 0.0
    %3562 = vmatpush1.msra.mxu0 0.0
    %3563 = vmatprep.subr.mxu0 0.0
    %3564 = vmatpush1.msra.mxu0 0.0
    %3565 = vmatprep.subr.mxu0 0.0
    %3566 = vmatpush1.msra.mxu0 0.0
    %3567 = vmatprep.subr.mxu0 0.0
    %3568 = vmatpush1.msra.mxu0 0.0
    %3569 = vmatprep.subr.mxu0 0.0
    %3570 = vmatpush1.msra.mxu0 0.0
    %3571 = vmatprep.subr.mxu0 0.0
    %3572 = vmatpush1.msra.mxu0 0.0
    %3573 = vmatprep.subr.mxu0 0.0
    %3574 = vmatpush1.msra.mxu0 0.0
    %3575 = vmatprep.subr.mxu0 0.0
    %3576 = vmatpush1.msra.mxu0 0.0
    %3577 = vmatprep.subr.mxu0 0.0
    %3578 = vmatpush1.msra.mxu0 0.0
    %3579 = vmatprep.subr.mxu0 0.0
    %3580 = vmatpush1.msra.mxu0 0.0
    %3581 = vmatprep.subr.mxu0 0.0
    %3582 = vmatpush1.msra.mxu0 0.0
    %3583 = vmatprep.subr.mxu0 0.0
    %3584 = vmatpush1.msra.mxu0 0.0
    %3585 = vmatprep.subr.mxu0 0.0
    %3586 = vmatpush1.msra.mxu0 0.0
    %3587 = vmatprep.subr.mxu0 0.0
    %3588 = vmatpush1.msra.mxu0 0.0
    %3589 = vmatprep.subr.mxu0 0.0
    %3590 = vmatpush1.msra.mxu0 0.0
    %3591 = vmatprep.mubr.f32.mxu0 0.0
    %3592 = vmatmul.mubr.f32.gmra.mrb[0].mxu0 %v3454
    %v3593 = vpop.f32.mrb[0].mxu0
    %v3594 = vadd.f32 %v3452, %v3593
    %v3595 = vpop.f32.mrb[0].mxu0
    %3596 = vdwg.mxu0
    %v3600 = vcombine.low %v3523, %v3525
    %v3602 = vunpack.c.l.s4 1966171168
    %v3603 = vunpack.c.0.s8 %v3602
    %v3604 = vlaneseq
    %v3605 = vshrl.u32 %v3604, 7
    %v3606 = vsub.s32 %v3603, %v3605
    %v3607 = vrot.slane %v3600, %v3606
    %v3609 = vunpack.c.l.s4 1966171168
    %v3610 = vunpack.c.0.s8 %v3609
    %v3611 = vlaneseq
    %v3612 = vshrl.u32 %v3611, 7
    %v3613 = vsub.s32 %v3610, %v3612
    %v3614 = vrot.slane %v3594, %v3613
    %v3615 = vcombine.low %v3607, %v3614
    %v3617 = vunpack.c.l.s4 1966171168
    %v3618 = vunpack.c.0.s8 %v3617
    %v3619 = vlaneseq
    %v3620 = vshrl.u32 %v3619, 7
    %v3621 = vsub.s32 %v3618, %v3620
    %v3622 = vrot.slane %v3615, %v3621
    %v3624 = vlaneseq
    %vm3625 = vcmp.ge.s32.totalorder %v3624, 0
    %vm3626 = vcmp.lt.s32.totalorder %v3624, 384
    %vm3627 = vmand %vm3625, %vm3626
    %3628 = vst.msk [vmem:[#allocation3] sm:$0x7] %vm3627, %v3622
    // Predicated region
    $region26: #{tpu_custom_call.1} parent=1 // pred_check
      _
    $region27: #{tpu_custom_call.1} parent=1 // pred_check_branch
      %3630 = sbr.rel (0) target = $region29
    $region28: #{tpu_custom_call.1} parent=1 // pred_region
      %s3632 = ssub.s32 48, 48
      %3633 = vsyncadd [#allocation4], %s3632
      %s3635 = sshll.u32 [#allocation3], 4
      %s3636 = int_to_ptr.vmem [resolvable:$true] %s3635
      %3638 = dma.vmem_to_hbm [thread:$0]  %s3636, 48, %s6, [#allocation4]
    $region29: #{tpu_custom_call.1} parent=1 // pred_fallthru
      _
    // Predicated region
    $region30: #{tpu_custom_call.1} parent=1 // pred_check
      _
    $region31: #{tpu_custom_call.1} parent=1 // pred_check_branch
      %3640 = sbr.rel (0) target = $region33
    $region32: #{tpu_custom_call.1} parent=1 // pred_region
      %3641 = dma.done [#allocation4], 48
    $region33: #{tpu_custom_call.1} parent=1 // pred_fallthru
      _
    %3642 = vsyncpa [#allocation4], 1

</llo_original>
